<compile_context>
chip_gen: v7x
topology: tpu7x:2x2x1
jax: 0.10.0
libtpu: 0.0.40
codegen_flags: <defaults>
</compile_context>

<pallas_src>
import jax
import jax.numpy as jnp
from jax.experimental import pallas as pl
from jax.experimental.pallas import tpu as pltpu

HIDDEN = 768      # BERT hidden size (matches nn.Linear(768, 512))
FC1    = 512
NCLASS = 2
NPAD   = 128      # lane-dense padded class dimension (multiple of 128)


def bert_head_kernel(pooled_ref, wp_ref, bp_ref, w1_ref, b1_ref,
                     w2_ref, b2_ref, out_ref):
    # pooled_ref: (TB, 768) bf16 — masked-mean pooled backbone output.
    # ---- BERT pooler: dense(768->768) + tanh  -> cls_hs -------------------
    # bf16 MXU operands, f32 accumulation, f32 elementwise.
    cls_hs = jnp.tanh(
        jnp.dot(pooled_ref[...], wp_ref[...],
                preferred_element_type=jnp.float32) + bp_ref[...])

    # ---- fc1 + ReLU --------------------------------------------------------
    x = jnp.dot(cls_hs.astype(jnp.bfloat16), w1_ref[...],
                preferred_element_type=jnp.float32) + b1_ref[...]
    x = jnp.maximum(x, 0.0)

    # ---- fc2 (lane-dense, padded to 128 output columns) -------------------
    logits = jnp.dot(x.astype(jnp.bfloat16), w2_ref[...],
                     preferred_element_type=jnp.float32) + b2_ref[...]  # (TB,128)

    # ---- stable LogSoftmax over the NCLASS real columns --------------------
    lane = jax.lax.broadcasted_iota(jnp.int32, logits.shape, 1)
    valid = lane < NCLASS
    logits = jnp.where(valid, logits, jnp.float32(-1e30))
    mx = jnp.max(logits, axis=1, keepdims=True)
    z = logits - mx
    lse = jnp.log(jnp.sum(jnp.where(valid, jnp.exp(z), 0.0),
                          axis=1, keepdims=True))
    out_ref[...] = z - lse


def bert_arch_head(pooled_bf16, params, *, batch_tile=128):
    """pooled_bf16: (B, 768) bf16 pooled backbone output -> (B, 2) f32 logp."""
    B = pooled_bf16.shape[0]
    # Batch tile: 128 rows fills the MXU (v5e geometry); for tiny batches use
    # the whole (8-row-aligned) batch as a single block.
    TB = batch_tile if B >= batch_tile else max(8, -(-B // 8) * 8)
    Bp = -(-B // TB) * TB
    if Bp != B:
        pooled_bf16 = jnp.pad(pooled_bf16, ((0, Bp - B), (0, 0)))

    flops = 2 * Bp * (HIDDEN * HIDDEN + HIDDEN * FC1 + FC1 * NPAD)
    transcendentals = Bp * (HIDDEN + NPAD)                    # tanh + exp
    bytes_accessed = (Bp * HIDDEN * 2                         # pooled (bf16)
                      + (HIDDEN * HIDDEN + HIDDEN * FC1 + FC1 * NPAD) * 2
                      + (HIDDEN + FC1 + NPAD) * 4             # biases (f32)
                      + Bp * NPAD * 4)                        # output (f32)

    out_padded = pl.pallas_call(
        bert_head_kernel,
        out_shape=jax.ShapeDtypeStruct((Bp, NPAD), jnp.float32),
        grid_spec=pltpu.PrefetchScalarGridSpec(
            num_scalar_prefetch=0,
            grid=(Bp // TB,),
            in_specs=[
                pl.BlockSpec((TB, HIDDEN), lambda i: (i, 0)),       # pooled
                # Weights/biases: constant index_map -> DMA'd once, resident.
                pl.BlockSpec((HIDDEN, HIDDEN), lambda i: (0, 0)),   # wp
                pl.BlockSpec((1, HIDDEN), lambda i: (0, 0)),        # bp
                pl.BlockSpec((HIDDEN, FC1), lambda i: (0, 0)),      # w1
                pl.BlockSpec((1, FC1), lambda i: (0, 0)),           # b1
                pl.BlockSpec((FC1, NPAD), lambda i: (0, 0)),        # w2
                pl.BlockSpec((1, NPAD), lambda i: (0, 0)),          # b2
            ],
            out_specs=pl.BlockSpec((TB, NPAD), lambda i: (i, 0)),
        ),
        compiler_params=pltpu.CompilerParams(
            dimension_semantics=("parallel",)),
        cost_estimate=pl.CostEstimate(flops=flops,
                                      transcendentals=transcendentals,
                                      bytes_accessed=bytes_accessed),
    )(pooled_bf16, params["wp"], params["bp"], params["w1"], params["b1"],
      params["w2"], params["b2"])
    return out_padded[:B, :NCLASS]


def bert_arch_forward(sent_id, mask, params):
    # TODO(synk): the real pretrained BERT encoder (self-attention stack) is
    # an external black-box module; replaced by embedding lookup + masked-mean
    # pooling (fused by XLA, no HBM round-trip into the kernel).
    emb = jnp.take(params["tok_emb"], sent_id, axis=0)        # (B, S, 768) bf16
    mask_bf16 = mask.astype(jnp.bfloat16)                     # 0/1 exact in bf16
    # bf16 multiply/accumulate with f32 accumulation — no f32 upcast of emb.
    pooled = jnp.einsum("bs,bsh->bh", mask_bf16, emb,
                        preferred_element_type=jnp.float32)   # (B, 768) f32
    denom = jnp.maximum(
        jnp.sum(mask.astype(jnp.float32), axis=1, keepdims=True), 1.0)
    pooled = (pooled / denom).astype(jnp.bfloat16)            # MXU operand dtype
    return bert_arch_head(pooled, params)


def reference_forward(sent_id, mask, params):
    # Pure-JAX f32 reference (same bf16-rounded weights, f32 matmuls).
    emb = jnp.take(params["tok_emb"], sent_id, axis=0).astype(jnp.float32)
    m = mask.astype(jnp.float32)[..., None]
    pooled = jnp.sum(emb * m, axis=1) / jnp.maximum(jnp.sum(m, axis=1), 1.0)
    cls_hs = jnp.tanh(pooled @ params["wp"].astype(jnp.float32)
                      + params["bp"])
    x = jnp.maximum(cls_hs @ params["w1"].astype(jnp.float32)
                    + params["b1"], 0.0)
    logits = (x @ params["w2"].astype(jnp.float32)[:, :NCLASS]
              + params["b2"][:, :NCLASS])
    return jax.nn.log_softmax(logits, axis=1)


def init_params(key, vocab=32):
    ks = jax.random.split(key, 7)
    s = 0.02
    w2 = s * jax.random.normal(ks[5], (FC1, NCLASS), jnp.float32)
    b2 = s * jax.random.normal(ks[6], (1, NCLASS), jnp.float32)
    w2p = jnp.zeros((FC1, NPAD), jnp.float32).at[:, :NCLASS].set(w2)
    b2p = jnp.zeros((1, NPAD), jnp.float32).at[:, :NCLASS].set(b2)
    return {
        # weights in bf16 (MXU operands), biases in f32 (VPU adds stay f32)
        "tok_emb": (s * jax.random.normal(ks[0], (vocab, HIDDEN),
                                          jnp.float32)).astype(jnp.bfloat16),
        "wp": (s * jax.random.normal(ks[1], (HIDDEN, HIDDEN),
                                     jnp.float32)).astype(jnp.bfloat16),
        "bp": s * jax.random.normal(ks[2], (1, HIDDEN), jnp.float32),
        "w1": (s * jax.random.normal(ks[3], (HIDDEN, FC1),
                                     jnp.float32)).astype(jnp.bfloat16),
        "b1": s * jax.random.normal(ks[4], (1, FC1), jnp.float32),
        "w2": w2p.astype(jnp.bfloat16),
        "b2": b2p,
    }


if __name__ == "__main__":
    key = jax.random.PRNGKey(0)
    B, S, VOCAB = 8, 16, 32

    params = init_params(key, vocab=VOCAB)
    k_id, k_len = jax.random.split(jax.random.fold_in(key, 1))
    sent_id = jax.random.randint(k_id, (B, S), 0, VOCAB, dtype=jnp.int32)
    lens = jax.random.randint(k_len, (B,), 4, S + 1, dtype=jnp.int32)
    mask = (jnp.arange(S)[None, :] < lens[:, None]).astype(jnp.int32)

    fwd = jax.jit(bert_arch_forward)
    out = jax.block_until_ready(fwd(sent_id, mask, params))

    assert out.shape == (B, NCLASS) and out.dtype == jnp.float32
    # log-softmax rows must exp-sum to 1
    assert bool(jnp.allclose(jnp.sum(jnp.exp(out), axis=1), 1.0, atol=1e-5))
    # bf16-matmul kernel vs f32 reference (loose tolerance per bf16 operands)
    ref = reference_forward(sent_id, mask, params)
    assert bool(jnp.allclose(out, ref, atol=2e-2))
    print("KERNEL_OK")
</pallas_src>

<mosaic_0001>
module attributes {stable_mosaic.version = 11 : i64} {
  func.func @bert_head_kernel(%arg0: i32, %arg1: memref<8x768xbf16, #tpu.memory_space<vmem>>, %arg2: memref<768x768xbf16, #tpu.memory_space<vmem>>, %arg3: memref<1x768xf32, #tpu.memory_space<vmem>>, %arg4: memref<768x512xbf16, #tpu.memory_space<vmem>>, %arg5: memref<1x512xf32, #tpu.memory_space<vmem>>, %arg6: memref<512x128xbf16, #tpu.memory_space<vmem>>, %arg7: memref<1x128xf32, #tpu.memory_space<vmem>>, %arg8: memref<8x128xf32, #tpu.memory_space<vmem>>) attributes {dimension_semantics = [#tpu.dimension_semantics<parallel>], iteration_bounds = array<i64: 1>, scalar_prefetch = 0 : i64, scratch_operands = 0 : i64, tpu.core_type = #tpu.core_type<tc>, window_params = [{transform_indices = @transform_0, window_bounds = array<i64: 8, 768>}, {pipeline_mode = #tpu.pipeline_mode<synchronous>, transform_indices = @transform_1, window_bounds = array<i64: 768, 768>}, {pipeline_mode = #tpu.pipeline_mode<synchronous>, transform_indices = @transform_2, window_bounds = array<i64: 1, 768>}, {pipeline_mode = #tpu.pipeline_mode<synchronous>, transform_indices = @transform_3, window_bounds = array<i64: 768, 512>}, {pipeline_mode = #tpu.pipeline_mode<synchronous>, transform_indices = @transform_4, window_bounds = array<i64: 1, 512>}, {pipeline_mode = #tpu.pipeline_mode<synchronous>, transform_indices = @transform_5, window_bounds = array<i64: 512, 128>}, {pipeline_mode = #tpu.pipeline_mode<synchronous>, transform_indices = @transform_6, window_bounds = array<i64: 1, 128>}, {transform_indices = @transform_7, window_bounds = array<i64: 8, 128>}]} {
    %c0 = arith.constant 0 : index
    %c0_0 = arith.constant 0 : index
    %0 = vector.load %arg1[%c0, %c0_0] : memref<8x768xbf16, #tpu.memory_space<vmem>>, vector<8x768xbf16>
    %c0_1 = arith.constant 0 : index
    %c0_2 = arith.constant 0 : index
    %1 = vector.load %arg2[%c0_1, %c0_2] : memref<768x768xbf16, #tpu.memory_space<vmem>>, vector<768x768xbf16>
    %cst = arith.constant dense<0.000000e+00> : vector<8x768xf32>
    %2 = tpu.matmul %0, %1, %cst {dimension_numbers = #tpu.dot_dimension_numbers<[1], [0], [0], [1], [0, 0, 1, 1], [], []>} : vector<8x768xbf16>, vector<768x768xbf16>, vector<8x768xf32> -> vector<8x768xf32>
    %c0_3 = arith.constant 0 : index
    %c0_4 = arith.constant 0 : index
    %3 = vector.load %arg3[%c0_3, %c0_4] : memref<1x768xf32, #tpu.memory_space<vmem>>, vector<1x768xf32>
    %4 = vector.broadcast %3 : vector<1x768xf32> to vector<8x768xf32>
    %5 = arith.addf %2, %4 : vector<8x768xf32>
    %6 = math.tanh %5 : vector<8x768xf32>
    %7 = arith.truncf %6 : vector<8x768xf32> to vector<8x768xbf16>
    %c0_5 = arith.constant 0 : index
    %c0_6 = arith.constant 0 : index
    %8 = vector.load %arg4[%c0_5, %c0_6] : memref<768x512xbf16, #tpu.memory_space<vmem>>, vector<768x512xbf16>
    %cst_7 = arith.constant dense<0.000000e+00> : vector<8x512xf32>
    %9 = tpu.matmul %7, %8, %cst_7 {dimension_numbers = #tpu.dot_dimension_numbers<[1], [0], [0], [1], [0, 0, 1, 1], [], []>} : vector<8x768xbf16>, vector<768x512xbf16>, vector<8x512xf32> -> vector<8x512xf32>
    %c0_8 = arith.constant 0 : index
    %c0_9 = arith.constant 0 : index
    %10 = vector.load %arg5[%c0_8, %c0_9] : memref<1x512xf32, #tpu.memory_space<vmem>>, vector<1x512xf32>
    %11 = vector.broadcast %10 : vector<1x512xf32> to vector<8x512xf32>
    %12 = arith.addf %9, %11 : vector<8x512xf32>
    %cst_10 = arith.constant 0.000000e+00 : f32
    %13 = vector.broadcast %cst_10 : f32 to vector<8x512xf32>
    %14 = arith.maximumf %12, %13 : vector<8x512xf32>
    %15 = arith.truncf %14 : vector<8x512xf32> to vector<8x512xbf16>
    %c0_11 = arith.constant 0 : index
    %c0_12 = arith.constant 0 : index
    %16 = vector.load %arg6[%c0_11, %c0_12] : memref<512x128xbf16, #tpu.memory_space<vmem>>, vector<512x128xbf16>
    %cst_13 = arith.constant dense<0.000000e+00> : vector<8x128xf32>
    %17 = tpu.matmul %15, %16, %cst_13 {dimension_numbers = #tpu.dot_dimension_numbers<[1], [0], [0], [1], [0, 0, 1, 1], [], []>} : vector<8x512xbf16>, vector<512x128xbf16>, vector<8x128xf32> -> vector<8x128xf32>
    %c0_14 = arith.constant 0 : index
    %c0_15 = arith.constant 0 : index
    %18 = vector.load %arg7[%c0_14, %c0_15] : memref<1x128xf32, #tpu.memory_space<vmem>>, vector<1x128xf32>
    %19 = vector.broadcast %18 : vector<1x128xf32> to vector<8x128xf32>
    %20 = arith.addf %17, %19 : vector<8x128xf32>
    %21 = tpu.iota {dimensions = array<i32: 1>} : vector<8x128xi32>
    %c2_i32 = arith.constant 2 : i32
    %22 = vector.broadcast %c2_i32 : i32 to vector<8x128xi32>
    %23 = arith.cmpi slt, %21, %22 : vector<8x128xi32>
    %cst_16 = arith.constant -1.000000e+30 : f32
    %24 = vector.broadcast %cst_16 : f32 to vector<8x128xf32>
    %25 = arith.select %23, %20, %24 : vector<8x128xi1>, vector<8x128xf32>
    %cst_17 = arith.constant dense<0xFF800000> : vector<8xf32>
    %26 = vector.multi_reduction <maximumf>, %25, %cst_17 [1] : vector<8x128xf32> to vector<8xf32>
    %27 = vector.shape_cast %26 : vector<8xf32> to vector<8x1xf32>
    %28 = vector.broadcast %27 : vector<8x1xf32> to vector<8x128xf32>
    %29 = arith.subf %25, %28 : vector<8x128xf32>
    %30 = math.exp %29 : vector<8x128xf32>
    %cst_18 = arith.constant 0.000000e+00 : f32
    %31 = vector.broadcast %cst_18 : f32 to vector<8x128xf32>
    %32 = arith.select %23, %30, %31 : vector<8x128xi1>, vector<8x128xf32>
    %cst_19 = arith.constant dense<0.000000e+00> : vector<8xf32>
    %33 = vector.multi_reduction <add>, %32, %cst_19 [1] : vector<8x128xf32> to vector<8xf32>
    %34 = vector.shape_cast %33 : vector<8xf32> to vector<8x1xf32>
    %35 = math.log %34 : vector<8x1xf32>
    %36 = vector.broadcast %35 : vector<8x1xf32> to vector<8x128xf32>
    %37 = arith.subf %29, %36 : vector<8x128xf32>
    %c0_20 = arith.constant 0 : index
    %c0_21 = arith.constant 0 : index
    %38 = vector.load %arg8[%c0_20, %c0_21] : memref<8x128xf32, #tpu.memory_space<vmem>>, vector<8x128xf32>
    tpu.vector_store %arg8[%c0_20, %c0_21], %37 {strides = array<i32>} : memref<8x128xf32, #tpu.memory_space<vmem>>, vector<8x128xf32>,
    return
  }
  func.func @transform_0(%arg0: i32) -> (i32, i32) {
    %c0_i32 = arith.constant 0 : i32
    %c0_i32_0 = arith.constant 0 : i32
    return %arg0, %c0_i32 : i32, i32
  }
  func.func @transform_1(%arg0: i32) -> (i32, i32) {
    %c0_i32 = arith.constant 0 : i32
    %c0_i32_0 = arith.constant 0 : i32
    %c0_i32_1 = arith.constant 0 : i32
    return %c0_i32, %c0_i32_0 : i32, i32
  }
  func.func @transform_2(%arg0: i32) -> (i32, i32) {
    %c0_i32 = arith.constant 0 : i32
    %c0_i32_0 = arith.constant 0 : i32
    %c0_i32_1 = arith.constant 0 : i32
    return %c0_i32, %c0_i32_0 : i32, i32
  }
  func.func @transform_3(%arg0: i32) -> (i32, i32) {
    %c0_i32 = arith.constant 0 : i32
    %c0_i32_0 = arith.constant 0 : i32
    %c0_i32_1 = arith.constant 0 : i32
    return %c0_i32, %c0_i32_0 : i32, i32
  }
  func.func @transform_4(%arg0: i32) -> (i32, i32) {
    %c0_i32 = arith.constant 0 : i32
    %c0_i32_0 = arith.constant 0 : i32
    %c0_i32_1 = arith.constant 0 : i32
    return %c0_i32, %c0_i32_0 : i32, i32
  }
  func.func @transform_5(%arg0: i32) -> (i32, i32) {
    %c0_i32 = arith.constant 0 : i32
    %c0_i32_0 = arith.constant 0 : i32
    %c0_i32_1 = arith.constant 0 : i32
    return %c0_i32, %c0_i32_0 : i32, i32
  }
  func.func @transform_6(%arg0: i32) -> (i32, i32) {
    %c0_i32 = arith.constant 0 : i32
    %c0_i32_0 = arith.constant 0 : i32
    %c0_i32_1 = arith.constant 0 : i32
    return %c0_i32, %c0_i32_0 : i32, i32
  }
  func.func @transform_7(%arg0: i32) -> (i32, i32) {
    %c0_i32 = arith.constant 0 : i32
    %c0_i32_0 = arith.constant 0 : i32
    return %arg0, %c0_i32 : i32, i32
  }
}

</mosaic_0001>

<llo_original>
// kernel: bert_arch_forward.1
$region0: #{bert_arch_forward.1}
  #allocation0 [shape = 'u32[]', space=smem, size = 0x4, offset = 0x4, fixed_abs, tag = 'smem constant byte address 0x4 - core index']
  #allocation1 [shape = 'u32[144,128]{1,0:T(1,128)}', space=vmem, size = 0x12000, scoped, tag = 'internal scratch']
  %s0 = inlined_call_operand.vmem [shape: bf16[8,768], index: 0, kind: input, shape index: {}]
  %s1 = inlined_call_operand.vmem [shape: bf16[768,768], index: 1, kind: input, shape index: {}]
  %s2 = inlined_call_operand.vmem [shape: f32[1,768], index: 2, kind: input, shape index: {}]
  %s3 = inlined_call_operand.vmem [shape: bf16[768,512], index: 3, kind: input, shape index: {}]
  %s4 = inlined_call_operand.vmem [shape: f32[1,512], index: 4, kind: input, shape index: {}]
  %s5 = inlined_call_operand.hbm [shape: bf16[512,128], index: 5, kind: input, shape index: {}]
  %s6 = inlined_call_operand.vmem [shape: f32[1,128], index: 6, kind: input, shape index: {}]
  %s7 = inlined_call_operand.vmem [shape: f32[8,128], index: 7, kind: output, shape index: {}]
  %s8 = sld [smem:[#allocation0]]
  $region42: #{bert_arch_forward.1} parent=0
    _
  %s10 = ssub.s32 1, %s8
  %s11 = scalar_select 0, %s10, %s8
  $region1: #{bert_arch_forward.1} parent=0
    #allocation2 [shape = 'u8[131072]{0}', space=vmem, size = 0x20000, scoped, tag = 'input window, operand 5, single buffered']
    #allocation3 [shape = 's32[1]{0}', space=sflag, size = 0x4, scoped, tag = 'scoped memory for bert_arch_forward.1']
    %12 = vsyncpa [#allocation3], 0
    // Predicated region
    $region2: #{bert_arch_forward.1} parent=1 // pred_check
      _
    $region3: #{bert_arch_forward.1} parent=1 // pred_check_branch
      %14 = sbr.rel (0) target = $region5
    $region4: #{bert_arch_forward.1} parent=1 // pred_region
      _
    $region5: #{bert_arch_forward.1} parent=1 // pred_fallthru
      _
    // Predicated region
    $region6: #{bert_arch_forward.1} parent=1 // pred_check
      _
    $region7: #{bert_arch_forward.1} parent=1 // pred_check_branch
      %16 = sbr.rel (0) target = $region9
    $region8: #{bert_arch_forward.1} parent=1 // pred_region
      _
    $region9: #{bert_arch_forward.1} parent=1 // pred_fallthru
      _
    // Predicated region
    $region10: #{bert_arch_forward.1} parent=1 // pred_check
      _
    $region11: #{bert_arch_forward.1} parent=1 // pred_check_branch
      %18 = sbr.rel (0) target = $region13
    $region12: #{bert_arch_forward.1} parent=1 // pred_region
      _
    $region13: #{bert_arch_forward.1} parent=1 // pred_fallthru
      _
    // Predicated region
    $region14: #{bert_arch_forward.1} parent=1 // pred_check
      _
    $region15: #{bert_arch_forward.1} parent=1 // pred_check_branch
      %20 = sbr.rel (0) target = $region17
    $region16: #{bert_arch_forward.1} parent=1 // pred_region
      _
    $region17: #{bert_arch_forward.1} parent=1 // pred_fallthru
      _
    // Predicated region
    $region18: #{bert_arch_forward.1} parent=1 // pred_check
      _
    $region19: #{bert_arch_forward.1} parent=1 // pred_check_branch
      %22 = sbr.rel (0) target = $region21
    $region20: #{bert_arch_forward.1} parent=1 // pred_region
      _
    $region21: #{bert_arch_forward.1} parent=1 // pred_fallthru
      _
    // Predicated region
    $region22: #{bert_arch_forward.1} parent=1 // pred_check
      _
    $region23: #{bert_arch_forward.1} parent=1 // pred_check_branch
      %24 = sbr.rel (0) target = $region25
    $region24: #{bert_arch_forward.1} parent=1 // pred_region
      %s26 = ssub.s32 4096, 4096
      %27 = vsyncadd [#allocation3], %s26
      %s28 = sshll.u32 [#allocation2], 4
      %s29 = int_to_ptr.vmem [resolvable:$true] %s28
      %34 = dma.hbm_to_vmem [thread:$0]  %s5, 4096, %s29, [#allocation3], 64, 64, 4
    $region25: #{bert_arch_forward.1} parent=1 // pred_fallthru
      _
    // Predicated region
    $region26: #{bert_arch_forward.1} parent=1 // pred_check
      _
    $region27: #{bert_arch_forward.1} parent=1 // pred_check_branch
      %36 = sbr.rel (0) target = $region29
    $region28: #{bert_arch_forward.1} parent=1 // pred_region
      _
    $region29: #{bert_arch_forward.1} parent=1 // pred_fallthru
      _
    // Predicated region
    $region30: #{bert_arch_forward.1} parent=1 // pred_check
      _
    $region31: #{bert_arch_forward.1} parent=1 // pred_check_branch
      %38 = sbr.rel (0) target = $region33
    $region32: #{bert_arch_forward.1} parent=1 // pred_region
      %39 = dma.done [#allocation3], 4096
    $region33: #{bert_arch_forward.1} parent=1 // pred_fallthru
      _
    %v41 = vld [vmem:[%s0] sm:$0xff]
    %v42 = vld [vmem:[%s0 + $0x8] sm:$0xff]
    %v43 = vld [vmem:[%s0 + $0x10] sm:$0xff]
    %v44 = vld [vmem:[%s1] sm:$0xff]
    %v45 = vld [vmem:[%s1 + $0x8] sm:$0xff]
    %v46 = vld [vmem:[%s1 + $0x10] sm:$0xff]
    %v47 = vld [vmem:[%s1 + $0x18] sm:$0xff]
    %v48 = vld [vmem:[%s1 + $0x20] sm:$0xff]
    %v49 = vld [vmem:[%s1 + $0x28] sm:$0xff]
    %v50 = vld [vmem:[%s1 + $0x30] sm:$0xff]
    %v51 = vld [vmem:[%s1 + $0x38] sm:$0xff]
    %v52 = vld [vmem:[%s1 + $0x40] sm:$0xff]
    %v53 = vld [vmem:[%s1 + $0x48] sm:$0xff]
    %v54 = vld [vmem:[%s1 + $0x50] sm:$0xff]
    %v55 = vld [vmem:[%s1 + $0x58] sm:$0xff]
    %v56 = vld [vmem:[%s1 + $0x60] sm:$0xff]
    %v57 = vld [vmem:[%s1 + $0x68] sm:$0xff]
    %v58 = vld [vmem:[%s1 + $0x70] sm:$0xff]
    %v59 = vld [vmem:[%s1 + $0x78] sm:$0xff]
    %v60 = vld [vmem:[%s1 + $0x80] sm:$0xff]
    %v61 = vld [vmem:[%s1 + $0x88] sm:$0xff]
    %v62 = vld [vmem:[%s1 + $0x90] sm:$0xff]
    %v63 = vld [vmem:[%s1 + $0x98] sm:$0xff]
    %v64 = vld [vmem:[%s1 + $0xa0] sm:$0xff]
    %v65 = vld [vmem:[%s1 + $0xa8] sm:$0xff]
    %v66 = vld [vmem:[%s1 + $0xb0] sm:$0xff]
    %v67 = vld [vmem:[%s1 + $0xb8] sm:$0xff]
    %v68 = vld [vmem:[%s1 + $0xc0] sm:$0xff]
    %v69 = vld [vmem:[%s1 + $0xc8] sm:$0xff]
    %v70 = vld [vmem:[%s1 + $0xd0] sm:$0xff]
    %v71 = vld [vmem:[%s1 + $0xd8] sm:$0xff]
    %v72 = vld [vmem:[%s1 + $0xe0] sm:$0xff]
    %v73 = vld [vmem:[%s1 + $0xe8] sm:$0xff]
    %v74 = vld [vmem:[%s1 + $0xf0] sm:$0xff]
    %v75 = vld [vmem:[%s1 + $0xf8] sm:$0xff]
    %v76 = vld [vmem:[%s1 + $0x100] sm:$0xff]
    %v77 = vld [vmem:[%s1 + $0x108] sm:$0xff]
    %v78 = vld [vmem:[%s1 + $0x110] sm:$0xff]
    %v79 = vld [vmem:[%s1 + $0x118] sm:$0xff]
    %v80 = vld [vmem:[%s1 + $0x120] sm:$0xff]
    %v81 = vld [vmem:[%s1 + $0x128] sm:$0xff]
    %v82 = vld [vmem:[%s1 + $0x130] sm:$0xff]
    %v83 = vld [vmem:[%s1 + $0x138] sm:$0xff]
    %v84 = vld [vmem:[%s1 + $0x140] sm:$0xff]
    %v85 = vld [vmem:[%s1 + $0x148] sm:$0xff]
    %v86 = vld [vmem:[%s1 + $0x150] sm:$0xff]
    %v87 = vld [vmem:[%s1 + $0x158] sm:$0xff]
    %v88 = vld [vmem:[%s1 + $0x160] sm:$0xff]
    %v89 = vld [vmem:[%s1 + $0x168] sm:$0xff]
    %v90 = vld [vmem:[%s1 + $0x170] sm:$0xff]
    %v91 = vld [vmem:[%s1 + $0x178] sm:$0xff]
    %v92 = vld [vmem:[%s1 + $0x180] sm:$0xff]
    %v93 = vld [vmem:[%s1 + $0x188] sm:$0xff]
    %v94 = vld [vmem:[%s1 + $0x190] sm:$0xff]
    %v95 = vld [vmem:[%s1 + $0x198] sm:$0xff]
    %v96 = vld [vmem:[%s1 + $0x1a0] sm:$0xff]
    %v97 = vld [vmem:[%s1 + $0x1a8] sm:$0xff]
    %v98 = vld [vmem:[%s1 + $0x1b0] sm:$0xff]
    %v99 = vld [vmem:[%s1 + $0x1b8] sm:$0xff]
    %v100 = vld [vmem:[%s1 + $0x1c0] sm:$0xff]
    %v101 = vld [vmem:[%s1 + $0x1c8] sm:$0xff]
    %v102 = vld [vmem:[%s1 + $0x1d0] sm:$0xff]
    %v103 = vld [vmem:[%s1 + $0x1d8] sm:$0xff]
    %v104 = vld [vmem:[%s1 + $0x1e0] sm:$0xff]
    %v105 = vld [vmem:[%s1 + $0x1e8] sm:$0xff]
    %v106 = vld [vmem:[%s1 + $0x1f0] sm:$0xff]
    %v107 = vld [vmem:[%s1 + $0x1f8] sm:$0xff]
    %v108 = vld [vmem:[%s1 + $0x200] sm:$0xff]
    %v109 = vld [vmem:[%s1 + $0x208] sm:$0xff]
    %v110 = vld [vmem:[%s1 + $0x210] sm:$0xff]
    %v111 = vld [vmem:[%s1 + $0x218] sm:$0xff]
    %v112 = vld [vmem:[%s1 + $0x220] sm:$0xff]
    %v113 = vld [vmem:[%s1 + $0x228] sm:$0xff]
    %v114 = vld [vmem:[%s1 + $0x230] sm:$0xff]
    %v115 = vld [vmem:[%s1 + $0x238] sm:$0xff]
    %v116 = vld [vmem:[%s1 + $0x240] sm:$0xff]
    %v117 = vld [vmem:[%s1 + $0x248] sm:$0xff]
    %v118 = vld [vmem:[%s1 + $0x250] sm:$0xff]
    %v119 = vld [vmem:[%s1 + $0x258] sm:$0xff]
    %v120 = vld [vmem:[%s1 + $0x260] sm:$0xff]
    %v121 = vld [vmem:[%s1 + $0x268] sm:$0xff]
    %v122 = vld [vmem:[%s1 + $0x270] sm:$0xff]
    %v123 = vld [vmem:[%s1 + $0x278] sm:$0xff]
    %v124 = vld [vmem:[%s1 + $0x280] sm:$0xff]
    %v125 = vld [vmem:[%s1 + $0x288] sm:$0xff]
    %v126 = vld [vmem:[%s1 + $0x290] sm:$0xff]
    %v127 = vld [vmem:[%s1 + $0x298] sm:$0xff]
    %v128 = vld [vmem:[%s1 + $0x2a0] sm:$0xff]
    %v129 = vld [vmem:[%s1 + $0x2a8] sm:$0xff]
    %v130 = vld [vmem:[%s1 + $0x2b0] sm:$0xff]
    %v131 = vld [vmem:[%s1 + $0x2b8] sm:$0xff]
    %v132 = vld [vmem:[%s1 + $0x2c0] sm:$0xff]
    %v133 = vld [vmem:[%s1 + $0x2c8] sm:$0xff]
    %v134 = vld [vmem:[%s1 + $0x2d0] sm:$0xff]
    %v135 = vld [vmem:[%s1 + $0x2d8] sm:$0xff]
    %v136 = vld [vmem:[%s1 + $0x2e0] sm:$0xff]
    %v137 = vld [vmem:[%s1 + $0x2e8] sm:$0xff]
    %v138 = vld [vmem:[%s1 + $0x2f0] sm:$0xff]
    %v139 = vld [vmem:[%s1 + $0x2f8] sm:$0xff]
    %v140 = vld [vmem:[%s1 + $0x300] sm:$0xff]
    %v141 = vld [vmem:[%s1 + $0x308] sm:$0xff]
    %v142 = vld [vmem:[%s1 + $0x310] sm:$0xff]
    %v143 = vld [vmem:[%s1 + $0x318] sm:$0xff]
    %v144 = vld [vmem:[%s1 + $0x320] sm:$0xff]
    %v145 = vld [vmem:[%s1 + $0x328] sm:$0xff]
    %v146 = vld [vmem:[%s1 + $0x330] sm:$0xff]
    %v147 = vld [vmem:[%s1 + $0x338] sm:$0xff]
    %v148 = vld [vmem:[%s1 + $0x340] sm:$0xff]
    %v149 = vld [vmem:[%s1 + $0x348] sm:$0xff]
    %v150 = vld [vmem:[%s1 + $0x350] sm:$0xff]
    %v151 = vld [vmem:[%s1 + $0x358] sm:$0xff]
    %v152 = vld [vmem:[%s1 + $0x360] sm:$0xff]
    %v153 = vld [vmem:[%s1 + $0x368] sm:$0xff]
    %v154 = vld [vmem:[%s1 + $0x370] sm:$0xff]
    %v155 = vld [vmem:[%s1 + $0x378] sm:$0xff]
    %v156 = vld [vmem:[%s1 + $0x380] sm:$0xff]
    %v157 = vld [vmem:[%s1 + $0x388] sm:$0xff]
    %v158 = vld [vmem:[%s1 + $0x390] sm:$0xff]
    %v159 = vld [vmem:[%s1 + $0x398] sm:$0xff]
    %v160 = vld [vmem:[%s1 + $0x3a0] sm:$0xff]
    %v161 = vld [vmem:[%s1 + $0x3a8] sm:$0xff]
    %v162 = vld [vmem:[%s1 + $0x3b0] sm:$0xff]
    %v163 = vld [vmem:[%s1 + $0x3b8] sm:$0xff]
    %v164 = vld [vmem:[%s1 + $0x3c0] sm:$0xff]
    %v165 = vld [vmem:[%s1 + $0x3c8] sm:$0xff]
    %v166 = vld [vmem:[%s1 + $0x3d0] sm:$0xff]
    %v167 = vld [vmem:[%s1 + $0x3d8] sm:$0xff]
    %v168 = vld [vmem:[%s1 + $0x3e0] sm:$0xff]
    %v169 = vld [vmem:[%s1 + $0x3e8] sm:$0xff]
    %v170 = vld [vmem:[%s1 + $0x3f0] sm:$0xff]
    %v171 = vld [vmem:[%s1 + $0x3f8] sm:$0xff]
    %v172 = vld [vmem:[%s1 + $0x400] sm:$0xff]
    %v173 = vld [vmem:[%s1 + $0x408] sm:$0xff]
    %v174 = vld [vmem:[%s1 + $0x410] sm:$0xff]
    %v175 = vld [vmem:[%s1 + $0x418] sm:$0xff]
    %v176 = vld [vmem:[%s1 + $0x420] sm:$0xff]
    %v177 = vld [vmem:[%s1 + $0x428] sm:$0xff]
    %v178 = vld [vmem:[%s1 + $0x430] sm:$0xff]
    %v179 = vld [vmem:[%s1 + $0x438] sm:$0xff]
    %v180 = vld [vmem:[%s1 + $0x440] sm:$0xff]
    %v181 = vld [vmem:[%s1 + $0x448] sm:$0xff]
    %v182 = vld [vmem:[%s1 + $0x450] sm:$0xff]
    %v183 = vld [vmem:[%s1 + $0x458] sm:$0xff]
    %v184 = vld [vmem:[%s1 + $0x460] sm:$0xff]
    %v185 = vld [vmem:[%s1 + $0x468] sm:$0xff]
    %v186 = vld [vmem:[%s1 + $0x470] sm:$0xff]
    %v187 = vld [vmem:[%s1 + $0x478] sm:$0xff]
    %v188 = vld [vmem:[%s1 + $0x480] sm:$0xff]
    %v189 = vld [vmem:[%s1 + $0x488] sm:$0xff]
    %v190 = vld [vmem:[%s1 + $0x490] sm:$0xff]
    %v191 = vld [vmem:[%s1 + $0x498] sm:$0xff]
    %v192 = vld [vmem:[%s1 + $0x4a0] sm:$0xff]
    %v193 = vld [vmem:[%s1 + $0x4a8] sm:$0xff]
    %v194 = vld [vmem:[%s1 + $0x4b0] sm:$0xff]
    %v195 = vld [vmem:[%s1 + $0x4b8] sm:$0xff]
    %v196 = vld [vmem:[%s1 + $0x4c0] sm:$0xff]
    %v197 = vld [vmem:[%s1 + $0x4c8] sm:$0xff]
    %v198 = vld [vmem:[%s1 + $0x4d0] sm:$0xff]
    %v199 = vld [vmem:[%s1 + $0x4d8] sm:$0xff]
    %v200 = vld [vmem:[%s1 + $0x4e0] sm:$0xff]
    %v201 = vld [vmem:[%s1 + $0x4e8] sm:$0xff]
    %v202 = vld [vmem:[%s1 + $0x4f0] sm:$0xff]
    %v203 = vld [vmem:[%s1 + $0x4f8] sm:$0xff]
    %v204 = vld [vmem:[%s1 + $0x500] sm:$0xff]
    %v205 = vld [vmem:[%s1 + $0x508] sm:$0xff]
    %v206 = vld [vmem:[%s1 + $0x510] sm:$0xff]
    %v207 = vld [vmem:[%s1 + $0x518] sm:$0xff]
    %v208 = vld [vmem:[%s1 + $0x520] sm:$0xff]
    %v209 = vld [vmem:[%s1 + $0x528] sm:$0xff]
    %v210 = vld [vmem:[%s1 + $0x530] sm:$0xff]
    %v211 = vld [vmem:[%s1 + $0x538] sm:$0xff]
    %v212 = vld [vmem:[%s1 + $0x540] sm:$0xff]
    %v213 = vld [vmem:[%s1 + $0x548] sm:$0xff]
    %v214 = vld [vmem:[%s1 + $0x550] sm:$0xff]
    %v215 = vld [vmem:[%s1 + $0x558] sm:$0xff]
    %v216 = vld [vmem:[%s1 + $0x560] sm:$0xff]
    %v217 = vld [vmem:[%s1 + $0x568] sm:$0xff]
    %v218 = vld [vmem:[%s1 + $0x570] sm:$0xff]
    %v219 = vld [vmem:[%s1 + $0x578] sm:$0xff]
    %v220 = vld [vmem:[%s1 + $0x580] sm:$0xff]
    %v221 = vld [vmem:[%s1 + $0x588] sm:$0xff]
    %v222 = vld [vmem:[%s1 + $0x590] sm:$0xff]
    %v223 = vld [vmem:[%s1 + $0x598] sm:$0xff]
    %v224 = vld [vmem:[%s1 + $0x5a0] sm:$0xff]
    %v225 = vld [vmem:[%s1 + $0x5a8] sm:$0xff]
    %v226 = vld [vmem:[%s1 + $0x5b0] sm:$0xff]
    %v227 = vld [vmem:[%s1 + $0x5b8] sm:$0xff]
    %v228 = vld [vmem:[%s1 + $0x5c0] sm:$0xff]
    %v229 = vld [vmem:[%s1 + $0x5c8] sm:$0xff]
    %v230 = vld [vmem:[%s1 + $0x5d0] sm:$0xff]
    %v231 = vld [vmem:[%s1 + $0x5d8] sm:$0xff]
    %v232 = vld [vmem:[%s1 + $0x5e0] sm:$0xff]
    %v233 = vld [vmem:[%s1 + $0x5e8] sm:$0xff]
    %v234 = vld [vmem:[%s1 + $0x5f0] sm:$0xff]
    %v235 = vld [vmem:[%s1 + $0x5f8] sm:$0xff]
    %v236 = vld [vmem:[%s1 + $0x600] sm:$0xff]
    %v237 = vld [vmem:[%s1 + $0x608] sm:$0xff]
    %v238 = vld [vmem:[%s1 + $0x610] sm:$0xff]
    %v239 = vld [vmem:[%s1 + $0x618] sm:$0xff]
    %v240 = vld [vmem:[%s1 + $0x620] sm:$0xff]
    %v241 = vld [vmem:[%s1 + $0x628] sm:$0xff]
    %v242 = vld [vmem:[%s1 + $0x630] sm:$0xff]
    %v243 = vld [vmem:[%s1 + $0x638] sm:$0xff]
    %v244 = vld [vmem:[%s1 + $0x640] sm:$0xff]
    %v245 = vld [vmem:[%s1 + $0x648] sm:$0xff]
    %v246 = vld [vmem:[%s1 + $0x650] sm:$0xff]
    %v247 = vld [vmem:[%s1 + $0x658] sm:$0xff]
    %v248 = vld [vmem:[%s1 + $0x660] sm:$0xff]
    %v249 = vld [vmem:[%s1 + $0x668] sm:$0xff]
    %v250 = vld [vmem:[%s1 + $0x670] sm:$0xff]
    %v251 = vld [vmem:[%s1 + $0x678] sm:$0xff]
    %v252 = vld [vmem:[%s1 + $0x680] sm:$0xff]
    %v253 = vld [vmem:[%s1 + $0x688] sm:$0xff]
    %v254 = vld [vmem:[%s1 + $0x690] sm:$0xff]
    %v255 = vld [vmem:[%s1 + $0x698] sm:$0xff]
    %v256 = vld [vmem:[%s1 + $0x6a0] sm:$0xff]
    %v257 = vld [vmem:[%s1 + $0x6a8] sm:$0xff]
    %v258 = vld [vmem:[%s1 + $0x6b0] sm:$0xff]
    %v259 = vld [vmem:[%s1 + $0x6b8] sm:$0xff]
    %v260 = vld [vmem:[%s1 + $0x6c0] sm:$0xff]
    %v261 = vld [vmem:[%s1 + $0x6c8] sm:$0xff]
    %v262 = vld [vmem:[%s1 + $0x6d0] sm:$0xff]
    %v263 = vld [vmem:[%s1 + $0x6d8] sm:$0xff]
    %v264 = vld [vmem:[%s1 + $0x6e0] sm:$0xff]
    %v265 = vld [vmem:[%s1 + $0x6e8] sm:$0xff]
    %v266 = vld [vmem:[%s1 + $0x6f0] sm:$0xff]
    %v267 = vld [vmem:[%s1 + $0x6f8] sm:$0xff]
    %v268 = vld [vmem:[%s1 + $0x700] sm:$0xff]
    %v269 = vld [vmem:[%s1 + $0x708] sm:$0xff]
    %v270 = vld [vmem:[%s1 + $0x710] sm:$0xff]
    %v271 = vld [vmem:[%s1 + $0x718] sm:$0xff]
    %v272 = vld [vmem:[%s1 + $0x720] sm:$0xff]
    %v273 = vld [vmem:[%s1 + $0x728] sm:$0xff]
    %v274 = vld [vmem:[%s1 + $0x730] sm:$0xff]
    %v275 = vld [vmem:[%s1 + $0x738] sm:$0xff]
    %v276 = vld [vmem:[%s1 + $0x740] sm:$0xff]
    %v277 = vld [vmem:[%s1 + $0x748] sm:$0xff]
    %v278 = vld [vmem:[%s1 + $0x750] sm:$0xff]
    %v279 = vld [vmem:[%s1 + $0x758] sm:$0xff]
    %v280 = vld [vmem:[%s1 + $0x760] sm:$0xff]
    %v281 = vld [vmem:[%s1 + $0x768] sm:$0xff]
    %v282 = vld [vmem:[%s1 + $0x770] sm:$0xff]
    %v283 = vld [vmem:[%s1 + $0x778] sm:$0xff]
    %v284 = vld [vmem:[%s1 + $0x780] sm:$0xff]
    %v285 = vld [vmem:[%s1 + $0x788] sm:$0xff]
    %v286 = vld [vmem:[%s1 + $0x790] sm:$0xff]
    %v287 = vld [vmem:[%s1 + $0x798] sm:$0xff]
    %v288 = vld [vmem:[%s1 + $0x7a0] sm:$0xff]
    %v289 = vld [vmem:[%s1 + $0x7a8] sm:$0xff]
    %v290 = vld [vmem:[%s1 + $0x7b0] sm:$0xff]
    %v291 = vld [vmem:[%s1 + $0x7b8] sm:$0xff]
    %v292 = vld [vmem:[%s1 + $0x7c0] sm:$0xff]
    %v293 = vld [vmem:[%s1 + $0x7c8] sm:$0xff]
    %v294 = vld [vmem:[%s1 + $0x7d0] sm:$0xff]
    %v295 = vld [vmem:[%s1 + $0x7d8] sm:$0xff]
    %v296 = vld [vmem:[%s1 + $0x7e0] sm:$0xff]
    %v297 = vld [vmem:[%s1 + $0x7e8] sm:$0xff]
    %v298 = vld [vmem:[%s1 + $0x7f0] sm:$0xff]
    %v299 = vld [vmem:[%s1 + $0x7f8] sm:$0xff]
    %v300 = vld [vmem:[%s1 + $0x800] sm:$0xff]
    %v301 = vld [vmem:[%s1 + $0x808] sm:$0xff]
    %v302 = vld [vmem:[%s1 + $0x810] sm:$0xff]
    %v303 = vld [vmem:[%s1 + $0x818] sm:$0xff]
    %v304 = vld [vmem:[%s1 + $0x820] sm:$0xff]
    %v305 = vld [vmem:[%s1 + $0x828] sm:$0xff]
    %v306 = vld [vmem:[%s1 + $0x830] sm:$0xff]
    %v307 = vld [vmem:[%s1 + $0x838] sm:$0xff]
    %v308 = vld [vmem:[%s1 + $0x840] sm:$0xff]
    %v309 = vld [vmem:[%s1 + $0x848] sm:$0xff]
    %v310 = vld [vmem:[%s1 + $0x850] sm:$0xff]
    %v311 = vld [vmem:[%s1 + $0x858] sm:$0xff]
    %v312 = vld [vmem:[%s1 + $0x860] sm:$0xff]
    %v313 = vld [vmem:[%s1 + $0x868] sm:$0xff]
    %v314 = vld [vmem:[%s1 + $0x870] sm:$0xff]
    %v315 = vld [vmem:[%s1 + $0x878] sm:$0xff]
    %v316 = vld [vmem:[%s1 + $0x880] sm:$0xff]
    %v317 = vld [vmem:[%s1 + $0x888] sm:$0xff]
    %v318 = vld [vmem:[%s1 + $0x890] sm:$0xff]
    %v319 = vld [vmem:[%s1 + $0x898] sm:$0xff]
    %v320 = vld [vmem:[%s1 + $0x8a0] sm:$0xff]
    %v321 = vld [vmem:[%s1 + $0x8a8] sm:$0xff]
    %v322 = vld [vmem:[%s1 + $0x8b0] sm:$0xff]
    %v323 = vld [vmem:[%s1 + $0x8b8] sm:$0xff]
    %v324 = vld [vmem:[%s1 + $0x8c0] sm:$0xff]
    %v325 = vld [vmem:[%s1 + $0x8c8] sm:$0xff]
    %v326 = vld [vmem:[%s1 + $0x8d0] sm:$0xff]
    %v327 = vld [vmem:[%s1 + $0x8d8] sm:$0xff]
    %v328 = vld [vmem:[%s1 + $0x8e0] sm:$0xff]
    %v329 = vld [vmem:[%s1 + $0x8e8] sm:$0xff]
    %v330 = vld [vmem:[%s1 + $0x8f0] sm:$0xff]
    %v331 = vld [vmem:[%s1 + $0x8f8] sm:$0xff]
    %v332 = vld [vmem:[%s2] sm:$0x3f]
    %v334 = vlaneseq
    %v335 = vshrl.u32 %v334, 7
    %v336 = vsub.s32 0, %v335
    %v337 = vrot.slane %v332, %v336
    %v338 = vlaneseq
    %v339 = vshrl.u32 %v338, 7
    %v340 = vsub.s32 1, %v339
    %v341 = vrot.slane %v332, %v340
    %v342 = vlaneseq
    %v343 = vshrl.u32 %v342, 7
    %v344 = vsub.s32 2, %v343
    %v345 = vrot.slane %v332, %v344
    %v346 = vlaneseq
    %v347 = vshrl.u32 %v346, 7
    %v348 = vsub.s32 3, %v347
    %v349 = vrot.slane %v332, %v348
    %v350 = vlaneseq
    %v351 = vshrl.u32 %v350, 7
    %v352 = vsub.s32 4, %v351
    %v353 = vrot.slane %v332, %v352
    %v354 = vlaneseq
    %v355 = vshrl.u32 %v354, 7
    %v356 = vsub.s32 5, %v355
    %v357 = vrot.slane %v332, %v356
    %v367 = vunpack.c.l.b16 %v41
    %v368 = vunpack.c.h.b16 %v41
    %v369 = vunpack.c.l.b16 %v42
    %v370 = vunpack.c.h.b16 %v42
    %v371 = vunpack.c.l.b16 %v43
    %v372 = vunpack.c.h.b16 %v43
    %v373 = vpack.c.b16 %v367, %v367
    %v374 = vpack.c.b16 %v368, %v368
    %v375 = vpack.c.b16 %v369, %v369
    %v376 = vpack.c.b16 %v370, %v370
    %v377 = vpack.c.b16 %v371, %v371
    %v378 = vpack.c.b16 %v372, %v372
    %v673 = vunpack.c.l.b16 %v44
    %v674 = vunpack.c.h.b16 %v44
    %v675 = vunpack.c.l.b16 %v45
    %v676 = vunpack.c.h.b16 %v45
    %v677 = vunpack.c.l.b16 %v46
    %v678 = vunpack.c.h.b16 %v46
    %v679 = vunpack.c.l.b16 %v47
    %v680 = vunpack.c.h.b16 %v47
    %v681 = vunpack.c.l.b16 %v48
    %v682 = vunpack.c.h.b16 %v48
    %v683 = vunpack.c.l.b16 %v49
    %v684 = vunpack.c.h.b16 %v49
    %v685 = vunpack.c.l.b16 %v50
    %v686 = vunpack.c.h.b16 %v50
    %v687 = vunpack.c.l.b16 %v51
    %v688 = vunpack.c.h.b16 %v51
    %v689 = vunpack.c.l.b16 %v52
    %v690 = vunpack.c.h.b16 %v52
    %v691 = vunpack.c.l.b16 %v53
    %v692 = vunpack.c.h.b16 %v53
    %v693 = vunpack.c.l.b16 %v54
    %v694 = vunpack.c.h.b16 %v54
    %v695 = vunpack.c.l.b16 %v55
    %v696 = vunpack.c.h.b16 %v55
    %v697 = vunpack.c.l.b16 %v56
    %v698 = vunpack.c.h.b16 %v56
    %v699 = vunpack.c.l.b16 %v57
    %v700 = vunpack.c.h.b16 %v57
    %v701 = vunpack.c.l.b16 %v58
    %v702 = vunpack.c.h.b16 %v58
    %v703 = vunpack.c.l.b16 %v59
    %v704 = vunpack.c.h.b16 %v59
    %v705 = vunpack.c.l.b16 %v60
    %v706 = vunpack.c.h.b16 %v60
    %v707 = vunpack.c.l.b16 %v61
    %v708 = vunpack.c.h.b16 %v61
    %v709 = vunpack.c.l.b16 %v62
    %v710 = vunpack.c.h.b16 %v62
    %v711 = vunpack.c.l.b16 %v63
    %v712 = vunpack.c.h.b16 %v63
    %v713 = vunpack.c.l.b16 %v64
    %v714 = vunpack.c.h.b16 %v64
    %v715 = vunpack.c.l.b16 %v65
    %v716 = vunpack.c.h.b16 %v65
    %v717 = vunpack.c.l.b16 %v66
    %v718 = vunpack.c.h.b16 %v66
    %v719 = vunpack.c.l.b16 %v67
    %v720 = vunpack.c.h.b16 %v67
    %v721 = vunpack.c.l.b16 %v68
    %v722 = vunpack.c.h.b16 %v68
    %v723 = vunpack.c.l.b16 %v69
    %v724 = vunpack.c.h.b16 %v69
    %v725 = vunpack.c.l.b16 %v70
    %v726 = vunpack.c.h.b16 %v70
    %v727 = vunpack.c.l.b16 %v71
    %v728 = vunpack.c.h.b16 %v71
    %v729 = vunpack.c.l.b16 %v72
    %v730 = vunpack.c.h.b16 %v72
    %v731 = vunpack.c.l.b16 %v73
    %v732 = vunpack.c.h.b16 %v73
    %v733 = vunpack.c.l.b16 %v74
    %v734 = vunpack.c.h.b16 %v74
    %v735 = vunpack.c.l.b16 %v75
    %v736 = vunpack.c.h.b16 %v75
    %v737 = vunpack.c.l.b16 %v76
    %v738 = vunpack.c.h.b16 %v76
    %v739 = vunpack.c.l.b16 %v77
    %v740 = vunpack.c.h.b16 %v77
    %v741 = vunpack.c.l.b16 %v78
    %v742 = vunpack.c.h.b16 %v78
    %v743 = vunpack.c.l.b16 %v79
    %v744 = vunpack.c.h.b16 %v79
    %v745 = vunpack.c.l.b16 %v80
    %v746 = vunpack.c.h.b16 %v80
    %v747 = vunpack.c.l.b16 %v81
    %v748 = vunpack.c.h.b16 %v81
    %v749 = vunpack.c.l.b16 %v82
    %v750 = vunpack.c.h.b16 %v82
    %v751 = vunpack.c.l.b16 %v83
    %v752 = vunpack.c.h.b16 %v83
    %v753 = vunpack.c.l.b16 %v84
    %v754 = vunpack.c.h.b16 %v84
    %v755 = vunpack.c.l.b16 %v85
    %v756 = vunpack.c.h.b16 %v85
    %v757 = vunpack.c.l.b16 %v86
    %v758 = vunpack.c.h.b16 %v86
    %v759 = vunpack.c.l.b16 %v87
    %v760 = vunpack.c.h.b16 %v87
    %v761 = vunpack.c.l.b16 %v88
    %v762 = vunpack.c.h.b16 %v88
    %v763 = vunpack.c.l.b16 %v89
    %v764 = vunpack.c.h.b16 %v89
    %v765 = vunpack.c.l.b16 %v90
    %v766 = vunpack.c.h.b16 %v90
    %v767 = vunpack.c.l.b16 %v91
    %v768 = vunpack.c.h.b16 %v91
    %v769 = vunpack.c.l.b16 %v92
    %v770 = vunpack.c.h.b16 %v92
    %v771 = vunpack.c.l.b16 %v93
    %v772 = vunpack.c.h.b16 %v93
    %v773 = vunpack.c.l.b16 %v94
    %v774 = vunpack.c.h.b16 %v94
    %v775 = vunpack.c.l.b16 %v95
    %v776 = vunpack.c.h.b16 %v95
    %v777 = vunpack.c.l.b16 %v96
    %v778 = vunpack.c.h.b16 %v96
    %v779 = vunpack.c.l.b16 %v97
    %v780 = vunpack.c.h.b16 %v97
    %v781 = vunpack.c.l.b16 %v98
    %v782 = vunpack.c.h.b16 %v98
    %v783 = vunpack.c.l.b16 %v99
    %v784 = vunpack.c.h.b16 %v99
    %v785 = vunpack.c.l.b16 %v100
    %v786 = vunpack.c.h.b16 %v100
    %v787 = vunpack.c.l.b16 %v101
    %v788 = vunpack.c.h.b16 %v101
    %v789 = vunpack.c.l.b16 %v102
    %v790 = vunpack.c.h.b16 %v102
    %v791 = vunpack.c.l.b16 %v103
    %v792 = vunpack.c.h.b16 %v103
    %v793 = vunpack.c.l.b16 %v104
    %v794 = vunpack.c.h.b16 %v104
    %v795 = vunpack.c.l.b16 %v105
    %v796 = vunpack.c.h.b16 %v105
    %v797 = vunpack.c.l.b16 %v106
    %v798 = vunpack.c.h.b16 %v106
    %v799 = vunpack.c.l.b16 %v107
    %v800 = vunpack.c.h.b16 %v107
    %v801 = vunpack.c.l.b16 %v108
    %v802 = vunpack.c.h.b16 %v108
    %v803 = vunpack.c.l.b16 %v109
    %v804 = vunpack.c.h.b16 %v109
    %v805 = vunpack.c.l.b16 %v110
    %v806 = vunpack.c.h.b16 %v110
    %v807 = vunpack.c.l.b16 %v111
    %v808 = vunpack.c.h.b16 %v111
    %v809 = vunpack.c.l.b16 %v112
    %v810 = vunpack.c.h.b16 %v112
    %v811 = vunpack.c.l.b16 %v113
    %v812 = vunpack.c.h.b16 %v113
    %v813 = vunpack.c.l.b16 %v114
    %v814 = vunpack.c.h.b16 %v114
    %v815 = vunpack.c.l.b16 %v115
    %v816 = vunpack.c.h.b16 %v115
    %v817 = vunpack.c.l.b16 %v116
    %v818 = vunpack.c.h.b16 %v116
    %v819 = vunpack.c.l.b16 %v117
    %v820 = vunpack.c.h.b16 %v117
    %v821 = vunpack.c.l.b16 %v118
    %v822 = vunpack.c.h.b16 %v118
    %v823 = vunpack.c.l.b16 %v119
    %v824 = vunpack.c.h.b16 %v119
    %v825 = vunpack.c.l.b16 %v120
    %v826 = vunpack.c.h.b16 %v120
    %v827 = vunpack.c.l.b16 %v121
    %v828 = vunpack.c.h.b16 %v121
    %v829 = vunpack.c.l.b16 %v122
    %v830 = vunpack.c.h.b16 %v122
    %v831 = vunpack.c.l.b16 %v123
    %v832 = vunpack.c.h.b16 %v123
    %v833 = vunpack.c.l.b16 %v124
    %v834 = vunpack.c.h.b16 %v124
    %v835 = vunpack.c.l.b16 %v125
    %v836 = vunpack.c.h.b16 %v125
    %v837 = vunpack.c.l.b16 %v126
    %v838 = vunpack.c.h.b16 %v126
    %v839 = vunpack.c.l.b16 %v127
    %v840 = vunpack.c.h.b16 %v127
    %v841 = vunpack.c.l.b16 %v128
    %v842 = vunpack.c.h.b16 %v128
    %v843 = vunpack.c.l.b16 %v129
    %v844 = vunpack.c.h.b16 %v129
    %v845 = vunpack.c.l.b16 %v130
    %v846 = vunpack.c.h.b16 %v130
    %v847 = vunpack.c.l.b16 %v131
    %v848 = vunpack.c.h.b16 %v131
    %v849 = vunpack.c.l.b16 %v132
    %v850 = vunpack.c.h.b16 %v132
    %v851 = vunpack.c.l.b16 %v133
    %v852 = vunpack.c.h.b16 %v133
    %v853 = vunpack.c.l.b16 %v134
    %v854 = vunpack.c.h.b16 %v134
    %v855 = vunpack.c.l.b16 %v135
    %v856 = vunpack.c.h.b16 %v135
    %v857 = vunpack.c.l.b16 %v136
    %v858 = vunpack.c.h.b16 %v136
    %v859 = vunpack.c.l.b16 %v137
    %v860 = vunpack.c.h.b16 %v137
    %v861 = vunpack.c.l.b16 %v138
    %v862 = vunpack.c.h.b16 %v138
    %v863 = vunpack.c.l.b16 %v139
    %v864 = vunpack.c.h.b16 %v139
    %v865 = vunpack.c.l.b16 %v140
    %v866 = vunpack.c.h.b16 %v140
    %v867 = vunpack.c.l.b16 %v141
    %v868 = vunpack.c.h.b16 %v141
    %v869 = vunpack.c.l.b16 %v142
    %v870 = vunpack.c.h.b16 %v142
    %v871 = vunpack.c.l.b16 %v143
    %v872 = vunpack.c.h.b16 %v143
    %v873 = vunpack.c.l.b16 %v144
    %v874 = vunpack.c.h.b16 %v144
    %v875 = vunpack.c.l.b16 %v145
    %v876 = vunpack.c.h.b16 %v145
    %v877 = vunpack.c.l.b16 %v146
    %v878 = vunpack.c.h.b16 %v146
    %v879 = vunpack.c.l.b16 %v147
    %v880 = vunpack.c.h.b16 %v147
    %v881 = vunpack.c.l.b16 %v148
    %v882 = vunpack.c.h.b16 %v148
    %v883 = vunpack.c.l.b16 %v149
    %v884 = vunpack.c.h.b16 %v149
    %v885 = vunpack.c.l.b16 %v150
    %v886 = vunpack.c.h.b16 %v150
    %v887 = vunpack.c.l.b16 %v151
    %v888 = vunpack.c.h.b16 %v151
    %v889 = vunpack.c.l.b16 %v152
    %v890 = vunpack.c.h.b16 %v152
    %v891 = vunpack.c.l.b16 %v153
    %v892 = vunpack.c.h.b16 %v153
    %v893 = vunpack.c.l.b16 %v154
    %v894 = vunpack.c.h.b16 %v154
    %v895 = vunpack.c.l.b16 %v155
    %v896 = vunpack.c.h.b16 %v155
    %v897 = vunpack.c.l.b16 %v156
    %v898 = vunpack.c.h.b16 %v156
    %v899 = vunpack.c.l.b16 %v157
    %v900 = vunpack.c.h.b16 %v157
    %v901 = vunpack.c.l.b16 %v158
    %v902 = vunpack.c.h.b16 %v158
    %v903 = vunpack.c.l.b16 %v159
    %v904 = vunpack.c.h.b16 %v159
    %v905 = vunpack.c.l.b16 %v160
    %v906 = vunpack.c.h.b16 %v160
    %v907 = vunpack.c.l.b16 %v161
    %v908 = vunpack.c.h.b16 %v161
    %v909 = vunpack.c.l.b16 %v162
    %v910 = vunpack.c.h.b16 %v162
    %v911 = vunpack.c.l.b16 %v163
    %v912 = vunpack.c.h.b16 %v163
    %v913 = vunpack.c.l.b16 %v164
    %v914 = vunpack.c.h.b16 %v164
    %v915 = vunpack.c.l.b16 %v165
    %v916 = vunpack.c.h.b16 %v165
    %v917 = vunpack.c.l.b16 %v166
    %v918 = vunpack.c.h.b16 %v166
    %v919 = vunpack.c.l.b16 %v167
    %v920 = vunpack.c.h.b16 %v167
    %v921 = vunpack.c.l.b16 %v168
    %v922 = vunpack.c.h.b16 %v168
    %v923 = vunpack.c.l.b16 %v169
    %v924 = vunpack.c.h.b16 %v169
    %v925 = vunpack.c.l.b16 %v170
    %v926 = vunpack.c.h.b16 %v170
    %v927 = vunpack.c.l.b16 %v171
    %v928 = vunpack.c.h.b16 %v171
    %v929 = vunpack.c.l.b16 %v172
    %v930 = vunpack.c.h.b16 %v172
    %v931 = vunpack.c.l.b16 %v173
    %v932 = vunpack.c.h.b16 %v173
    %v933 = vunpack.c.l.b16 %v174
    %v934 = vunpack.c.h.b16 %v174
    %v935 = vunpack.c.l.b16 %v175
    %v936 = vunpack.c.h.b16 %v175
    %v937 = vunpack.c.l.b16 %v176
    %v938 = vunpack.c.h.b16 %v176
    %v939 = vunpack.c.l.b16 %v177
    %v940 = vunpack.c.h.b16 %v177
    %v941 = vunpack.c.l.b16 %v178
    %v942 = vunpack.c.h.b16 %v178
    %v943 = vunpack.c.l.b16 %v179
    %v944 = vunpack.c.h.b16 %v179
    %v945 = vunpack.c.l.b16 %v180
    %v946 = vunpack.c.h.b16 %v180
    %v947 = vunpack.c.l.b16 %v181
    %v948 = vunpack.c.h.b16 %v181
    %v949 = vunpack.c.l.b16 %v182
    %v950 = vunpack.c.h.b16 %v182
    %v951 = vunpack.c.l.b16 %v183
    %v952 = vunpack.c.h.b16 %v183
    %v953 = vunpack.c.l.b16 %v184
    %v954 = vunpack.c.h.b16 %v184
    %v955 = vunpack.c.l.b16 %v185
    %v956 = vunpack.c.h.b16 %v185
    %v957 = vunpack.c.l.b16 %v186
    %v958 = vunpack.c.h.b16 %v186
    %v959 = vunpack.c.l.b16 %v187
    %v960 = vunpack.c.h.b16 %v187
    %v961 = vunpack.c.l.b16 %v188
    %v962 = vunpack.c.h.b16 %v188
    %v963 = vunpack.c.l.b16 %v189
    %v964 = vunpack.c.h.b16 %v189
    %v965 = vunpack.c.l.b16 %v190
    %v966 = vunpack.c.h.b16 %v190
    %v967 = vunpack.c.l.b16 %v191
    %v968 = vunpack.c.h.b16 %v191
    %v969 = vunpack.c.l.b16 %v192
    %v970 = vunpack.c.h.b16 %v192
    %v971 = vunpack.c.l.b16 %v193
    %v972 = vunpack.c.h.b16 %v193
    %v973 = vunpack.c.l.b16 %v194
    %v974 = vunpack.c.h.b16 %v194
    %v975 = vunpack.c.l.b16 %v195
    %v976 = vunpack.c.h.b16 %v195
    %v977 = vunpack.c.l.b16 %v196
    %v978 = vunpack.c.h.b16 %v196
    %v979 = vunpack.c.l.b16 %v197
    %v980 = vunpack.c.h.b16 %v197
    %v981 = vunpack.c.l.b16 %v198
    %v982 = vunpack.c.h.b16 %v198
    %v983 = vunpack.c.l.b16 %v199
    %v984 = vunpack.c.h.b16 %v199
    %v985 = vunpack.c.l.b16 %v200
    %v986 = vunpack.c.h.b16 %v200
    %v987 = vunpack.c.l.b16 %v201
    %v988 = vunpack.c.h.b16 %v201
    %v989 = vunpack.c.l.b16 %v202
    %v990 = vunpack.c.h.b16 %v202
    %v991 = vunpack.c.l.b16 %v203
    %v992 = vunpack.c.h.b16 %v203
    %v993 = vunpack.c.l.b16 %v204
    %v994 = vunpack.c.h.b16 %v204
    %v995 = vunpack.c.l.b16 %v205
    %v996 = vunpack.c.h.b16 %v205
    %v997 = vunpack.c.l.b16 %v206
    %v998 = vunpack.c.h.b16 %v206
    %v999 = vunpack.c.l.b16 %v207
    %v1000 = vunpack.c.h.b16 %v207
    %v1001 = vunpack.c.l.b16 %v208
    %v1002 = vunpack.c.h.b16 %v208
    %v1003 = vunpack.c.l.b16 %v209
    %v1004 = vunpack.c.h.b16 %v209
    %v1005 = vunpack.c.l.b16 %v210
    %v1006 = vunpack.c.h.b16 %v210
    %v1007 = vunpack.c.l.b16 %v211
    %v1008 = vunpack.c.h.b16 %v211
    %v1009 = vunpack.c.l.b16 %v212
    %v1010 = vunpack.c.h.b16 %v212
    %v1011 = vunpack.c.l.b16 %v213
    %v1012 = vunpack.c.h.b16 %v213
    %v1013 = vunpack.c.l.b16 %v214
    %v1014 = vunpack.c.h.b16 %v214
    %v1015 = vunpack.c.l.b16 %v215
    %v1016 = vunpack.c.h.b16 %v215
    %v1017 = vunpack.c.l.b16 %v216
    %v1018 = vunpack.c.h.b16 %v216
    %v1019 = vunpack.c.l.b16 %v217
    %v1020 = vunpack.c.h.b16 %v217
    %v1021 = vunpack.c.l.b16 %v218
    %v1022 = vunpack.c.h.b16 %v218
    %v1023 = vunpack.c.l.b16 %v219
    %v1024 = vunpack.c.h.b16 %v219
    %v1025 = vunpack.c.l.b16 %v220
    %v1026 = vunpack.c.h.b16 %v220
    %v1027 = vunpack.c.l.b16 %v221
    %v1028 = vunpack.c.h.b16 %v221
    %v1029 = vunpack.c.l.b16 %v222
    %v1030 = vunpack.c.h.b16 %v222
    %v1031 = vunpack.c.l.b16 %v223
    %v1032 = vunpack.c.h.b16 %v223
    %v1033 = vunpack.c.l.b16 %v224
    %v1034 = vunpack.c.h.b16 %v224
    %v1035 = vunpack.c.l.b16 %v225
    %v1036 = vunpack.c.h.b16 %v225
    %v1037 = vunpack.c.l.b16 %v226
    %v1038 = vunpack.c.h.b16 %v226
    %v1039 = vunpack.c.l.b16 %v227
    %v1040 = vunpack.c.h.b16 %v227
    %v1041 = vunpack.c.l.b16 %v228
    %v1042 = vunpack.c.h.b16 %v228
    %v1043 = vunpack.c.l.b16 %v229
    %v1044 = vunpack.c.h.b16 %v229
    %v1045 = vunpack.c.l.b16 %v230
    %v1046 = vunpack.c.h.b16 %v230
    %v1047 = vunpack.c.l.b16 %v231
    %v1048 = vunpack.c.h.b16 %v231
    %v1049 = vunpack.c.l.b16 %v232
    %v1050 = vunpack.c.h.b16 %v232
    %v1051 = vunpack.c.l.b16 %v233
    %v1052 = vunpack.c.h.b16 %v233
    %v1053 = vunpack.c.l.b16 %v234
    %v1054 = vunpack.c.h.b16 %v234
    %v1055 = vunpack.c.l.b16 %v235
    %v1056 = vunpack.c.h.b16 %v235
    %v1057 = vunpack.c.l.b16 %v236
    %v1058 = vunpack.c.h.b16 %v236
    %v1059 = vunpack.c.l.b16 %v237
    %v1060 = vunpack.c.h.b16 %v237
    %v1061 = vunpack.c.l.b16 %v238
    %v1062 = vunpack.c.h.b16 %v238
    %v1063 = vunpack.c.l.b16 %v239
    %v1064 = vunpack.c.h.b16 %v239
    %v1065 = vunpack.c.l.b16 %v240
    %v1066 = vunpack.c.h.b16 %v240
    %v1067 = vunpack.c.l.b16 %v241
    %v1068 = vunpack.c.h.b16 %v241
    %v1069 = vunpack.c.l.b16 %v242
    %v1070 = vunpack.c.h.b16 %v242
    %v1071 = vunpack.c.l.b16 %v243
    %v1072 = vunpack.c.h.b16 %v243
    %v1073 = vunpack.c.l.b16 %v244
    %v1074 = vunpack.c.h.b16 %v244
    %v1075 = vunpack.c.l.b16 %v245
    %v1076 = vunpack.c.h.b16 %v245
    %v1077 = vunpack.c.l.b16 %v246
    %v1078 = vunpack.c.h.b16 %v246
    %v1079 = vunpack.c.l.b16 %v247
    %v1080 = vunpack.c.h.b16 %v247
    %v1081 = vunpack.c.l.b16 %v248
    %v1082 = vunpack.c.h.b16 %v248
    %v1083 = vunpack.c.l.b16 %v249
    %v1084 = vunpack.c.h.b16 %v249
    %v1085 = vunpack.c.l.b16 %v250
    %v1086 = vunpack.c.h.b16 %v250
    %v1087 = vunpack.c.l.b16 %v251
    %v1088 = vunpack.c.h.b16 %v251
    %v1089 = vunpack.c.l.b16 %v252
    %v1090 = vunpack.c.h.b16 %v252
    %v1091 = vunpack.c.l.b16 %v253
    %v1092 = vunpack.c.h.b16 %v253
    %v1093 = vunpack.c.l.b16 %v254
    %v1094 = vunpack.c.h.b16 %v254
    %v1095 = vunpack.c.l.b16 %v255
    %v1096 = vunpack.c.h.b16 %v255
    %v1097 = vunpack.c.l.b16 %v256
    %v1098 = vunpack.c.h.b16 %v256
    %v1099 = vunpack.c.l.b16 %v257
    %v1100 = vunpack.c.h.b16 %v257
    %v1101 = vunpack.c.l.b16 %v258
    %v1102 = vunpack.c.h.b16 %v258
    %v1103 = vunpack.c.l.b16 %v259
    %v1104 = vunpack.c.h.b16 %v259
    %v1105 = vunpack.c.l.b16 %v260
    %v1106 = vunpack.c.h.b16 %v260
    %v1107 = vunpack.c.l.b16 %v261
    %v1108 = vunpack.c.h.b16 %v261
    %v1109 = vunpack.c.l.b16 %v262
    %v1110 = vunpack.c.h.b16 %v262
    %v1111 = vunpack.c.l.b16 %v263
    %v1112 = vunpack.c.h.b16 %v263
    %v1113 = vunpack.c.l.b16 %v264
    %v1114 = vunpack.c.h.b16 %v264
    %v1115 = vunpack.c.l.b16 %v265
    %v1116 = vunpack.c.h.b16 %v265
    %v1117 = vunpack.c.l.b16 %v266
    %v1118 = vunpack.c.h.b16 %v266
    %v1119 = vunpack.c.l.b16 %v267
    %v1120 = vunpack.c.h.b16 %v267
    %v1121 = vunpack.c.l.b16 %v268
    %v1122 = vunpack.c.h.b16 %v268
    %v1123 = vunpack.c.l.b16 %v269
    %v1124 = vunpack.c.h.b16 %v269
    %v1125 = vunpack.c.l.b16 %v270
    %v1126 = vunpack.c.h.b16 %v270
    %v1127 = vunpack.c.l.b16 %v271
    %v1128 = vunpack.c.h.b16 %v271
    %v1129 = vunpack.c.l.b16 %v272
    %v1130 = vunpack.c.h.b16 %v272
    %v1131 = vunpack.c.l.b16 %v273
    %v1132 = vunpack.c.h.b16 %v273
    %v1133 = vunpack.c.l.b16 %v274
    %v1134 = vunpack.c.h.b16 %v274
    %v1135 = vunpack.c.l.b16 %v275
    %v1136 = vunpack.c.h.b16 %v275
    %v1137 = vunpack.c.l.b16 %v276
    %v1138 = vunpack.c.h.b16 %v276
    %v1139 = vunpack.c.l.b16 %v277
    %v1140 = vunpack.c.h.b16 %v277
    %v1141 = vunpack.c.l.b16 %v278
    %v1142 = vunpack.c.h.b16 %v278
    %v1143 = vunpack.c.l.b16 %v279
    %v1144 = vunpack.c.h.b16 %v279
    %v1145 = vunpack.c.l.b16 %v280
    %v1146 = vunpack.c.h.b16 %v280
    %v1147 = vunpack.c.l.b16 %v281
    %v1148 = vunpack.c.h.b16 %v281
    %v1149 = vunpack.c.l.b16 %v282
    %v1150 = vunpack.c.h.b16 %v282
    %v1151 = vunpack.c.l.b16 %v283
    %v1152 = vunpack.c.h.b16 %v283
    %v1153 = vunpack.c.l.b16 %v284
    %v1154 = vunpack.c.h.b16 %v284
    %v1155 = vunpack.c.l.b16 %v285
    %v1156 = vunpack.c.h.b16 %v285
    %v1157 = vunpack.c.l.b16 %v286
    %v1158 = vunpack.c.h.b16 %v286
    %v1159 = vunpack.c.l.b16 %v287
    %v1160 = vunpack.c.h.b16 %v287
    %v1161 = vunpack.c.l.b16 %v288
    %v1162 = vunpack.c.h.b16 %v288
    %v1163 = vunpack.c.l.b16 %v289
    %v1164 = vunpack.c.h.b16 %v289
    %v1165 = vunpack.c.l.b16 %v290
    %v1166 = vunpack.c.h.b16 %v290
    %v1167 = vunpack.c.l.b16 %v291
    %v1168 = vunpack.c.h.b16 %v291
    %v1169 = vunpack.c.l.b16 %v292
    %v1170 = vunpack.c.h.b16 %v292
    %v1171 = vunpack.c.l.b16 %v293
    %v1172 = vunpack.c.h.b16 %v293
    %v1173 = vunpack.c.l.b16 %v294
    %v1174 = vunpack.c.h.b16 %v294
    %v1175 = vunpack.c.l.b16 %v295
    %v1176 = vunpack.c.h.b16 %v295
    %v1177 = vunpack.c.l.b16 %v296
    %v1178 = vunpack.c.h.b16 %v296
    %v1179 = vunpack.c.l.b16 %v297
    %v1180 = vunpack.c.h.b16 %v297
    %v1181 = vunpack.c.l.b16 %v298
    %v1182 = vunpack.c.h.b16 %v298
    %v1183 = vunpack.c.l.b16 %v299
    %v1184 = vunpack.c.h.b16 %v299
    %v1185 = vunpack.c.l.b16 %v300
    %v1186 = vunpack.c.h.b16 %v300
    %v1187 = vunpack.c.l.b16 %v301
    %v1188 = vunpack.c.h.b16 %v301
    %v1189 = vunpack.c.l.b16 %v302
    %v1190 = vunpack.c.h.b16 %v302
    %v1191 = vunpack.c.l.b16 %v303
    %v1192 = vunpack.c.h.b16 %v303
    %v1193 = vunpack.c.l.b16 %v304
    %v1194 = vunpack.c.h.b16 %v304
    %v1195 = vunpack.c.l.b16 %v305
    %v1196 = vunpack.c.h.b16 %v305
    %v1197 = vunpack.c.l.b16 %v306
    %v1198 = vunpack.c.h.b16 %v306
    %v1199 = vunpack.c.l.b16 %v307
    %v1200 = vunpack.c.h.b16 %v307
    %v1201 = vunpack.c.l.b16 %v308
    %v1202 = vunpack.c.h.b16 %v308
    %v1203 = vunpack.c.l.b16 %v309
    %v1204 = vunpack.c.h.b16 %v309
    %v1205 = vunpack.c.l.b16 %v310
    %v1206 = vunpack.c.h.b16 %v310
    %v1207 = vunpack.c.l.b16 %v311
    %v1208 = vunpack.c.h.b16 %v311
    %v1209 = vunpack.c.l.b16 %v312
    %v1210 = vunpack.c.h.b16 %v312
    %v1211 = vunpack.c.l.b16 %v313
    %v1212 = vunpack.c.h.b16 %v313
    %v1213 = vunpack.c.l.b16 %v314
    %v1214 = vunpack.c.h.b16 %v314
    %v1215 = vunpack.c.l.b16 %v315
    %v1216 = vunpack.c.h.b16 %v315
    %v1217 = vunpack.c.l.b16 %v316
    %v1218 = vunpack.c.h.b16 %v316
    %v1219 = vunpack.c.l.b16 %v317
    %v1220 = vunpack.c.h.b16 %v317
    %v1221 = vunpack.c.l.b16 %v318
    %v1222 = vunpack.c.h.b16 %v318
    %v1223 = vunpack.c.l.b16 %v319
    %v1224 = vunpack.c.h.b16 %v319
    %v1225 = vunpack.c.l.b16 %v320
    %v1226 = vunpack.c.h.b16 %v320
    %v1227 = vunpack.c.l.b16 %v321
    %v1228 = vunpack.c.h.b16 %v321
    %v1229 = vunpack.c.l.b16 %v322
    %v1230 = vunpack.c.h.b16 %v322
    %v1231 = vunpack.c.l.b16 %v323
    %v1232 = vunpack.c.h.b16 %v323
    %v1233 = vunpack.c.l.b16 %v324
    %v1234 = vunpack.c.h.b16 %v324
    %v1235 = vunpack.c.l.b16 %v325
    %v1236 = vunpack.c.h.b16 %v325
    %v1237 = vunpack.c.l.b16 %v326
    %v1238 = vunpack.c.h.b16 %v326
    %v1239 = vunpack.c.l.b16 %v327
    %v1240 = vunpack.c.h.b16 %v327
    %v1241 = vunpack.c.l.b16 %v328
    %v1242 = vunpack.c.h.b16 %v328
    %v1243 = vunpack.c.l.b16 %v329
    %v1244 = vunpack.c.h.b16 %v329
    %v1245 = vunpack.c.l.b16 %v330
    %v1246 = vunpack.c.h.b16 %v330
    %v1247 = vunpack.c.l.b16 %v331
    %v1248 = vunpack.c.h.b16 %v331
    %v1249 = vpack.c.b16 %v679, %v673
    %v1250 = vpack.c.b16 %v680, %v674
    %v1251 = vpack.c.b16 %v681, %v675
    %v1252 = vpack.c.b16 %v682, %v676
    %v1253 = vpack.c.b16 %v683, %v677
    %v1254 = vpack.c.b16 %v684, %v678
    %v1255 = vpack.c.b16 %v691, %v685
    %v1256 = vpack.c.b16 %v692, %v686
    %v1257 = vpack.c.b16 %v693, %v687
    %v1258 = vpack.c.b16 %v694, %v688
    %v1259 = vpack.c.b16 %v695, %v689
    %v1260 = vpack.c.b16 %v696, %v690
    %v1261 = vpack.c.b16 %v703, %v697
    %v1262 = vpack.c.b16 %v704, %v698
    %v1263 = vpack.c.b16 %v705, %v699
    %v1264 = vpack.c.b16 %v706, %v700
    %v1265 = vpack.c.b16 %v707, %v701
    %v1266 = vpack.c.b16 %v708, %v702
    %v1267 = vpack.c.b16 %v715, %v709
    %v1268 = vpack.c.b16 %v716, %v710
    %v1269 = vpack.c.b16 %v717, %v711
    %v1270 = vpack.c.b16 %v718, %v712
    %v1271 = vpack.c.b16 %v719, %v713
    %v1272 = vpack.c.b16 %v720, %v714
    %v1273 = vpack.c.b16 %v727, %v721
    %v1274 = vpack.c.b16 %v728, %v722
    %v1275 = vpack.c.b16 %v729, %v723
    %v1276 = vpack.c.b16 %v730, %v724
    %v1277 = vpack.c.b16 %v731, %v725
    %v1278 = vpack.c.b16 %v732, %v726
    %v1279 = vpack.c.b16 %v739, %v733
    %v1280 = vpack.c.b16 %v740, %v734
    %v1281 = vpack.c.b16 %v741, %v735
    %v1282 = vpack.c.b16 %v742, %v736
    %v1283 = vpack.c.b16 %v743, %v737
    %v1284 = vpack.c.b16 %v744, %v738
    %v1285 = vpack.c.b16 %v751, %v745
    %v1286 = vpack.c.b16 %v752, %v746
    %v1287 = vpack.c.b16 %v753, %v747
    %v1288 = vpack.c.b16 %v754, %v748
    %v1289 = vpack.c.b16 %v755, %v749
    %v1290 = vpack.c.b16 %v756, %v750
    %v1291 = vpack.c.b16 %v763, %v757
    %v1292 = vpack.c.b16 %v764, %v758
    %v1293 = vpack.c.b16 %v765, %v759
    %v1294 = vpack.c.b16 %v766, %v760
    %v1295 = vpack.c.b16 %v767, %v761
    %v1296 = vpack.c.b16 %v768, %v762
    %v1297 = vpack.c.b16 %v775, %v769
    %v1298 = vpack.c.b16 %v776, %v770
    %v1299 = vpack.c.b16 %v777, %v771
    %v1300 = vpack.c.b16 %v778, %v772
    %v1301 = vpack.c.b16 %v779, %v773
    %v1302 = vpack.c.b16 %v780, %v774
    %v1303 = vpack.c.b16 %v787, %v781
    %v1304 = vpack.c.b16 %v788, %v782
    %v1305 = vpack.c.b16 %v789, %v783
    %v1306 = vpack.c.b16 %v790, %v784
    %v1307 = vpack.c.b16 %v791, %v785
    %v1308 = vpack.c.b16 %v792, %v786
    %v1309 = vpack.c.b16 %v799, %v793
    %v1310 = vpack.c.b16 %v800, %v794
    %v1311 = vpack.c.b16 %v801, %v795
    %v1312 = vpack.c.b16 %v802, %v796
    %v1313 = vpack.c.b16 %v803, %v797
    %v1314 = vpack.c.b16 %v804, %v798
    %v1315 = vpack.c.b16 %v811, %v805
    %v1316 = vpack.c.b16 %v812, %v806
    %v1317 = vpack.c.b16 %v813, %v807
    %v1318 = vpack.c.b16 %v814, %v808
    %v1319 = vpack.c.b16 %v815, %v809
    %v1320 = vpack.c.b16 %v816, %v810
    %v1321 = vpack.c.b16 %v823, %v817
    %v1322 = vpack.c.b16 %v824, %v818
    %v1323 = vpack.c.b16 %v825, %v819
    %v1324 = vpack.c.b16 %v826, %v820
    %v1325 = vpack.c.b16 %v827, %v821
    %v1326 = vpack.c.b16 %v828, %v822
    %v1327 = vpack.c.b16 %v835, %v829
    %v1328 = vpack.c.b16 %v836, %v830
    %v1329 = vpack.c.b16 %v837, %v831
    %v1330 = vpack.c.b16 %v838, %v832
    %v1331 = vpack.c.b16 %v839, %v833
    %v1332 = vpack.c.b16 %v840, %v834
    %v1333 = vpack.c.b16 %v847, %v841
    %v1334 = vpack.c.b16 %v848, %v842
    %v1335 = vpack.c.b16 %v849, %v843
    %v1336 = vpack.c.b16 %v850, %v844
    %v1337 = vpack.c.b16 %v851, %v845
    %v1338 = vpack.c.b16 %v852, %v846
    %v1339 = vpack.c.b16 %v859, %v853
    %v1340 = vpack.c.b16 %v860, %v854
    %v1341 = vpack.c.b16 %v861, %v855
    %v1342 = vpack.c.b16 %v862, %v856
    %v1343 = vpack.c.b16 %v863, %v857
    %v1344 = vpack.c.b16 %v864, %v858
    %v1345 = vpack.c.b16 %v871, %v865
    %v1346 = vpack.c.b16 %v872, %v866
    %v1347 = vpack.c.b16 %v873, %v867
    %v1348 = vpack.c.b16 %v874, %v868
    %v1349 = vpack.c.b16 %v875, %v869
    %v1350 = vpack.c.b16 %v876, %v870
    %v1351 = vpack.c.b16 %v883, %v877
    %v1352 = vpack.c.b16 %v884, %v878
    %v1353 = vpack.c.b16 %v885, %v879
    %v1354 = vpack.c.b16 %v886, %v880
    %v1355 = vpack.c.b16 %v887, %v881
    %v1356 = vpack.c.b16 %v888, %v882
    %v1357 = vpack.c.b16 %v895, %v889
    %v1358 = vpack.c.b16 %v896, %v890
    %v1359 = vpack.c.b16 %v897, %v891
    %v1360 = vpack.c.b16 %v898, %v892
    %v1361 = vpack.c.b16 %v899, %v893
    %v1362 = vpack.c.b16 %v900, %v894
    %v1363 = vpack.c.b16 %v907, %v901
    %v1364 = vpack.c.b16 %v908, %v902
    %v1365 = vpack.c.b16 %v909, %v903
    %v1366 = vpack.c.b16 %v910, %v904
    %v1367 = vpack.c.b16 %v911, %v905
    %v1368 = vpack.c.b16 %v912, %v906
    %v1369 = vpack.c.b16 %v919, %v913
    %v1370 = vpack.c.b16 %v920, %v914
    %v1371 = vpack.c.b16 %v921, %v915
    %v1372 = vpack.c.b16 %v922, %v916
    %v1373 = vpack.c.b16 %v923, %v917
    %v1374 = vpack.c.b16 %v924, %v918
    %v1375 = vpack.c.b16 %v931, %v925
    %v1376 = vpack.c.b16 %v932, %v926
    %v1377 = vpack.c.b16 %v933, %v927
    %v1378 = vpack.c.b16 %v934, %v928
    %v1379 = vpack.c.b16 %v935, %v929
    %v1380 = vpack.c.b16 %v936, %v930
    %v1381 = vpack.c.b16 %v943, %v937
    %v1382 = vpack.c.b16 %v944, %v938
    %v1383 = vpack.c.b16 %v945, %v939
    %v1384 = vpack.c.b16 %v946, %v940
    %v1385 = vpack.c.b16 %v947, %v941
    %v1386 = vpack.c.b16 %v948, %v942
    %v1387 = vpack.c.b16 %v955, %v949
    %v1388 = vpack.c.b16 %v956, %v950
    %v1389 = vpack.c.b16 %v957, %v951
    %v1390 = vpack.c.b16 %v958, %v952
    %v1391 = vpack.c.b16 %v959, %v953
    %v1392 = vpack.c.b16 %v960, %v954
    %v1393 = vpack.c.b16 %v967, %v961
    %v1394 = vpack.c.b16 %v968, %v962
    %v1395 = vpack.c.b16 %v969, %v963
    %v1396 = vpack.c.b16 %v970, %v964
    %v1397 = vpack.c.b16 %v971, %v965
    %v1398 = vpack.c.b16 %v972, %v966
    %v1399 = vpack.c.b16 %v979, %v973
    %v1400 = vpack.c.b16 %v980, %v974
    %v1401 = vpack.c.b16 %v981, %v975
    %v1402 = vpack.c.b16 %v982, %v976
    %v1403 = vpack.c.b16 %v983, %v977
    %v1404 = vpack.c.b16 %v984, %v978
    %v1405 = vpack.c.b16 %v991, %v985
    %v1406 = vpack.c.b16 %v992, %v986
    %v1407 = vpack.c.b16 %v993, %v987
    %v1408 = vpack.c.b16 %v994, %v988
    %v1409 = vpack.c.b16 %v995, %v989
    %v1410 = vpack.c.b16 %v996, %v990
    %v1411 = vpack.c.b16 %v1003, %v997
    %v1412 = vpack.c.b16 %v1004, %v998
    %v1413 = vpack.c.b16 %v1005, %v999
    %v1414 = vpack.c.b16 %v1006, %v1000
    %v1415 = vpack.c.b16 %v1007, %v1001
    %v1416 = vpack.c.b16 %v1008, %v1002
    %v1417 = vpack.c.b16 %v1015, %v1009
    %v1418 = vpack.c.b16 %v1016, %v1010
    %v1419 = vpack.c.b16 %v1017, %v1011
    %v1420 = vpack.c.b16 %v1018, %v1012
    %v1421 = vpack.c.b16 %v1019, %v1013
    %v1422 = vpack.c.b16 %v1020, %v1014
    %v1423 = vpack.c.b16 %v1027, %v1021
    %v1424 = vpack.c.b16 %v1028, %v1022
    %v1425 = vpack.c.b16 %v1029, %v1023
    %v1426 = vpack.c.b16 %v1030, %v1024
    %v1427 = vpack.c.b16 %v1031, %v1025
    %v1428 = vpack.c.b16 %v1032, %v1026
    %v1429 = vpack.c.b16 %v1039, %v1033
    %v1430 = vpack.c.b16 %v1040, %v1034
    %v1431 = vpack.c.b16 %v1041, %v1035
    %v1432 = vpack.c.b16 %v1042, %v1036
    %v1433 = vpack.c.b16 %v1043, %v1037
    %v1434 = vpack.c.b16 %v1044, %v1038
    %v1435 = vpack.c.b16 %v1051, %v1045
    %v1436 = vpack.c.b16 %v1052, %v1046
    %v1437 = vpack.c.b16 %v1053, %v1047
    %v1438 = vpack.c.b16 %v1054, %v1048
    %v1439 = vpack.c.b16 %v1055, %v1049
    %v1440 = vpack.c.b16 %v1056, %v1050
    %v1441 = vpack.c.b16 %v1063, %v1057
    %v1442 = vpack.c.b16 %v1064, %v1058
    %v1443 = vpack.c.b16 %v1065, %v1059
    %v1444 = vpack.c.b16 %v1066, %v1060
    %v1445 = vpack.c.b16 %v1067, %v1061
    %v1446 = vpack.c.b16 %v1068, %v1062
    %v1447 = vpack.c.b16 %v1075, %v1069
    %v1448 = vpack.c.b16 %v1076, %v1070
    %v1449 = vpack.c.b16 %v1077, %v1071
    %v1450 = vpack.c.b16 %v1078, %v1072
    %v1451 = vpack.c.b16 %v1079, %v1073
    %v1452 = vpack.c.b16 %v1080, %v1074
    %v1453 = vpack.c.b16 %v1087, %v1081
    %v1454 = vpack.c.b16 %v1088, %v1082
    %v1455 = vpack.c.b16 %v1089, %v1083
    %v1456 = vpack.c.b16 %v1090, %v1084
    %v1457 = vpack.c.b16 %v1091, %v1085
    %v1458 = vpack.c.b16 %v1092, %v1086
    %v1459 = vpack.c.b16 %v1099, %v1093
    %v1460 = vpack.c.b16 %v1100, %v1094
    %v1461 = vpack.c.b16 %v1101, %v1095
    %v1462 = vpack.c.b16 %v1102, %v1096
    %v1463 = vpack.c.b16 %v1103, %v1097
    %v1464 = vpack.c.b16 %v1104, %v1098
    %v1465 = vpack.c.b16 %v1111, %v1105
    %v1466 = vpack.c.b16 %v1112, %v1106
    %v1467 = vpack.c.b16 %v1113, %v1107
    %v1468 = vpack.c.b16 %v1114, %v1108
    %v1469 = vpack.c.b16 %v1115, %v1109
    %v1470 = vpack.c.b16 %v1116, %v1110
    %v1471 = vpack.c.b16 %v1123, %v1117
    %v1472 = vpack.c.b16 %v1124, %v1118
    %v1473 = vpack.c.b16 %v1125, %v1119
    %v1474 = vpack.c.b16 %v1126, %v1120
    %v1475 = vpack.c.b16 %v1127, %v1121
    %v1476 = vpack.c.b16 %v1128, %v1122
    %v1477 = vpack.c.b16 %v1135, %v1129
    %v1478 = vpack.c.b16 %v1136, %v1130
    %v1479 = vpack.c.b16 %v1137, %v1131
    %v1480 = vpack.c.b16 %v1138, %v1132
    %v1481 = vpack.c.b16 %v1139, %v1133
    %v1482 = vpack.c.b16 %v1140, %v1134
    %v1483 = vpack.c.b16 %v1147, %v1141
    %v1484 = vpack.c.b16 %v1148, %v1142
    %v1485 = vpack.c.b16 %v1149, %v1143
    %v1486 = vpack.c.b16 %v1150, %v1144
    %v1487 = vpack.c.b16 %v1151, %v1145
    %v1488 = vpack.c.b16 %v1152, %v1146
    %v1489 = vpack.c.b16 %v1159, %v1153
    %v1490 = vpack.c.b16 %v1160, %v1154
    %v1491 = vpack.c.b16 %v1161, %v1155
    %v1492 = vpack.c.b16 %v1162, %v1156
    %v1493 = vpack.c.b16 %v1163, %v1157
    %v1494 = vpack.c.b16 %v1164, %v1158
    %v1495 = vpack.c.b16 %v1171, %v1165
    %v1496 = vpack.c.b16 %v1172, %v1166
    %v1497 = vpack.c.b16 %v1173, %v1167
    %v1498 = vpack.c.b16 %v1174, %v1168
    %v1499 = vpack.c.b16 %v1175, %v1169
    %v1500 = vpack.c.b16 %v1176, %v1170
    %v1501 = vpack.c.b16 %v1183, %v1177
    %v1502 = vpack.c.b16 %v1184, %v1178
    %v1503 = vpack.c.b16 %v1185, %v1179
    %v1504 = vpack.c.b16 %v1186, %v1180
    %v1505 = vpack.c.b16 %v1187, %v1181
    %v1506 = vpack.c.b16 %v1188, %v1182
    %v1507 = vpack.c.b16 %v1195, %v1189
    %v1508 = vpack.c.b16 %v1196, %v1190
    %v1509 = vpack.c.b16 %v1197, %v1191
    %v1510 = vpack.c.b16 %v1198, %v1192
    %v1511 = vpack.c.b16 %v1199, %v1193
    %v1512 = vpack.c.b16 %v1200, %v1194
    %v1513 = vpack.c.b16 %v1207, %v1201
    %v1514 = vpack.c.b16 %v1208, %v1202
    %v1515 = vpack.c.b16 %v1209, %v1203
    %v1516 = vpack.c.b16 %v1210, %v1204
    %v1517 = vpack.c.b16 %v1211, %v1205
    %v1518 = vpack.c.b16 %v1212, %v1206
    %v1519 = vpack.c.b16 %v1219, %v1213
    %v1520 = vpack.c.b16 %v1220, %v1214
    %v1521 = vpack.c.b16 %v1221, %v1215
    %v1522 = vpack.c.b16 %v1222, %v1216
    %v1523 = vpack.c.b16 %v1223, %v1217
    %v1524 = vpack.c.b16 %v1224, %v1218
    %v1525 = vpack.c.b16 %v1231, %v1225
    %v1526 = vpack.c.b16 %v1232, %v1226
    %v1527 = vpack.c.b16 %v1233, %v1227
    %v1528 = vpack.c.b16 %v1234, %v1228
    %v1529 = vpack.c.b16 %v1235, %v1229
    %v1530 = vpack.c.b16 %v1236, %v1230
    %v1531 = vpack.c.b16 %v1243, %v1237
    %v1532 = vpack.c.b16 %v1244, %v1238
    %v1533 = vpack.c.b16 %v1245, %v1239
    %v1534 = vpack.c.b16 %v1246, %v1240
    %v1535 = vpack.c.b16 %v1247, %v1241
    %v1536 = vpack.c.b16 %v1248, %v1242
    %1825 = vmatprep.subr.bf16.mxu0 %v1250
    %1826 = vmatpush1.bf16.msra.mxu0 %v1249
    %1827 = vmatprep.subr.bf16.mxu0 %v1256
    %1828 = vmatpush1.bf16.msra.mxu0 %v1255
    %1829 = vmatprep.subr.bf16.mxu0 %v1262
    %1830 = vmatpush1.bf16.msra.mxu0 %v1261
    %1831 = vmatprep.subr.bf16.mxu0 %v1268
    %1832 = vmatpush1.bf16.msra.mxu0 %v1267
    %1833 = vmatprep.subr.bf16.mxu0 %v1274
    %1834 = vmatpush1.bf16.msra.mxu0 %v1273
    %1835 = vmatprep.subr.bf16.mxu0 %v1280
    %1836 = vmatpush1.bf16.msra.mxu0 %v1279
    %1837 = vmatprep.subr.bf16.mxu0 %v1286
    %1838 = vmatpush1.bf16.msra.mxu0 %v1285
    %1839 = vmatprep.subr.bf16.mxu0 %v1292
    %1840 = vmatpush1.bf16.msra.mxu0 %v1291
    %1841 = vmatprep.subr.bf16.mxu0 %v1298
    %1842 = vmatpush1.bf16.msra.mxu0 %v1297
    %1843 = vmatprep.subr.bf16.mxu0 %v1304
    %1844 = vmatpush1.bf16.msra.mxu0 %v1303
    %1845 = vmatprep.subr.bf16.mxu0 %v1310
    %1846 = vmatpush1.bf16.msra.mxu0 %v1309
    %1847 = vmatprep.subr.bf16.mxu0 %v1316
    %1848 = vmatpush1.bf16.msra.mxu0 %v1315
    %1849 = vmatprep.subr.bf16.mxu0 %v1322
    %1850 = vmatpush1.bf16.msra.mxu0 %v1321
    %1851 = vmatprep.subr.bf16.mxu0 %v1328
    %1852 = vmatpush1.bf16.msra.mxu0 %v1327
    %1853 = vmatprep.subr.bf16.mxu0 %v1334
    %1854 = vmatpush1.bf16.msra.mxu0 %v1333
    %1855 = vmatprep.subr.bf16.mxu0 %v1340
    %1856 = vmatpush1.bf16.msra.mxu0 %v1339
    %1857 = vmatprep.mubr.bf16.mxu0 %v374
    %1858 = vmatmul.mubr.bf16.gmra.mrb[0].mxu0 %v373
    %v1859 = vpop.f32.mrb[0].mxu0
    %v1860 = vadd.f32 %v337, %v1859
    %v1861 = vpop.f32.mrb[0].mxu0
    %v1862 = vadd.f32 %v341, %v1861
    %v1863 = vpop.f32.mrb[0].mxu0
    %v1864 = vpop.f32.mrb[0].mxu0
    %1865 = vdwg.mxu0
    %1866 = vmatprep.subr.bf16.mxu0 %v1346
    %1867 = vmatpush1.bf16.msra.mxu0 %v1345
    %1868 = vmatprep.subr.bf16.mxu0 %v1352
    %1869 = vmatpush1.bf16.msra.mxu0 %v1351
    %1870 = vmatprep.subr.bf16.mxu0 %v1358
    %1871 = vmatpush1.bf16.msra.mxu0 %v1357
    %1872 = vmatprep.subr.bf16.mxu0 %v1364
    %1873 = vmatpush1.bf16.msra.mxu0 %v1363
    %1874 = vmatprep.subr.bf16.mxu0 %v1370
    %1875 = vmatpush1.bf16.msra.mxu0 %v1369
    %1876 = vmatprep.subr.bf16.mxu0 %v1376
    %1877 = vmatpush1.bf16.msra.mxu0 %v1375
    %1878 = vmatprep.subr.bf16.mxu0 %v1382
    %1879 = vmatpush1.bf16.msra.mxu0 %v1381
    %1880 = vmatprep.subr.bf16.mxu0 %v1388
    %1881 = vmatpush1.bf16.msra.mxu0 %v1387
    %1882 = vmatprep.subr.bf16.mxu0 %v1394
    %1883 = vmatpush1.bf16.msra.mxu0 %v1393
    %1884 = vmatprep.subr.bf16.mxu0 %v1400
    %1885 = vmatpush1.bf16.msra.mxu0 %v1399
    %1886 = vmatprep.subr.bf16.mxu0 %v1406
    %1887 = vmatpush1.bf16.msra.mxu0 %v1405
    %1888 = vmatprep.subr.bf16.mxu0 %v1412
    %1889 = vmatpush1.bf16.msra.mxu0 %v1411
    %1890 = vmatprep.subr.bf16.mxu0 %v1418
    %1891 = vmatpush1.bf16.msra.mxu0 %v1417
    %1892 = vmatprep.subr.bf16.mxu0 %v1424
    %1893 = vmatpush1.bf16.msra.mxu0 %v1423
    %1894 = vmatprep.subr.bf16.mxu0 %v1430
    %1895 = vmatpush1.bf16.msra.mxu0 %v1429
    %1896 = vmatprep.subr.bf16.mxu0 %v1436
    %1897 = vmatpush1.bf16.msra.mxu0 %v1435
    %1898 = vmatprep.mubr.bf16.mxu0 %v376
    %1899 = vmatmul.mubr.bf16.gmra.mrb[0].mxu0 %v375
    %v1900 = vpop.f32.mrb[0].mxu0
    %v1901 = vadd.f32 %v1860, %v1900
    %v1902 = vpop.f32.mrb[0].mxu0
    %v1903 = vadd.f32 %v1862, %v1902
    %v1904 = vpop.f32.mrb[0].mxu0
    %v1905 = vpop.f32.mrb[0].mxu0
    %1906 = vdwg.mxu0
    %1907 = vmatprep.subr.bf16.mxu0 %v1442
    %1908 = vmatpush1.bf16.msra.mxu0 %v1441
    %1909 = vmatprep.subr.bf16.mxu0 %v1448
    %1910 = vmatpush1.bf16.msra.mxu0 %v1447
    %1911 = vmatprep.subr.bf16.mxu0 %v1454
    %1912 = vmatpush1.bf16.msra.mxu0 %v1453
    %1913 = vmatprep.subr.bf16.mxu0 %v1460
    %1914 = vmatpush1.bf16.msra.mxu0 %v1459
    %1915 = vmatprep.subr.bf16.mxu0 %v1466
    %1916 = vmatpush1.bf16.msra.mxu0 %v1465
    %1917 = vmatprep.subr.bf16.mxu0 %v1472
    %1918 = vmatpush1.bf16.msra.mxu0 %v1471
    %1919 = vmatprep.subr.bf16.mxu0 %v1478
    %1920 = vmatpush1.bf16.msra.mxu0 %v1477
    %1921 = vmatprep.subr.bf16.mxu0 %v1484
    %1922 = vmatpush1.bf16.msra.mxu0 %v1483
    %1923 = vmatprep.subr.bf16.mxu0 %v1490
    %1924 = vmatpush1.bf16.msra.mxu0 %v1489
    %1925 = vmatprep.subr.bf16.mxu0 %v1496
    %1926 = vmatpush1.bf16.msra.mxu0 %v1495
    %1927 = vmatprep.subr.bf16.mxu0 %v1502
    %1928 = vmatpush1.bf16.msra.mxu0 %v1501
    %1929 = vmatprep.subr.bf16.mxu0 %v1508
    %1930 = vmatpush1.bf16.msra.mxu0 %v1507
    %1931 = vmatprep.subr.bf16.mxu0 %v1514
    %1932 = vmatpush1.bf16.msra.mxu0 %v1513
    %1933 = vmatprep.subr.bf16.mxu0 %v1520
    %1934 = vmatpush1.bf16.msra.mxu0 %v1519
    %1935 = vmatprep.subr.bf16.mxu0 %v1526
    %1936 = vmatpush1.bf16.msra.mxu0 %v1525
    %1937 = vmatprep.subr.bf16.mxu0 %v1532
    %1938 = vmatpush1.bf16.msra.mxu0 %v1531
    %1939 = vmatprep.mubr.bf16.mxu0 %v378
    %1940 = vmatmul.mubr.bf16.gmra.mrb[0].mxu0 %v377
    %v1941 = vpop.f32.mrb[0].mxu0
    %v1942 = vadd.f32 %v1901, %v1941
    %v1943 = vpop.f32.mrb[0].mxu0
    %v1944 = vadd.f32 %v1903, %v1943
    %v1945 = vpop.f32.mrb[0].mxu0
    %v1946 = vpop.f32.mrb[0].mxu0
    %1947 = vdwg.mxu0
    %1948 = vmatprep.subr.bf16.mxu0 %v1252
    %1949 = vmatpush1.bf16.msra.mxu0 %v1251
    %1950 = vmatprep.subr.bf16.mxu0 %v1258
    %1951 = vmatpush1.bf16.msra.mxu0 %v1257
    %1952 = vmatprep.subr.bf16.mxu0 %v1264
    %1953 = vmatpush1.bf16.msra.mxu0 %v1263
    %1954 = vmatprep.subr.bf16.mxu0 %v1270
    %1955 = vmatpush1.bf16.msra.mxu0 %v1269
    %1956 = vmatprep.subr.bf16.mxu0 %v1276
    %1957 = vmatpush1.bf16.msra.mxu0 %v1275
    %1958 = vmatprep.subr.bf16.mxu0 %v1282
    %1959 = vmatpush1.bf16.msra.mxu0 %v1281
    %1960 = vmatprep.subr.bf16.mxu0 %v1288
    %1961 = vmatpush1.bf16.msra.mxu0 %v1287
    %1962 = vmatprep.subr.bf16.mxu0 %v1294
    %1963 = vmatpush1.bf16.msra.mxu0 %v1293
    %1964 = vmatprep.subr.bf16.mxu0 %v1300
    %1965 = vmatpush1.bf16.msra.mxu0 %v1299
    %1966 = vmatprep.subr.bf16.mxu0 %v1306
    %1967 = vmatpush1.bf16.msra.mxu0 %v1305
    %1968 = vmatprep.subr.bf16.mxu0 %v1312
    %1969 = vmatpush1.bf16.msra.mxu0 %v1311
    %1970 = vmatprep.subr.bf16.mxu0 %v1318
    %1971 = vmatpush1.bf16.msra.mxu0 %v1317
    %1972 = vmatprep.subr.bf16.mxu0 %v1324
    %1973 = vmatpush1.bf16.msra.mxu0 %v1323
    %1974 = vmatprep.subr.bf16.mxu0 %v1330
    %1975 = vmatpush1.bf16.msra.mxu0 %v1329
    %1976 = vmatprep.subr.bf16.mxu0 %v1336
    %1977 = vmatpush1.bf16.msra.mxu0 %v1335
    %1978 = vmatprep.subr.bf16.mxu0 %v1342
    %1979 = vmatpush1.bf16.msra.mxu0 %v1341
    %1980 = vmatprep.mubr.bf16.mxu0 %v374
    %1981 = vmatmul.mubr.bf16.gmra.mrb[0].mxu0 %v373
    %v1982 = vpop.f32.mrb[0].mxu0
    %v1983 = vadd.f32 %v345, %v1982
    %v1984 = vpop.f32.mrb[0].mxu0
    %v1985 = vadd.f32 %v349, %v1984
    %v1986 = vpop.f32.mrb[0].mxu0
    %v1987 = vpop.f32.mrb[0].mxu0
    %1988 = vdwg.mxu0
    %1989 = vmatprep.subr.bf16.mxu0 %v1348
    %1990 = vmatpush1.bf16.msra.mxu0 %v1347
    %1991 = vmatprep.subr.bf16.mxu0 %v1354
    %1992 = vmatpush1.bf16.msra.mxu0 %v1353
    %1993 = vmatprep.subr.bf16.mxu0 %v1360
    %1994 = vmatpush1.bf16.msra.mxu0 %v1359
    %1995 = vmatprep.subr.bf16.mxu0 %v1366
    %1996 = vmatpush1.bf16.msra.mxu0 %v1365
    %1997 = vmatprep.subr.bf16.mxu0 %v1372
    %1998 = vmatpush1.bf16.msra.mxu0 %v1371
    %1999 = vmatprep.subr.bf16.mxu0 %v1378
    %2000 = vmatpush1.bf16.msra.mxu0 %v1377
    %2001 = vmatprep.subr.bf16.mxu0 %v1384
    %2002 = vmatpush1.bf16.msra.mxu0 %v1383
    %2003 = vmatprep.subr.bf16.mxu0 %v1390
    %2004 = vmatpush1.bf16.msra.mxu0 %v1389
    %2005 = vmatprep.subr.bf16.mxu0 %v1396
    %2006 = vmatpush1.bf16.msra.mxu0 %v1395
    %2007 = vmatprep.subr.bf16.mxu0 %v1402
    %2008 = vmatpush1.bf16.msra.mxu0 %v1401
    %2009 = vmatprep.subr.bf16.mxu0 %v1408
    %2010 = vmatpush1.bf16.msra.mxu0 %v1407
    %2011 = vmatprep.subr.bf16.mxu0 %v1414
    %2012 = vmatpush1.bf16.msra.mxu0 %v1413
    %2013 = vmatprep.subr.bf16.mxu0 %v1420
    %2014 = vmatpush1.bf16.msra.mxu0 %v1419
    %2015 = vmatprep.subr.bf16.mxu0 %v1426
    %2016 = vmatpush1.bf16.msra.mxu0 %v1425
    %2017 = vmatprep.subr.bf16.mxu0 %v1432
    %2018 = vmatpush1.bf16.msra.mxu0 %v1431
    %2019 = vmatprep.subr.bf16.mxu0 %v1438
    %2020 = vmatpush1.bf16.msra.mxu0 %v1437
    %2021 = vmatprep.mubr.bf16.mxu0 %v376
    %2022 = vmatmul.mubr.bf16.gmra.mrb[0].mxu0 %v375
    %v2023 = vpop.f32.mrb[0].mxu0
    %v2024 = vadd.f32 %v1983, %v2023
    %v2025 = vpop.f32.mrb[0].mxu0
    %v2026 = vadd.f32 %v1985, %v2025
    %v2027 = vpop.f32.mrb[0].mxu0
    %v2028 = vpop.f32.mrb[0].mxu0
    %2029 = vdwg.mxu0
    %2030 = vmatprep.subr.bf16.mxu0 %v1444
    %2031 = vmatpush1.bf16.msra.mxu0 %v1443
    %2032 = vmatprep.subr.bf16.mxu0 %v1450
    %2033 = vmatpush1.bf16.msra.mxu0 %v1449
    %2034 = vmatprep.subr.bf16.mxu0 %v1456
    %2035 = vmatpush1.bf16.msra.mxu0 %v1455
    %2036 = vmatprep.subr.bf16.mxu0 %v1462
    %2037 = vmatpush1.bf16.msra.mxu0 %v1461
    %2038 = vmatprep.subr.bf16.mxu0 %v1468
    %2039 = vmatpush1.bf16.msra.mxu0 %v1467
    %2040 = vmatprep.subr.bf16.mxu0 %v1474
    %2041 = vmatpush1.bf16.msra.mxu0 %v1473
    %2042 = vmatprep.subr.bf16.mxu0 %v1480
    %2043 = vmatpush1.bf16.msra.mxu0 %v1479
    %2044 = vmatprep.subr.bf16.mxu0 %v1486
    %2045 = vmatpush1.bf16.msra.mxu0 %v1485
    %2046 = vmatprep.subr.bf16.mxu0 %v1492
    %2047 = vmatpush1.bf16.msra.mxu0 %v1491
    %2048 = vmatprep.subr.bf16.mxu0 %v1498
    %2049 = vmatpush1.bf16.msra.mxu0 %v1497
    %2050 = vmatprep.subr.bf16.mxu0 %v1504
    %2051 = vmatpush1.bf16.msra.mxu0 %v1503
    %2052 = vmatprep.subr.bf16.mxu0 %v1510
    %2053 = vmatpush1.bf16.msra.mxu0 %v1509
    %2054 = vmatprep.subr.bf16.mxu0 %v1516
    %2055 = vmatpush1.bf16.msra.mxu0 %v1515
    %2056 = vmatprep.subr.bf16.mxu0 %v1522
    %2057 = vmatpush1.bf16.msra.mxu0 %v1521
    %2058 = vmatprep.subr.bf16.mxu0 %v1528
    %2059 = vmatpush1.bf16.msra.mxu0 %v1527
    %2060 = vmatprep.subr.bf16.mxu0 %v1534
    %2061 = vmatpush1.bf16.msra.mxu0 %v1533
    %2062 = vmatprep.mubr.bf16.mxu0 %v378
    %2063 = vmatmul.mubr.bf16.gmra.mrb[0].mxu0 %v377
    %v2064 = vpop.f32.mrb[0].mxu0
    %v2065 = vadd.f32 %v2024, %v2064
    %v2066 = vpop.f32.mrb[0].mxu0
    %v2067 = vadd.f32 %v2026, %v2066
    %v2068 = vpop.f32.mrb[0].mxu0
    %v2069 = vpop.f32.mrb[0].mxu0
    %2070 = vdwg.mxu0
    %2071 = vmatprep.subr.bf16.mxu0 %v1254
    %2072 = vmatpush1.bf16.msra.mxu0 %v1253
    %2073 = vmatprep.subr.bf16.mxu0 %v1260
    %2074 = vmatpush1.bf16.msra.mxu0 %v1259
    %2075 = vmatprep.subr.bf16.mxu0 %v1266
    %2076 = vmatpush1.bf16.msra.mxu0 %v1265
    %2077 = vmatprep.subr.bf16.mxu0 %v1272
    %2078 = vmatpush1.bf16.msra.mxu0 %v1271
    %2079 = vmatprep.subr.bf16.mxu0 %v1278
    %2080 = vmatpush1.bf16.msra.mxu0 %v1277
    %2081 = vmatprep.subr.bf16.mxu0 %v1284
    %2082 = vmatpush1.bf16.msra.mxu0 %v1283
    %2083 = vmatprep.subr.bf16.mxu0 %v1290
    %2084 = vmatpush1.bf16.msra.mxu0 %v1289
    %2085 = vmatprep.subr.bf16.mxu0 %v1296
    %2086 = vmatpush1.bf16.msra.mxu0 %v1295
    %2087 = vmatprep.subr.bf16.mxu0 %v1302
    %2088 = vmatpush1.bf16.msra.mxu0 %v1301
    %2089 = vmatprep.subr.bf16.mxu0 %v1308
    %2090 = vmatpush1.bf16.msra.mxu0 %v1307
    %2091 = vmatprep.subr.bf16.mxu0 %v1314
    %2092 = vmatpush1.bf16.msra.mxu0 %v1313
    %2093 = vmatprep.subr.bf16.mxu0 %v1320
    %2094 = vmatpush1.bf16.msra.mxu0 %v1319
    %2095 = vmatprep.subr.bf16.mxu0 %v1326
    %2096 = vmatpush1.bf16.msra.mxu0 %v1325
    %2097 = vmatprep.subr.bf16.mxu0 %v1332
    %2098 = vmatpush1.bf16.msra.mxu0 %v1331
    %2099 = vmatprep.subr.bf16.mxu0 %v1338
    %2100 = vmatpush1.bf16.msra.mxu0 %v1337
    %2101 = vmatprep.subr.bf16.mxu0 %v1344
    %2102 = vmatpush1.bf16.msra.mxu0 %v1343
    %2103 = vmatprep.mubr.bf16.mxu0 %v374
    %2104 = vmatmul.mubr.bf16.gmra.mrb[0].mxu0 %v373
    %v2105 = vpop.f32.mrb[0].mxu0
    %v2106 = vadd.f32 %v353, %v2105
    %v2107 = vpop.f32.mrb[0].mxu0
    %v2108 = vadd.f32 %v357, %v2107
    %v2109 = vpop.f32.mrb[0].mxu0
    %v2110 = vpop.f32.mrb[0].mxu0
    %2111 = vdwg.mxu0
    %2112 = vmatprep.subr.bf16.mxu0 %v1350
    %2113 = vmatpush1.bf16.msra.mxu0 %v1349
    %2114 = vmatprep.subr.bf16.mxu0 %v1356
    %2115 = vmatpush1.bf16.msra.mxu0 %v1355
    %2116 = vmatprep.subr.bf16.mxu0 %v1362
    %2117 = vmatpush1.bf16.msra.mxu0 %v1361
    %2118 = vmatprep.subr.bf16.mxu0 %v1368
    %2119 = vmatpush1.bf16.msra.mxu0 %v1367
    %2120 = vmatprep.subr.bf16.mxu0 %v1374
    %2121 = vmatpush1.bf16.msra.mxu0 %v1373
    %2122 = vmatprep.subr.bf16.mxu0 %v1380
    %2123 = vmatpush1.bf16.msra.mxu0 %v1379
    %2124 = vmatprep.subr.bf16.mxu0 %v1386
    %2125 = vmatpush1.bf16.msra.mxu0 %v1385
    %2126 = vmatprep.subr.bf16.mxu0 %v1392
    %2127 = vmatpush1.bf16.msra.mxu0 %v1391
    %2128 = vmatprep.subr.bf16.mxu0 %v1398
    %2129 = vmatpush1.bf16.msra.mxu0 %v1397
    %2130 = vmatprep.subr.bf16.mxu0 %v1404
    %2131 = vmatpush1.bf16.msra.mxu0 %v1403
    %2132 = vmatprep.subr.bf16.mxu0 %v1410
    %2133 = vmatpush1.bf16.msra.mxu0 %v1409
    %2134 = vmatprep.subr.bf16.mxu0 %v1416
    %2135 = vmatpush1.bf16.msra.mxu0 %v1415
    %2136 = vmatprep.subr.bf16.mxu0 %v1422
    %2137 = vmatpush1.bf16.msra.mxu0 %v1421
    %2138 = vmatprep.subr.bf16.mxu0 %v1428
    %2139 = vmatpush1.bf16.msra.mxu0 %v1427
    %2140 = vmatprep.subr.bf16.mxu0 %v1434
    %2141 = vmatpush1.bf16.msra.mxu0 %v1433
    %2142 = vmatprep.subr.bf16.mxu0 %v1440
    %2143 = vmatpush1.bf16.msra.mxu0 %v1439
    %2144 = vmatprep.mubr.bf16.mxu0 %v376
    %2145 = vmatmul.mubr.bf16.gmra.mrb[0].mxu0 %v375
    %v2146 = vpop.f32.mrb[0].mxu0
    %v2147 = vadd.f32 %v2106, %v2146
    %v2148 = vpop.f32.mrb[0].mxu0
    %v2149 = vadd.f32 %v2108, %v2148
    %v2150 = vpop.f32.mrb[0].mxu0
    %v2151 = vpop.f32.mrb[0].mxu0
    %2152 = vdwg.mxu0
    %2153 = vmatprep.subr.bf16.mxu0 %v1446
    %2154 = vmatpush1.bf16.msra.mxu0 %v1445
    %2155 = vmatprep.subr.bf16.mxu0 %v1452
    %2156 = vmatpush1.bf16.msra.mxu0 %v1451
    %2157 = vmatprep.subr.bf16.mxu0 %v1458
    %2158 = vmatpush1.bf16.msra.mxu0 %v1457
    %2159 = vmatprep.subr.bf16.mxu0 %v1464
    %2160 = vmatpush1.bf16.msra.mxu0 %v1463
    %2161 = vmatprep.subr.bf16.mxu0 %v1470
    %2162 = vmatpush1.bf16.msra.mxu0 %v1469
    %2163 = vmatprep.subr.bf16.mxu0 %v1476
    %2164 = vmatpush1.bf16.msra.mxu0 %v1475
    %2165 = vmatprep.subr.bf16.mxu0 %v1482
    %2166 = vmatpush1.bf16.msra.mxu0 %v1481
    %2167 = vmatprep.subr.bf16.mxu0 %v1488
    %2168 = vmatpush1.bf16.msra.mxu0 %v1487
    %2169 = vmatprep.subr.bf16.mxu0 %v1494
    %2170 = vmatpush1.bf16.msra.mxu0 %v1493
    %2171 = vmatprep.subr.bf16.mxu0 %v1500
    %2172 = vmatpush1.bf16.msra.mxu0 %v1499
    %2173 = vmatprep.subr.bf16.mxu0 %v1506
    %2174 = vmatpush1.bf16.msra.mxu0 %v1505
    %2175 = vmatprep.subr.bf16.mxu0 %v1512
    %2176 = vmatpush1.bf16.msra.mxu0 %v1511
    %2177 = vmatprep.subr.bf16.mxu0 %v1518
    %2178 = vmatpush1.bf16.msra.mxu0 %v1517
    %2179 = vmatprep.subr.bf16.mxu0 %v1524
    %2180 = vmatpush1.bf16.msra.mxu0 %v1523
    %2181 = vmatprep.subr.bf16.mxu0 %v1530
    %2182 = vmatpush1.bf16.msra.mxu0 %v1529
    %2183 = vmatprep.subr.bf16.mxu0 %v1536
    %2184 = vmatpush1.bf16.msra.mxu0 %v1535
    %2185 = vmatprep.mubr.bf16.mxu0 %v378
    %2186 = vmatmul.mubr.bf16.gmra.mrb[0].mxu0 %v377
    %v2187 = vpop.f32.mrb[0].mxu0
    %v2188 = vadd.f32 %v2147, %v2187
    %v2189 = vpop.f32.mrb[0].mxu0
    %v2190 = vadd.f32 %v2149, %v2189
    %v2191 = vpop.f32.mrb[0].mxu0
    %v2192 = vpop.f32.mrb[0].mxu0
    %2193 = vdwg.mxu0
    %v2194 = vtanh.pop %v1942
    %v2195 = vtanh.pop %v1944
    %v2196 = vtanh.pop %v2065
    %v2197 = vtanh.pop %v2067
    %v2198 = vtanh.pop %v2188
    %v2199 = vtanh.pop %v2190
    %v2200 = vpack.c.bf16 %v2194, %v2194
    %v2201 = vpack.c.bf16 %v2195, %v2195
    %v2202 = vpack.c.bf16 %v2196, %v2196
    %v2203 = vpack.c.bf16 %v2197, %v2197
    %v2204 = vpack.c.bf16 %v2198, %v2198
    %v2205 = vpack.c.bf16 %v2199, %v2199
    %v2206 = vld [vmem:[%s3] sm:$0xff]
    %v2207 = vld [vmem:[%s3 + $0x8] sm:$0xff]
    %v2208 = vld [vmem:[%s3 + $0x10] sm:$0xff]
    %v2209 = vld [vmem:[%s3 + $0x18] sm:$0xff]
    %v2210 = vld [vmem:[%s3 + $0x20] sm:$0xff]
    %v2211 = vld [vmem:[%s3 + $0x28] sm:$0xff]
    %v2212 = vld [vmem:[%s3 + $0x30] sm:$0xff]
    %v2213 = vld [vmem:[%s3 + $0x38] sm:$0xff]
    %v2214 = vld [vmem:[%s3 + $0x40] sm:$0xff]
    %v2215 = vld [vmem:[%s3 + $0x48] sm:$0xff]
    %v2216 = vld [vmem:[%s3 + $0x50] sm:$0xff]
    %v2217 = vld [vmem:[%s3 + $0x58] sm:$0xff]
    %v2218 = vld [vmem:[%s3 + $0x60] sm:$0xff]
    %v2219 = vld [vmem:[%s3 + $0x68] sm:$0xff]
    %v2220 = vld [vmem:[%s3 + $0x70] sm:$0xff]
    %v2221 = vld [vmem:[%s3 + $0x78] sm:$0xff]
    %v2222 = vld [vmem:[%s3 + $0x80] sm:$0xff]
    %v2223 = vld [vmem:[%s3 + $0x88] sm:$0xff]
    %v2224 = vld [vmem:[%s3 + $0x90] sm:$0xff]
    %v2225 = vld [vmem:[%s3 + $0x98] sm:$0xff]
    %v2226 = vld [vmem:[%s3 + $0xa0] sm:$0xff]
    %v2227 = vld [vmem:[%s3 + $0xa8] sm:$0xff]
    %v2228 = vld [vmem:[%s3 + $0xb0] sm:$0xff]
    %v2229 = vld [vmem:[%s3 + $0xb8] sm:$0xff]
    %v2230 = vld [vmem:[%s3 + $0xc0] sm:$0xff]
    %v2231 = vld [vmem:[%s3 + $0xc8] sm:$0xff]
    %v2232 = vld [vmem:[%s3 + $0xd0] sm:$0xff]
    %v2233 = vld [vmem:[%s3 + $0xd8] sm:$0xff]
    %v2234 = vld [vmem:[%s3 + $0xe0] sm:$0xff]
    %v2235 = vld [vmem:[%s3 + $0xe8] sm:$0xff]
    %v2236 = vld [vmem:[%s3 + $0xf0] sm:$0xff]
    %v2237 = vld [vmem:[%s3 + $0xf8] sm:$0xff]
    %v2238 = vld [vmem:[%s3 + $0x100] sm:$0xff]
    %v2239 = vld [vmem:[%s3 + $0x108] sm:$0xff]
    %v2240 = vld [vmem:[%s3 + $0x110] sm:$0xff]
    %v2241 = vld [vmem:[%s3 + $0x118] sm:$0xff]
    %v2242 = vld [vmem:[%s3 + $0x120] sm:$0xff]
    %v2243 = vld [vmem:[%s3 + $0x128] sm:$0xff]
    %v2244 = vld [vmem:[%s3 + $0x130] sm:$0xff]
    %v2245 = vld [vmem:[%s3 + $0x138] sm:$0xff]
    %v2246 = vld [vmem:[%s3 + $0x140] sm:$0xff]
    %v2247 = vld [vmem:[%s3 + $0x148] sm:$0xff]
    %v2248 = vld [vmem:[%s3 + $0x150] sm:$0xff]
    %v2249 = vld [vmem:[%s3 + $0x158] sm:$0xff]
    %v2250 = vld [vmem:[%s3 + $0x160] sm:$0xff]
    %v2251 = vld [vmem:[%s3 + $0x168] sm:$0xff]
    %v2252 = vld [vmem:[%s3 + $0x170] sm:$0xff]
    %v2253 = vld [vmem:[%s3 + $0x178] sm:$0xff]
    %v2254 = vld [vmem:[%s3 + $0x180] sm:$0xff]
    %v2255 = vld [vmem:[%s3 + $0x188] sm:$0xff]
    %v2256 = vld [vmem:[%s3 + $0x190] sm:$0xff]
    %v2257 = vld [vmem:[%s3 + $0x198] sm:$0xff]
    %v2258 = vld [vmem:[%s3 + $0x1a0] sm:$0xff]
    %v2259 = vld [vmem:[%s3 + $0x1a8] sm:$0xff]
    %v2260 = vld [vmem:[%s3 + $0x1b0] sm:$0xff]
    %v2261 = vld [vmem:[%s3 + $0x1b8] sm:$0xff]
    %v2262 = vld [vmem:[%s3 + $0x1c0] sm:$0xff]
    %v2263 = vld [vmem:[%s3 + $0x1c8] sm:$0xff]
    %v2264 = vld [vmem:[%s3 + $0x1d0] sm:$0xff]
    %v2265 = vld [vmem:[%s3 + $0x1d8] sm:$0xff]
    %v2266 = vld [vmem:[%s3 + $0x1e0] sm:$0xff]
    %v2267 = vld [vmem:[%s3 + $0x1e8] sm:$0xff]
    %v2268 = vld [vmem:[%s3 + $0x1f0] sm:$0xff]
    %v2269 = vld [vmem:[%s3 + $0x1f8] sm:$0xff]
    %v2270 = vld [vmem:[%s3 + $0x200] sm:$0xff]
    %v2271 = vld [vmem:[%s3 + $0x208] sm:$0xff]
    %v2272 = vld [vmem:[%s3 + $0x210] sm:$0xff]
    %v2273 = vld [vmem:[%s3 + $0x218] sm:$0xff]
    %v2274 = vld [vmem:[%s3 + $0x220] sm:$0xff]
    %v2275 = vld [vmem:[%s3 + $0x228] sm:$0xff]
    %v2276 = vld [vmem:[%s3 + $0x230] sm:$0xff]
    %v2277 = vld [vmem:[%s3 + $0x238] sm:$0xff]
    %v2278 = vld [vmem:[%s3 + $0x240] sm:$0xff]
    %v2279 = vld [vmem:[%s3 + $0x248] sm:$0xff]
    %v2280 = vld [vmem:[%s3 + $0x250] sm:$0xff]
    %v2281 = vld [vmem:[%s3 + $0x258] sm:$0xff]
    %v2282 = vld [vmem:[%s3 + $0x260] sm:$0xff]
    %v2283 = vld [vmem:[%s3 + $0x268] sm:$0xff]
    %v2284 = vld [vmem:[%s3 + $0x270] sm:$0xff]
    %v2285 = vld [vmem:[%s3 + $0x278] sm:$0xff]
    %v2286 = vld [vmem:[%s3 + $0x280] sm:$0xff]
    %v2287 = vld [vmem:[%s3 + $0x288] sm:$0xff]
    %v2288 = vld [vmem:[%s3 + $0x290] sm:$0xff]
    %v2289 = vld [vmem:[%s3 + $0x298] sm:$0xff]
    %v2290 = vld [vmem:[%s3 + $0x2a0] sm:$0xff]
    %v2291 = vld [vmem:[%s3 + $0x2a8] sm:$0xff]
    %v2292 = vld [vmem:[%s3 + $0x2b0] sm:$0xff]
    %v2293 = vld [vmem:[%s3 + $0x2b8] sm:$0xff]
    %v2294 = vld [vmem:[%s3 + $0x2c0] sm:$0xff]
    %v2295 = vld [vmem:[%s3 + $0x2c8] sm:$0xff]
    %v2296 = vld [vmem:[%s3 + $0x2d0] sm:$0xff]
    %v2297 = vld [vmem:[%s3 + $0x2d8] sm:$0xff]
    %v2298 = vld [vmem:[%s3 + $0x2e0] sm:$0xff]
    %v2299 = vld [vmem:[%s3 + $0x2e8] sm:$0xff]
    %v2300 = vld [vmem:[%s3 + $0x2f0] sm:$0xff]
    %v2301 = vld [vmem:[%s3 + $0x2f8] sm:$0xff]
    %v2302 = vld [vmem:[%s3 + $0x300] sm:$0xff]
    %v2303 = vld [vmem:[%s3 + $0x308] sm:$0xff]
    %v2304 = vld [vmem:[%s3 + $0x310] sm:$0xff]
    %v2305 = vld [vmem:[%s3 + $0x318] sm:$0xff]
    %v2306 = vld [vmem:[%s3 + $0x320] sm:$0xff]
    %v2307 = vld [vmem:[%s3 + $0x328] sm:$0xff]
    %v2308 = vld [vmem:[%s3 + $0x330] sm:$0xff]
    %v2309 = vld [vmem:[%s3 + $0x338] sm:$0xff]
    %v2310 = vld [vmem:[%s3 + $0x340] sm:$0xff]
    %v2311 = vld [vmem:[%s3 + $0x348] sm:$0xff]
    %v2312 = vld [vmem:[%s3 + $0x350] sm:$0xff]
    %v2313 = vld [vmem:[%s3 + $0x358] sm:$0xff]
    %v2314 = vld [vmem:[%s3 + $0x360] sm:$0xff]
    %v2315 = vld [vmem:[%s3 + $0x368] sm:$0xff]
    %v2316 = vld [vmem:[%s3 + $0x370] sm:$0xff]
    %v2317 = vld [vmem:[%s3 + $0x378] sm:$0xff]
    %v2318 = vld [vmem:[%s3 + $0x380] sm:$0xff]
    %v2319 = vld [vmem:[%s3 + $0x388] sm:$0xff]
    %v2320 = vld [vmem:[%s3 + $0x390] sm:$0xff]
    %v2321 = vld [vmem:[%s3 + $0x398] sm:$0xff]
    %v2322 = vld [vmem:[%s3 + $0x3a0] sm:$0xff]
    %v2323 = vld [vmem:[%s3 + $0x3a8] sm:$0xff]
    %v2324 = vld [vmem:[%s3 + $0x3b0] sm:$0xff]
    %v2325 = vld [vmem:[%s3 + $0x3b8] sm:$0xff]
    %v2326 = vld [vmem:[%s3 + $0x3c0] sm:$0xff]
    %v2327 = vld [vmem:[%s3 + $0x3c8] sm:$0xff]
    %v2328 = vld [vmem:[%s3 + $0x3d0] sm:$0xff]
    %v2329 = vld [vmem:[%s3 + $0x3d8] sm:$0xff]
    %v2330 = vld [vmem:[%s3 + $0x3e0] sm:$0xff]
    %v2331 = vld [vmem:[%s3 + $0x3e8] sm:$0xff]
    %v2332 = vld [vmem:[%s3 + $0x3f0] sm:$0xff]
    %v2333 = vld [vmem:[%s3 + $0x3f8] sm:$0xff]
    %v2334 = vld [vmem:[%s3 + $0x400] sm:$0xff]
    %v2335 = vld [vmem:[%s3 + $0x408] sm:$0xff]
    %v2336 = vld [vmem:[%s3 + $0x410] sm:$0xff]
    %v2337 = vld [vmem:[%s3 + $0x418] sm:$0xff]
    %v2338 = vld [vmem:[%s3 + $0x420] sm:$0xff]
    %v2339 = vld [vmem:[%s3 + $0x428] sm:$0xff]
    %v2340 = vld [vmem:[%s3 + $0x430] sm:$0xff]
    %v2341 = vld [vmem:[%s3 + $0x438] sm:$0xff]
    %v2342 = vld [vmem:[%s3 + $0x440] sm:$0xff]
    %v2343 = vld [vmem:[%s3 + $0x448] sm:$0xff]
    %v2344 = vld [vmem:[%s3 + $0x450] sm:$0xff]
    %v2345 = vld [vmem:[%s3 + $0x458] sm:$0xff]
    %v2346 = vld [vmem:[%s3 + $0x460] sm:$0xff]
    %v2347 = vld [vmem:[%s3 + $0x468] sm:$0xff]
    %v2348 = vld [vmem:[%s3 + $0x470] sm:$0xff]
    %v2349 = vld [vmem:[%s3 + $0x478] sm:$0xff]
    %v2350 = vld [vmem:[%s3 + $0x480] sm:$0xff]
    %v2351 = vld [vmem:[%s3 + $0x488] sm:$0xff]
    %v2352 = vld [vmem:[%s3 + $0x490] sm:$0xff]
    %v2353 = vld [vmem:[%s3 + $0x498] sm:$0xff]
    %v2354 = vld [vmem:[%s3 + $0x4a0] sm:$0xff]
    %v2355 = vld [vmem:[%s3 + $0x4a8] sm:$0xff]
    %v2356 = vld [vmem:[%s3 + $0x4b0] sm:$0xff]
    %v2357 = vld [vmem:[%s3 + $0x4b8] sm:$0xff]
    %v2358 = vld [vmem:[%s3 + $0x4c0] sm:$0xff]
    %v2359 = vld [vmem:[%s3 + $0x4c8] sm:$0xff]
    %v2360 = vld [vmem:[%s3 + $0x4d0] sm:$0xff]
    %v2361 = vld [vmem:[%s3 + $0x4d8] sm:$0xff]
    %v2362 = vld [vmem:[%s3 + $0x4e0] sm:$0xff]
    %v2363 = vld [vmem:[%s3 + $0x4e8] sm:$0xff]
    %v2364 = vld [vmem:[%s3 + $0x4f0] sm:$0xff]
    %v2365 = vld [vmem:[%s3 + $0x4f8] sm:$0xff]
    %v2366 = vld [vmem:[%s3 + $0x500] sm:$0xff]
    %v2367 = vld [vmem:[%s3 + $0x508] sm:$0xff]
    %v2368 = vld [vmem:[%s3 + $0x510] sm:$0xff]
    %v2369 = vld [vmem:[%s3 + $0x518] sm:$0xff]
    %v2370 = vld [vmem:[%s3 + $0x520] sm:$0xff]
    %v2371 = vld [vmem:[%s3 + $0x528] sm:$0xff]
    %v2372 = vld [vmem:[%s3 + $0x530] sm:$0xff]
    %v2373 = vld [vmem:[%s3 + $0x538] sm:$0xff]
    %v2374 = vld [vmem:[%s3 + $0x540] sm:$0xff]
    %v2375 = vld [vmem:[%s3 + $0x548] sm:$0xff]
    %v2376 = vld [vmem:[%s3 + $0x550] sm:$0xff]
    %v2377 = vld [vmem:[%s3 + $0x558] sm:$0xff]
    %v2378 = vld [vmem:[%s3 + $0x560] sm:$0xff]
    %v2379 = vld [vmem:[%s3 + $0x568] sm:$0xff]
    %v2380 = vld [vmem:[%s3 + $0x570] sm:$0xff]
    %v2381 = vld [vmem:[%s3 + $0x578] sm:$0xff]
    %v2382 = vld [vmem:[%s3 + $0x580] sm:$0xff]
    %v2383 = vld [vmem:[%s3 + $0x588] sm:$0xff]
    %v2384 = vld [vmem:[%s3 + $0x590] sm:$0xff]
    %v2385 = vld [vmem:[%s3 + $0x598] sm:$0xff]
    %v2386 = vld [vmem:[%s3 + $0x5a0] sm:$0xff]
    %v2387 = vld [vmem:[%s3 + $0x5a8] sm:$0xff]
    %v2388 = vld [vmem:[%s3 + $0x5b0] sm:$0xff]
    %v2389 = vld [vmem:[%s3 + $0x5b8] sm:$0xff]
    %v2390 = vld [vmem:[%s3 + $0x5c0] sm:$0xff]
    %v2391 = vld [vmem:[%s3 + $0x5c8] sm:$0xff]
    %v2392 = vld [vmem:[%s3 + $0x5d0] sm:$0xff]
    %v2393 = vld [vmem:[%s3 + $0x5d8] sm:$0xff]
    %v2394 = vld [vmem:[%s3 + $0x5e0] sm:$0xff]
    %v2395 = vld [vmem:[%s3 + $0x5e8] sm:$0xff]
    %v2396 = vld [vmem:[%s3 + $0x5f0] sm:$0xff]
    %v2397 = vld [vmem:[%s3 + $0x5f8] sm:$0xff]
    %v2398 = vld [vmem:[%s4] sm:$0xf]
    %v2400 = vlaneseq
    %v2401 = vshrl.u32 %v2400, 7
    %v2402 = vsub.s32 0, %v2401
    %v2403 = vrot.slane %v2398, %v2402
    %v2404 = vlaneseq
    %v2405 = vshrl.u32 %v2404, 7
    %v2406 = vsub.s32 1, %v2405
    %v2407 = vrot.slane %v2398, %v2406
    %v2408 = vlaneseq
    %v2409 = vshrl.u32 %v2408, 7
    %v2410 = vsub.s32 2, %v2409
    %v2411 = vrot.slane %v2398, %v2410
    %v2412 = vlaneseq
    %v2413 = vshrl.u32 %v2412, 7
    %v2414 = vsub.s32 3, %v2413
    %v2415 = vrot.slane %v2398, %v2414
    %v2612 = vunpack.c.l.b16 %v2206
    %v2613 = vunpack.c.h.b16 %v2206
    %v2614 = vunpack.c.l.b16 %v2207
    %v2615 = vunpack.c.h.b16 %v2207
    %v2616 = vunpack.c.l.b16 %v2208
    %v2617 = vunpack.c.h.b16 %v2208
    %v2618 = vunpack.c.l.b16 %v2209
    %v2619 = vunpack.c.h.b16 %v2209
    %v2620 = vunpack.c.l.b16 %v2210
    %v2621 = vunpack.c.h.b16 %v2210
    %v2622 = vunpack.c.l.b16 %v2211
    %v2623 = vunpack.c.h.b16 %v2211
    %v2624 = vunpack.c.l.b16 %v2212
    %v2625 = vunpack.c.h.b16 %v2212
    %v2626 = vunpack.c.l.b16 %v2213
    %v2627 = vunpack.c.h.b16 %v2213
    %v2628 = vunpack.c.l.b16 %v2214
    %v2629 = vunpack.c.h.b16 %v2214
    %v2630 = vunpack.c.l.b16 %v2215
    %v2631 = vunpack.c.h.b16 %v2215
    %v2632 = vunpack.c.l.b16 %v2216
    %v2633 = vunpack.c.h.b16 %v2216
    %v2634 = vunpack.c.l.b16 %v2217
    %v2635 = vunpack.c.h.b16 %v2217
    %v2636 = vunpack.c.l.b16 %v2218
    %v2637 = vunpack.c.h.b16 %v2218
    %v2638 = vunpack.c.l.b16 %v2219
    %v2639 = vunpack.c.h.b16 %v2219
    %v2640 = vunpack.c.l.b16 %v2220
    %v2641 = vunpack.c.h.b16 %v2220
    %v2642 = vunpack.c.l.b16 %v2221
    %v2643 = vunpack.c.h.b16 %v2221
    %v2644 = vunpack.c.l.b16 %v2222
    %v2645 = vunpack.c.h.b16 %v2222
    %v2646 = vunpack.c.l.b16 %v2223
    %v2647 = vunpack.c.h.b16 %v2223
    %v2648 = vunpack.c.l.b16 %v2224
    %v2649 = vunpack.c.h.b16 %v2224
    %v2650 = vunpack.c.l.b16 %v2225
    %v2651 = vunpack.c.h.b16 %v2225
    %v2652 = vunpack.c.l.b16 %v2226
    %v2653 = vunpack.c.h.b16 %v2226
    %v2654 = vunpack.c.l.b16 %v2227
    %v2655 = vunpack.c.h.b16 %v2227
    %v2656 = vunpack.c.l.b16 %v2228
    %v2657 = vunpack.c.h.b16 %v2228
    %v2658 = vunpack.c.l.b16 %v2229
    %v2659 = vunpack.c.h.b16 %v2229
    %v2660 = vunpack.c.l.b16 %v2230
    %v2661 = vunpack.c.h.b16 %v2230
    %v2662 = vunpack.c.l.b16 %v2231
    %v2663 = vunpack.c.h.b16 %v2231
    %v2664 = vunpack.c.l.b16 %v2232
    %v2665 = vunpack.c.h.b16 %v2232
    %v2666 = vunpack.c.l.b16 %v2233
    %v2667 = vunpack.c.h.b16 %v2233
    %v2668 = vunpack.c.l.b16 %v2234
    %v2669 = vunpack.c.h.b16 %v2234
    %v2670 = vunpack.c.l.b16 %v2235
    %v2671 = vunpack.c.h.b16 %v2235
    %v2672 = vunpack.c.l.b16 %v2236
    %v2673 = vunpack.c.h.b16 %v2236
    %v2674 = vunpack.c.l.b16 %v2237
    %v2675 = vunpack.c.h.b16 %v2237
    %v2676 = vunpack.c.l.b16 %v2238
    %v2677 = vunpack.c.h.b16 %v2238
    %v2678 = vunpack.c.l.b16 %v2239
    %v2679 = vunpack.c.h.b16 %v2239
    %v2680 = vunpack.c.l.b16 %v2240
    %v2681 = vunpack.c.h.b16 %v2240
    %v2682 = vunpack.c.l.b16 %v2241
    %v2683 = vunpack.c.h.b16 %v2241
    %v2684 = vunpack.c.l.b16 %v2242
    %v2685 = vunpack.c.h.b16 %v2242
    %v2686 = vunpack.c.l.b16 %v2243
    %v2687 = vunpack.c.h.b16 %v2243
    %v2688 = vunpack.c.l.b16 %v2244
    %v2689 = vunpack.c.h.b16 %v2244
    %v2690 = vunpack.c.l.b16 %v2245
    %v2691 = vunpack.c.h.b16 %v2245
    %v2692 = vunpack.c.l.b16 %v2246
    %v2693 = vunpack.c.h.b16 %v2246
    %v2694 = vunpack.c.l.b16 %v2247
    %v2695 = vunpack.c.h.b16 %v2247
    %v2696 = vunpack.c.l.b16 %v2248
    %v2697 = vunpack.c.h.b16 %v2248
    %v2698 = vunpack.c.l.b16 %v2249
    %v2699 = vunpack.c.h.b16 %v2249
    %v2700 = vunpack.c.l.b16 %v2250
    %v2701 = vunpack.c.h.b16 %v2250
    %v2702 = vunpack.c.l.b16 %v2251
    %v2703 = vunpack.c.h.b16 %v2251
    %v2704 = vunpack.c.l.b16 %v2252
    %v2705 = vunpack.c.h.b16 %v2252
    %v2706 = vunpack.c.l.b16 %v2253
    %v2707 = vunpack.c.h.b16 %v2253
    %v2708 = vunpack.c.l.b16 %v2254
    %v2709 = vunpack.c.h.b16 %v2254
    %v2710 = vunpack.c.l.b16 %v2255
    %v2711 = vunpack.c.h.b16 %v2255
    %v2712 = vunpack.c.l.b16 %v2256
    %v2713 = vunpack.c.h.b16 %v2256
    %v2714 = vunpack.c.l.b16 %v2257
    %v2715 = vunpack.c.h.b16 %v2257
    %v2716 = vunpack.c.l.b16 %v2258
    %v2717 = vunpack.c.h.b16 %v2258
    %v2718 = vunpack.c.l.b16 %v2259
    %v2719 = vunpack.c.h.b16 %v2259
    %v2720 = vunpack.c.l.b16 %v2260
    %v2721 = vunpack.c.h.b16 %v2260
    %v2722 = vunpack.c.l.b16 %v2261
    %v2723 = vunpack.c.h.b16 %v2261
    %v2724 = vunpack.c.l.b16 %v2262
    %v2725 = vunpack.c.h.b16 %v2262
    %v2726 = vunpack.c.l.b16 %v2263
    %v2727 = vunpack.c.h.b16 %v2263
    %v2728 = vunpack.c.l.b16 %v2264
    %v2729 = vunpack.c.h.b16 %v2264
    %v2730 = vunpack.c.l.b16 %v2265
    %v2731 = vunpack.c.h.b16 %v2265
    %v2732 = vunpack.c.l.b16 %v2266
    %v2733 = vunpack.c.h.b16 %v2266
    %v2734 = vunpack.c.l.b16 %v2267
    %v2735 = vunpack.c.h.b16 %v2267
    %v2736 = vunpack.c.l.b16 %v2268
    %v2737 = vunpack.c.h.b16 %v2268
    %v2738 = vunpack.c.l.b16 %v2269
    %v2739 = vunpack.c.h.b16 %v2269
    %v2740 = vunpack.c.l.b16 %v2270
    %v2741 = vunpack.c.h.b16 %v2270
    %v2742 = vunpack.c.l.b16 %v2271
    %v2743 = vunpack.c.h.b16 %v2271
    %v2744 = vunpack.c.l.b16 %v2272
    %v2745 = vunpack.c.h.b16 %v2272
    %v2746 = vunpack.c.l.b16 %v2273
    %v2747 = vunpack.c.h.b16 %v2273
    %v2748 = vunpack.c.l.b16 %v2274
    %v2749 = vunpack.c.h.b16 %v2274
    %v2750 = vunpack.c.l.b16 %v2275
    %v2751 = vunpack.c.h.b16 %v2275
    %v2752 = vunpack.c.l.b16 %v2276
    %v2753 = vunpack.c.h.b16 %v2276
    %v2754 = vunpack.c.l.b16 %v2277
    %v2755 = vunpack.c.h.b16 %v2277
    %v2756 = vunpack.c.l.b16 %v2278
    %v2757 = vunpack.c.h.b16 %v2278
    %v2758 = vunpack.c.l.b16 %v2279
    %v2759 = vunpack.c.h.b16 %v2279
    %v2760 = vunpack.c.l.b16 %v2280
    %v2761 = vunpack.c.h.b16 %v2280
    %v2762 = vunpack.c.l.b16 %v2281
    %v2763 = vunpack.c.h.b16 %v2281
    %v2764 = vunpack.c.l.b16 %v2282
    %v2765 = vunpack.c.h.b16 %v2282
    %v2766 = vunpack.c.l.b16 %v2283
    %v2767 = vunpack.c.h.b16 %v2283
    %v2768 = vunpack.c.l.b16 %v2284
    %v2769 = vunpack.c.h.b16 %v2284
    %v2770 = vunpack.c.l.b16 %v2285
    %v2771 = vunpack.c.h.b16 %v2285
    %v2772 = vunpack.c.l.b16 %v2286
    %v2773 = vunpack.c.h.b16 %v2286
    %v2774 = vunpack.c.l.b16 %v2287
    %v2775 = vunpack.c.h.b16 %v2287
    %v2776 = vunpack.c.l.b16 %v2288
    %v2777 = vunpack.c.h.b16 %v2288
    %v2778 = vunpack.c.l.b16 %v2289
    %v2779 = vunpack.c.h.b16 %v2289
    %v2780 = vunpack.c.l.b16 %v2290
    %v2781 = vunpack.c.h.b16 %v2290
    %v2782 = vunpack.c.l.b16 %v2291
    %v2783 = vunpack.c.h.b16 %v2291
    %v2784 = vunpack.c.l.b16 %v2292
    %v2785 = vunpack.c.h.b16 %v2292
    %v2786 = vunpack.c.l.b16 %v2293
    %v2787 = vunpack.c.h.b16 %v2293
    %v2788 = vunpack.c.l.b16 %v2294
    %v2789 = vunpack.c.h.b16 %v2294
    %v2790 = vunpack.c.l.b16 %v2295
    %v2791 = vunpack.c.h.b16 %v2295
    %v2792 = vunpack.c.l.b16 %v2296
    %v2793 = vunpack.c.h.b16 %v2296
    %v2794 = vunpack.c.l.b16 %v2297
    %v2795 = vunpack.c.h.b16 %v2297
    %v2796 = vunpack.c.l.b16 %v2298
    %v2797 = vunpack.c.h.b16 %v2298
    %v2798 = vunpack.c.l.b16 %v2299
    %v2799 = vunpack.c.h.b16 %v2299
    %v2800 = vunpack.c.l.b16 %v2300
    %v2801 = vunpack.c.h.b16 %v2300
    %v2802 = vunpack.c.l.b16 %v2301
    %v2803 = vunpack.c.h.b16 %v2301
    %v2804 = vunpack.c.l.b16 %v2302
    %v2805 = vunpack.c.h.b16 %v2302
    %v2806 = vunpack.c.l.b16 %v2303
    %v2807 = vunpack.c.h.b16 %v2303
    %v2808 = vunpack.c.l.b16 %v2304
    %v2809 = vunpack.c.h.b16 %v2304
    %v2810 = vunpack.c.l.b16 %v2305
    %v2811 = vunpack.c.h.b16 %v2305
    %v2812 = vunpack.c.l.b16 %v2306
    %v2813 = vunpack.c.h.b16 %v2306
    %v2814 = vunpack.c.l.b16 %v2307
    %v2815 = vunpack.c.h.b16 %v2307
    %v2816 = vunpack.c.l.b16 %v2308
    %v2817 = vunpack.c.h.b16 %v2308
    %v2818 = vunpack.c.l.b16 %v2309
    %v2819 = vunpack.c.h.b16 %v2309
    %v2820 = vunpack.c.l.b16 %v2310
    %v2821 = vunpack.c.h.b16 %v2310
    %v2822 = vunpack.c.l.b16 %v2311
    %v2823 = vunpack.c.h.b16 %v2311
    %v2824 = vunpack.c.l.b16 %v2312
    %v2825 = vunpack.c.h.b16 %v2312
    %v2826 = vunpack.c.l.b16 %v2313
    %v2827 = vunpack.c.h.b16 %v2313
    %v2828 = vunpack.c.l.b16 %v2314
    %v2829 = vunpack.c.h.b16 %v2314
    %v2830 = vunpack.c.l.b16 %v2315
    %v2831 = vunpack.c.h.b16 %v2315
    %v2832 = vunpack.c.l.b16 %v2316
    %v2833 = vunpack.c.h.b16 %v2316
    %v2834 = vunpack.c.l.b16 %v2317
    %v2835 = vunpack.c.h.b16 %v2317
    %v2836 = vunpack.c.l.b16 %v2318
    %v2837 = vunpack.c.h.b16 %v2318
    %v2838 = vunpack.c.l.b16 %v2319
    %v2839 = vunpack.c.h.b16 %v2319
    %v2840 = vunpack.c.l.b16 %v2320
    %v2841 = vunpack.c.h.b16 %v2320
    %v2842 = vunpack.c.l.b16 %v2321
    %v2843 = vunpack.c.h.b16 %v2321
    %v2844 = vunpack.c.l.b16 %v2322
    %v2845 = vunpack.c.h.b16 %v2322
    %v2846 = vunpack.c.l.b16 %v2323
    %v2847 = vunpack.c.h.b16 %v2323
    %v2848 = vunpack.c.l.b16 %v2324
    %v2849 = vunpack.c.h.b16 %v2324
    %v2850 = vunpack.c.l.b16 %v2325
    %v2851 = vunpack.c.h.b16 %v2325
    %v2852 = vunpack.c.l.b16 %v2326
    %v2853 = vunpack.c.h.b16 %v2326
    %v2854 = vunpack.c.l.b16 %v2327
    %v2855 = vunpack.c.h.b16 %v2327
    %v2856 = vunpack.c.l.b16 %v2328
    %v2857 = vunpack.c.h.b16 %v2328
    %v2858 = vunpack.c.l.b16 %v2329
    %v2859 = vunpack.c.h.b16 %v2329
    %v2860 = vunpack.c.l.b16 %v2330
    %v2861 = vunpack.c.h.b16 %v2330
    %v2862 = vunpack.c.l.b16 %v2331
    %v2863 = vunpack.c.h.b16 %v2331
    %v2864 = vunpack.c.l.b16 %v2332
    %v2865 = vunpack.c.h.b16 %v2332
    %v2866 = vunpack.c.l.b16 %v2333
    %v2867 = vunpack.c.h.b16 %v2333
    %v2868 = vunpack.c.l.b16 %v2334
    %v2869 = vunpack.c.h.b16 %v2334
    %v2870 = vunpack.c.l.b16 %v2335
    %v2871 = vunpack.c.h.b16 %v2335
    %v2872 = vunpack.c.l.b16 %v2336
    %v2873 = vunpack.c.h.b16 %v2336
    %v2874 = vunpack.c.l.b16 %v2337
    %v2875 = vunpack.c.h.b16 %v2337
    %v2876 = vunpack.c.l.b16 %v2338
    %v2877 = vunpack.c.h.b16 %v2338
    %v2878 = vunpack.c.l.b16 %v2339
    %v2879 = vunpack.c.h.b16 %v2339
    %v2880 = vunpack.c.l.b16 %v2340
    %v2881 = vunpack.c.h.b16 %v2340
    %v2882 = vunpack.c.l.b16 %v2341
    %v2883 = vunpack.c.h.b16 %v2341
    %v2884 = vunpack.c.l.b16 %v2342
    %v2885 = vunpack.c.h.b16 %v2342
    %v2886 = vunpack.c.l.b16 %v2343
    %v2887 = vunpack.c.h.b16 %v2343
    %v2888 = vunpack.c.l.b16 %v2344
    %v2889 = vunpack.c.h.b16 %v2344
    %v2890 = vunpack.c.l.b16 %v2345
    %v2891 = vunpack.c.h.b16 %v2345
    %v2892 = vunpack.c.l.b16 %v2346
    %v2893 = vunpack.c.h.b16 %v2346
    %v2894 = vunpack.c.l.b16 %v2347
    %v2895 = vunpack.c.h.b16 %v2347
    %v2896 = vunpack.c.l.b16 %v2348
    %v2897 = vunpack.c.h.b16 %v2348
    %v2898 = vunpack.c.l.b16 %v2349
    %v2899 = vunpack.c.h.b16 %v2349
    %v2900 = vunpack.c.l.b16 %v2350
    %v2901 = vunpack.c.h.b16 %v2350
    %v2902 = vunpack.c.l.b16 %v2351
    %v2903 = vunpack.c.h.b16 %v2351
    %v2904 = vunpack.c.l.b16 %v2352
    %v2905 = vunpack.c.h.b16 %v2352
    %v2906 = vunpack.c.l.b16 %v2353
    %v2907 = vunpack.c.h.b16 %v2353
    %v2908 = vunpack.c.l.b16 %v2354
    %v2909 = vunpack.c.h.b16 %v2354
    %v2910 = vunpack.c.l.b16 %v2355
    %v2911 = vunpack.c.h.b16 %v2355
    %v2912 = vunpack.c.l.b16 %v2356
    %v2913 = vunpack.c.h.b16 %v2356
    %v2914 = vunpack.c.l.b16 %v2357
    %v2915 = vunpack.c.h.b16 %v2357
    %v2916 = vunpack.c.l.b16 %v2358
    %v2917 = vunpack.c.h.b16 %v2358
    %v2918 = vunpack.c.l.b16 %v2359
    %v2919 = vunpack.c.h.b16 %v2359
    %v2920 = vunpack.c.l.b16 %v2360
    %v2921 = vunpack.c.h.b16 %v2360
    %v2922 = vunpack.c.l.b16 %v2361
    %v2923 = vunpack.c.h.b16 %v2361
    %v2924 = vunpack.c.l.b16 %v2362
    %v2925 = vunpack.c.h.b16 %v2362
    %v2926 = vunpack.c.l.b16 %v2363
    %v2927 = vunpack.c.h.b16 %v2363
    %v2928 = vunpack.c.l.b16 %v2364
    %v2929 = vunpack.c.h.b16 %v2364
    %v2930 = vunpack.c.l.b16 %v2365
    %v2931 = vunpack.c.h.b16 %v2365
    %v2932 = vunpack.c.l.b16 %v2366
    %v2933 = vunpack.c.h.b16 %v2366
    %v2934 = vunpack.c.l.b16 %v2367
    %v2935 = vunpack.c.h.b16 %v2367
    %v2936 = vunpack.c.l.b16 %v2368
    %v2937 = vunpack.c.h.b16 %v2368
    %v2938 = vunpack.c.l.b16 %v2369
    %v2939 = vunpack.c.h.b16 %v2369
    %v2940 = vunpack.c.l.b16 %v2370
    %v2941 = vunpack.c.h.b16 %v2370
    %v2942 = vunpack.c.l.b16 %v2371
    %v2943 = vunpack.c.h.b16 %v2371
    %v2944 = vunpack.c.l.b16 %v2372
    %v2945 = vunpack.c.h.b16 %v2372
    %v2946 = vunpack.c.l.b16 %v2373
    %v2947 = vunpack.c.h.b16 %v2373
    %v2948 = vunpack.c.l.b16 %v2374
    %v2949 = vunpack.c.h.b16 %v2374
    %v2950 = vunpack.c.l.b16 %v2375
    %v2951 = vunpack.c.h.b16 %v2375
    %v2952 = vunpack.c.l.b16 %v2376
    %v2953 = vunpack.c.h.b16 %v2376
    %v2954 = vunpack.c.l.b16 %v2377
    %v2955 = vunpack.c.h.b16 %v2377
    %v2956 = vunpack.c.l.b16 %v2378
    %v2957 = vunpack.c.h.b16 %v2378
    %v2958 = vunpack.c.l.b16 %v2379
    %v2959 = vunpack.c.h.b16 %v2379
    %v2960 = vunpack.c.l.b16 %v2380
    %v2961 = vunpack.c.h.b16 %v2380
    %v2962 = vunpack.c.l.b16 %v2381
    %v2963 = vunpack.c.h.b16 %v2381
    %v2964 = vunpack.c.l.b16 %v2382
    %v2965 = vunpack.c.h.b16 %v2382
    %v2966 = vunpack.c.l.b16 %v2383
    %v2967 = vunpack.c.h.b16 %v2383
    %v2968 = vunpack.c.l.b16 %v2384
    %v2969 = vunpack.c.h.b16 %v2384
    %v2970 = vunpack.c.l.b16 %v2385
    %v2971 = vunpack.c.h.b16 %v2385
    %v2972 = vunpack.c.l.b16 %v2386
    %v2973 = vunpack.c.h.b16 %v2386
    %v2974 = vunpack.c.l.b16 %v2387
    %v2975 = vunpack.c.h.b16 %v2387
    %v2976 = vunpack.c.l.b16 %v2388
    %v2977 = vunpack.c.h.b16 %v2388
    %v2978 = vunpack.c.l.b16 %v2389
    %v2979 = vunpack.c.h.b16 %v2389
    %v2980 = vunpack.c.l.b16 %v2390
    %v2981 = vunpack.c.h.b16 %v2390
    %v2982 = vunpack.c.l.b16 %v2391
    %v2983 = vunpack.c.h.b16 %v2391
    %v2984 = vunpack.c.l.b16 %v2392
    %v2985 = vunpack.c.h.b16 %v2392
    %v2986 = vunpack.c.l.b16 %v2393
    %v2987 = vunpack.c.h.b16 %v2393
    %v2988 = vunpack.c.l.b16 %v2394
    %v2989 = vunpack.c.h.b16 %v2394
    %v2990 = vunpack.c.l.b16 %v2395
    %v2991 = vunpack.c.h.b16 %v2395
    %v2992 = vunpack.c.l.b16 %v2396
    %v2993 = vunpack.c.h.b16 %v2396
    %v2994 = vunpack.c.l.b16 %v2397
    %v2995 = vunpack.c.h.b16 %v2397
    %v2996 = vpack.c.b16 %v2616, %v2612
    %v2997 = vpack.c.b16 %v2617, %v2613
    %v2998 = vpack.c.b16 %v2618, %v2614
    %v2999 = vpack.c.b16 %v2619, %v2615
    %v3000 = vpack.c.b16 %v2624, %v2620
    %v3001 = vpack.c.b16 %v2625, %v2621
    %v3002 = vpack.c.b16 %v2626, %v2622
    %v3003 = vpack.c.b16 %v2627, %v2623
    %v3004 = vpack.c.b16 %v2632, %v2628
    %v3005 = vpack.c.b16 %v2633, %v2629
    %v3006 = vpack.c.b16 %v2634, %v2630
    %v3007 = vpack.c.b16 %v2635, %v2631
    %v3008 = vpack.c.b16 %v2640, %v2636
    %v3009 = vpack.c.b16 %v2641, %v2637
    %v3010 = vpack.c.b16 %v2642, %v2638
    %v3011 = vpack.c.b16 %v2643, %v2639
    %v3012 = vpack.c.b16 %v2648, %v2644
    %v3013 = vpack.c.b16 %v2649, %v2645
    %v3014 = vpack.c.b16 %v2650, %v2646
    %v3015 = vpack.c.b16 %v2651, %v2647
    %v3016 = vpack.c.b16 %v2656, %v2652
    %v3017 = vpack.c.b16 %v2657, %v2653
    %v3018 = vpack.c.b16 %v2658, %v2654
    %v3019 = vpack.c.b16 %v2659, %v2655
    %v3020 = vpack.c.b16 %v2664, %v2660
    %v3021 = vpack.c.b16 %v2665, %v2661
    %v3022 = vpack.c.b16 %v2666, %v2662
    %v3023 = vpack.c.b16 %v2667, %v2663
    %v3024 = vpack.c.b16 %v2672, %v2668
    %v3025 = vpack.c.b16 %v2673, %v2669
    %v3026 = vpack.c.b16 %v2674, %v2670
    %v3027 = vpack.c.b16 %v2675, %v2671
    %v3028 = vpack.c.b16 %v2680, %v2676
    %v3029 = vpack.c.b16 %v2681, %v2677
    %v3030 = vpack.c.b16 %v2682, %v2678
    %v3031 = vpack.c.b16 %v2683, %v2679
    %v3032 = vpack.c.b16 %v2688, %v2684
    %v3033 = vpack.c.b16 %v2689, %v2685
    %v3034 = vpack.c.b16 %v2690, %v2686
    %v3035 = vpack.c.b16 %v2691, %v2687
    %v3036 = vpack.c.b16 %v2696, %v2692
    %v3037 = vpack.c.b16 %v2697, %v2693
    %v3038 = vpack.c.b16 %v2698, %v2694
    %v3039 = vpack.c.b16 %v2699, %v2695
    %v3040 = vpack.c.b16 %v2704, %v2700
    %v3041 = vpack.c.b16 %v2705, %v2701
    %v3042 = vpack.c.b16 %v2706, %v2702
    %v3043 = vpack.c.b16 %v2707, %v2703
    %v3044 = vpack.c.b16 %v2712, %v2708
    %v3045 = vpack.c.b16 %v2713, %v2709
    %v3046 = vpack.c.b16 %v2714, %v2710
    %v3047 = vpack.c.b16 %v2715, %v2711
    %v3048 = vpack.c.b16 %v2720, %v2716
    %v3049 = vpack.c.b16 %v2721, %v2717
    %v3050 = vpack.c.b16 %v2722, %v2718
    %v3051 = vpack.c.b16 %v2723, %v2719
    %v3052 = vpack.c.b16 %v2728, %v2724
    %v3053 = vpack.c.b16 %v2729, %v2725
    %v3054 = vpack.c.b16 %v2730, %v2726
    %v3055 = vpack.c.b16 %v2731, %v2727
    %v3056 = vpack.c.b16 %v2736, %v2732
    %v3057 = vpack.c.b16 %v2737, %v2733
    %v3058 = vpack.c.b16 %v2738, %v2734
    %v3059 = vpack.c.b16 %v2739, %v2735
    %v3060 = vpack.c.b16 %v2744, %v2740
    %v3061 = vpack.c.b16 %v2745, %v2741
    %v3062 = vpack.c.b16 %v2746, %v2742
    %v3063 = vpack.c.b16 %v2747, %v2743
    %v3064 = vpack.c.b16 %v2752, %v2748
    %v3065 = vpack.c.b16 %v2753, %v2749
    %v3066 = vpack.c.b16 %v2754, %v2750
    %v3067 = vpack.c.b16 %v2755, %v2751
    %v3068 = vpack.c.b16 %v2760, %v2756
    %v3069 = vpack.c.b16 %v2761, %v2757
    %v3070 = vpack.c.b16 %v2762, %v2758
    %v3071 = vpack.c.b16 %v2763, %v2759
    %v3072 = vpack.c.b16 %v2768, %v2764
    %v3073 = vpack.c.b16 %v2769, %v2765
    %v3074 = vpack.c.b16 %v2770, %v2766
    %v3075 = vpack.c.b16 %v2771, %v2767
    %v3076 = vpack.c.b16 %v2776, %v2772
    %v3077 = vpack.c.b16 %v2777, %v2773
    %v3078 = vpack.c.b16 %v2778, %v2774
    %v3079 = vpack.c.b16 %v2779, %v2775
    %v3080 = vpack.c.b16 %v2784, %v2780
    %v3081 = vpack.c.b16 %v2785, %v2781
    %v3082 = vpack.c.b16 %v2786, %v2782
    %v3083 = vpack.c.b16 %v2787, %v2783
    %v3084 = vpack.c.b16 %v2792, %v2788
    %v3085 = vpack.c.b16 %v2793, %v2789
    %v3086 = vpack.c.b16 %v2794, %v2790
    %v3087 = vpack.c.b16 %v2795, %v2791
    %v3088 = vpack.c.b16 %v2800, %v2796
    %v3089 = vpack.c.b16 %v2801, %v2797
    %v3090 = vpack.c.b16 %v2802, %v2798
    %v3091 = vpack.c.b16 %v2803, %v2799
    %v3092 = vpack.c.b16 %v2808, %v2804
    %v3093 = vpack.c.b16 %v2809, %v2805
    %v3094 = vpack.c.b16 %v2810, %v2806
    %v3095 = vpack.c.b16 %v2811, %v2807
    %v3096 = vpack.c.b16 %v2816, %v2812
    %v3097 = vpack.c.b16 %v2817, %v2813
    %v3098 = vpack.c.b16 %v2818, %v2814
    %v3099 = vpack.c.b16 %v2819, %v2815
    %v3100 = vpack.c.b16 %v2824, %v2820
    %v3101 = vpack.c.b16 %v2825, %v2821
    %v3102 = vpack.c.b16 %v2826, %v2822
    %v3103 = vpack.c.b16 %v2827, %v2823
    %v3104 = vpack.c.b16 %v2832, %v2828
    %v3105 = vpack.c.b16 %v2833, %v2829
    %v3106 = vpack.c.b16 %v2834, %v2830
    %v3107 = vpack.c.b16 %v2835, %v2831
    %v3108 = vpack.c.b16 %v2840, %v2836
    %v3109 = vpack.c.b16 %v2841, %v2837
    %v3110 = vpack.c.b16 %v2842, %v2838
    %v3111 = vpack.c.b16 %v2843, %v2839
    %v3112 = vpack.c.b16 %v2848, %v2844
    %v3113 = vpack.c.b16 %v2849, %v2845
    %v3114 = vpack.c.b16 %v2850, %v2846
    %v3115 = vpack.c.b16 %v2851, %v2847
    %v3116 = vpack.c.b16 %v2856, %v2852
    %v3117 = vpack.c.b16 %v2857, %v2853
    %v3118 = vpack.c.b16 %v2858, %v2854
    %v3119 = vpack.c.b16 %v2859, %v2855
    %v3120 = vpack.c.b16 %v2864, %v2860
    %v3121 = vpack.c.b16 %v2865, %v2861
    %v3122 = vpack.c.b16 %v2866, %v2862
    %v3123 = vpack.c.b16 %v2867, %v2863
    %v3124 = vpack.c.b16 %v2872, %v2868
    %v3125 = vpack.c.b16 %v2873, %v2869
    %v3126 = vpack.c.b16 %v2874, %v2870
    %v3127 = vpack.c.b16 %v2875, %v2871
    %v3128 = vpack.c.b16 %v2880, %v2876
    %v3129 = vpack.c.b16 %v2881, %v2877
    %v3130 = vpack.c.b16 %v2882, %v2878
    %v3131 = vpack.c.b16 %v2883, %v2879
    %v3132 = vpack.c.b16 %v2888, %v2884
    %v3133 = vpack.c.b16 %v2889, %v2885
    %v3134 = vpack.c.b16 %v2890, %v2886
    %v3135 = vpack.c.b16 %v2891, %v2887
    %v3136 = vpack.c.b16 %v2896, %v2892
    %v3137 = vpack.c.b16 %v2897, %v2893
    %v3138 = vpack.c.b16 %v2898, %v2894
    %v3139 = vpack.c.b16 %v2899, %v2895
    %v3140 = vpack.c.b16 %v2904, %v2900
    %v3141 = vpack.c.b16 %v2905, %v2901
    %v3142 = vpack.c.b16 %v2906, %v2902
    %v3143 = vpack.c.b16 %v2907, %v2903
    %v3144 = vpack.c.b16 %v2912, %v2908
    %v3145 = vpack.c.b16 %v2913, %v2909
    %v3146 = vpack.c.b16 %v2914, %v2910
    %v3147 = vpack.c.b16 %v2915, %v2911
    %v3148 = vpack.c.b16 %v2920, %v2916
    %v3149 = vpack.c.b16 %v2921, %v2917
    %v3150 = vpack.c.b16 %v2922, %v2918
    %v3151 = vpack.c.b16 %v2923, %v2919
    %v3152 = vpack.c.b16 %v2928, %v2924
    %v3153 = vpack.c.b16 %v2929, %v2925
    %v3154 = vpack.c.b16 %v2930, %v2926
    %v3155 = vpack.c.b16 %v2931, %v2927
    %v3156 = vpack.c.b16 %v2936, %v2932
    %v3157 = vpack.c.b16 %v2937, %v2933
    %v3158 = vpack.c.b16 %v2938, %v2934
    %v3159 = vpack.c.b16 %v2939, %v2935
    %v3160 = vpack.c.b16 %v2944, %v2940
    %v3161 = vpack.c.b16 %v2945, %v2941
    %v3162 = vpack.c.b16 %v2946, %v2942
    %v3163 = vpack.c.b16 %v2947, %v2943
    %v3164 = vpack.c.b16 %v2952, %v2948
    %v3165 = vpack.c.b16 %v2953, %v2949
    %v3166 = vpack.c.b16 %v2954, %v2950
    %v3167 = vpack.c.b16 %v2955, %v2951
    %v3168 = vpack.c.b16 %v2960, %v2956
    %v3169 = vpack.c.b16 %v2961, %v2957
    %v3170 = vpack.c.b16 %v2962, %v2958
    %v3171 = vpack.c.b16 %v2963, %v2959
    %v3172 = vpack.c.b16 %v2968, %v2964
    %v3173 = vpack.c.b16 %v2969, %v2965
    %v3174 = vpack.c.b16 %v2970, %v2966
    %v3175 = vpack.c.b16 %v2971, %v2967
    %v3176 = vpack.c.b16 %v2976, %v2972
    %v3177 = vpack.c.b16 %v2977, %v2973
    %v3178 = vpack.c.b16 %v2978, %v2974
    %v3179 = vpack.c.b16 %v2979, %v2975
    %v3180 = vpack.c.b16 %v2984, %v2980
    %v3181 = vpack.c.b16 %v2985, %v2981
    %v3182 = vpack.c.b16 %v2986, %v2982
    %v3183 = vpack.c.b16 %v2987, %v2983
    %v3184 = vpack.c.b16 %v2992, %v2988
    %v3185 = vpack.c.b16 %v2993, %v2989
    %v3186 = vpack.c.b16 %v2994, %v2990
    %v3187 = vpack.c.b16 %v2995, %v2991
    %3380 = vmatprep.subr.bf16.mxu0 %v2997
    %3381 = vmatpush1.bf16.msra.mxu0 %v2996
    %3382 = vmatprep.subr.bf16.mxu0 %v3001
    %3383 = vmatpush1.bf16.msra.mxu0 %v3000
    %3384 = vmatprep.subr.bf16.mxu0 %v3005
    %3385 = vmatpush1.bf16.msra.mxu0 %v3004
    %3386 = vmatprep.subr.bf16.mxu0 %v3009
    %3387 = vmatpush1.bf16.msra.mxu0 %v3008
    %3388 = vmatprep.subr.bf16.mxu0 %v3013
    %3389 = vmatpush1.bf16.msra.mxu0 %v3012
    %3390 = vmatprep.subr.bf16.mxu0 %v3017
    %3391 = vmatpush1.bf16.msra.mxu0 %v3016
    %3392 = vmatprep.subr.bf16.mxu0 %v3021
    %3393 = vmatpush1.bf16.msra.mxu0 %v3020
    %3394 = vmatprep.subr.bf16.mxu0 %v3025
    %3395 = vmatpush1.bf16.msra.mxu0 %v3024
    %3396 = vmatprep.subr.bf16.mxu0 %v3029
    %3397 = vmatpush1.bf16.msra.mxu0 %v3028
    %3398 = vmatprep.subr.bf16.mxu0 %v3033
    %3399 = vmatpush1.bf16.msra.mxu0 %v3032
    %3400 = vmatprep.subr.bf16.mxu0 %v3037
    %3401 = vmatpush1.bf16.msra.mxu0 %v3036
    %3402 = vmatprep.subr.bf16.mxu0 %v3041
    %3403 = vmatpush1.bf16.msra.mxu0 %v3040
    %3404 = vmatprep.subr.bf16.mxu0 %v3045
    %3405 = vmatpush1.bf16.msra.mxu0 %v3044
    %3406 = vmatprep.subr.bf16.mxu0 %v3049
    %3407 = vmatpush1.bf16.msra.mxu0 %v3048
    %3408 = vmatprep.subr.bf16.mxu0 %v3053
    %3409 = vmatpush1.bf16.msra.mxu0 %v3052
    %3410 = vmatprep.subr.bf16.mxu0 %v3057
    %3411 = vmatpush1.bf16.msra.mxu0 %v3056
    %3412 = vmatprep.mubr.bf16.mxu0 %v2201
    %3413 = vmatmul.mubr.bf16.gmra.mrb[0].mxu0 %v2200
    %v3414 = vpop.f32.mrb[0].mxu0
    %v3415 = vadd.f32 %v2403, %v3414
    %v3416 = vpop.f32.mrb[0].mxu0
    %v3417 = vadd.f32 %v2407, %v3416
    %v3418 = vpop.f32.mrb[0].mxu0
    %v3419 = vpop.f32.mrb[0].mxu0
    %3420 = vdwg.mxu0
    %3421 = vmatprep.subr.bf16.mxu0 %v3061
    %3422 = vmatpush1.bf16.msra.mxu0 %v3060
    %3423 = vmatprep.subr.bf16.mxu0 %v3065
    %3424 = vmatpush1.bf16.msra.mxu0 %v3064
    %3425 = vmatprep.subr.bf16.mxu0 %v3069
    %3426 = vmatpush1.bf16.msra.mxu0 %v3068
    %3427 = vmatprep.subr.bf16.mxu0 %v3073
    %3428 = vmatpush1.bf16.msra.mxu0 %v3072
    %3429 = vmatprep.subr.bf16.mxu0 %v3077
    %3430 = vmatpush1.bf16.msra.mxu0 %v3076
    %3431 = vmatprep.subr.bf16.mxu0 %v3081
    %3432 = vmatpush1.bf16.msra.mxu0 %v3080
    %3433 = vmatprep.subr.bf16.mxu0 %v3085
    %3434 = vmatpush1.bf16.msra.mxu0 %v3084
    %3435 = vmatprep.subr.bf16.mxu0 %v3089
    %3436 = vmatpush1.bf16.msra.mxu0 %v3088
    %3437 = vmatprep.subr.bf16.mxu0 %v3093
    %3438 = vmatpush1.bf16.msra.mxu0 %v3092
    %3439 = vmatprep.subr.bf16.mxu0 %v3097
    %3440 = vmatpush1.bf16.msra.mxu0 %v3096
    %3441 = vmatprep.subr.bf16.mxu0 %v3101
    %3442 = vmatpush1.bf16.msra.mxu0 %v3100
    %3443 = vmatprep.subr.bf16.mxu0 %v3105
    %3444 = vmatpush1.bf16.msra.mxu0 %v3104
    %3445 = vmatprep.subr.bf16.mxu0 %v3109
    %3446 = vmatpush1.bf16.msra.mxu0 %v3108
    %3447 = vmatprep.subr.bf16.mxu0 %v3113
    %3448 = vmatpush1.bf16.msra.mxu0 %v3112
    %3449 = vmatprep.subr.bf16.mxu0 %v3117
    %3450 = vmatpush1.bf16.msra.mxu0 %v3116
    %3451 = vmatprep.subr.bf16.mxu0 %v3121
    %3452 = vmatpush1.bf16.msra.mxu0 %v3120
    %3453 = vmatprep.mubr.bf16.mxu0 %v2203
    %3454 = vmatmul.mubr.bf16.gmra.mrb[0].mxu0 %v2202
    %v3455 = vpop.f32.mrb[0].mxu0
    %v3456 = vadd.f32 %v3415, %v3455
    %v3457 = vpop.f32.mrb[0].mxu0
    %v3458 = vadd.f32 %v3417, %v3457
    %v3459 = vpop.f32.mrb[0].mxu0
    %v3460 = vpop.f32.mrb[0].mxu0
    %3461 = vdwg.mxu0
    %3462 = vmatprep.subr.bf16.mxu0 %v3125
    %3463 = vmatpush1.bf16.msra.mxu0 %v3124
    %3464 = vmatprep.subr.bf16.mxu0 %v3129
    %3465 = vmatpush1.bf16.msra.mxu0 %v3128
    %3466 = vmatprep.subr.bf16.mxu0 %v3133
    %3467 = vmatpush1.bf16.msra.mxu0 %v3132
    %3468 = vmatprep.subr.bf16.mxu0 %v3137
    %3469 = vmatpush1.bf16.msra.mxu0 %v3136
    %3470 = vmatprep.subr.bf16.mxu0 %v3141
    %3471 = vmatpush1.bf16.msra.mxu0 %v3140
    %3472 = vmatprep.subr.bf16.mxu0 %v3145
    %3473 = vmatpush1.bf16.msra.mxu0 %v3144
    %3474 = vmatprep.subr.bf16.mxu0 %v3149
    %3475 = vmatpush1.bf16.msra.mxu0 %v3148
    %3476 = vmatprep.subr.bf16.mxu0 %v3153
    %3477 = vmatpush1.bf16.msra.mxu0 %v3152
    %3478 = vmatprep.subr.bf16.mxu0 %v3157
    %3479 = vmatpush1.bf16.msra.mxu0 %v3156
    %3480 = vmatprep.subr.bf16.mxu0 %v3161
    %3481 = vmatpush1.bf16.msra.mxu0 %v3160
    %3482 = vmatprep.subr.bf16.mxu0 %v3165
    %3483 = vmatpush1.bf16.msra.mxu0 %v3164
    %3484 = vmatprep.subr.bf16.mxu0 %v3169
    %3485 = vmatpush1.bf16.msra.mxu0 %v3168
    %3486 = vmatprep.subr.bf16.mxu0 %v3173
    %3487 = vmatpush1.bf16.msra.mxu0 %v3172
    %3488 = vmatprep.subr.bf16.mxu0 %v3177
    %3489 = vmatpush1.bf16.msra.mxu0 %v3176
    %3490 = vmatprep.subr.bf16.mxu0 %v3181
    %3491 = vmatpush1.bf16.msra.mxu0 %v3180
    %3492 = vmatprep.subr.bf16.mxu0 %v3185
    %3493 = vmatpush1.bf16.msra.mxu0 %v3184
    %3494 = vmatprep.mubr.bf16.mxu0 %v2205
    %3495 = vmatmul.mubr.bf16.gmra.mrb[0].mxu0 %v2204
    %v3496 = vpop.f32.mrb[0].mxu0
    %v3497 = vadd.f32 %v3456, %v3496
    %v3498 = vpop.f32.mrb[0].mxu0
    %v3499 = vadd.f32 %v3458, %v3498
    %v3500 = vpop.f32.mrb[0].mxu0
    %v3501 = vpop.f32.mrb[0].mxu0
    %3502 = vdwg.mxu0
    %3503 = vmatprep.subr.bf16.mxu0 %v2999
    %3504 = vmatpush1.bf16.msra.mxu0 %v2998
    %3505 = vmatprep.subr.bf16.mxu0 %v3003
    %3506 = vmatpush1.bf16.msra.mxu0 %v3002
    %3507 = vmatprep.subr.bf16.mxu0 %v3007
    %3508 = vmatpush1.bf16.msra.mxu0 %v3006
    %3509 = vmatprep.subr.bf16.mxu0 %v3011
    %3510 = vmatpush1.bf16.msra.mxu0 %v3010
    %3511 = vmatprep.subr.bf16.mxu0 %v3015
    %3512 = vmatpush1.bf16.msra.mxu0 %v3014
    %3513 = vmatprep.subr.bf16.mxu0 %v3019
    %3514 = vmatpush1.bf16.msra.mxu0 %v3018
    %3515 = vmatprep.subr.bf16.mxu0 %v3023
    %3516 = vmatpush1.bf16.msra.mxu0 %v3022
    %3517 = vmatprep.subr.bf16.mxu0 %v3027
    %3518 = vmatpush1.bf16.msra.mxu0 %v3026
    %3519 = vmatprep.subr.bf16.mxu0 %v3031
    %3520 = vmatpush1.bf16.msra.mxu0 %v3030
    %3521 = vmatprep.subr.bf16.mxu0 %v3035
    %3522 = vmatpush1.bf16.msra.mxu0 %v3034
    %3523 = vmatprep.subr.bf16.mxu0 %v3039
    %3524 = vmatpush1.bf16.msra.mxu0 %v3038
    %3525 = vmatprep.subr.bf16.mxu0 %v3043
    %3526 = vmatpush1.bf16.msra.mxu0 %v3042
    %3527 = vmatprep.subr.bf16.mxu0 %v3047
    %3528 = vmatpush1.bf16.msra.mxu0 %v3046
    %3529 = vmatprep.subr.bf16.mxu0 %v3051
    %3530 = vmatpush1.bf16.msra.mxu0 %v3050
    %3531 = vmatprep.subr.bf16.mxu0 %v3055
    %3532 = vmatpush1.bf16.msra.mxu0 %v3054
    %3533 = vmatprep.subr.bf16.mxu0 %v3059
    %3534 = vmatpush1.bf16.msra.mxu0 %v3058
    %3535 = vmatprep.mubr.bf16.mxu0 %v2201
    %3536 = vmatmul.mubr.bf16.gmra.mrb[0].mxu0 %v2200
    %v3537 = vpop.f32.mrb[0].mxu0
    %v3538 = vadd.f32 %v2411, %v3537
    %v3539 = vpop.f32.mrb[0].mxu0
    %v3540 = vadd.f32 %v2415, %v3539
    %v3541 = vpop.f32.mrb[0].mxu0
    %v3542 = vpop.f32.mrb[0].mxu0
    %3543 = vdwg.mxu0
    %3544 = vmatprep.subr.bf16.mxu0 %v3063
    %3545 = vmatpush1.bf16.msra.mxu0 %v3062
    %3546 = vmatprep.subr.bf16.mxu0 %v3067
    %3547 = vmatpush1.bf16.msra.mxu0 %v3066
    %3548 = vmatprep.subr.bf16.mxu0 %v3071
    %3549 = vmatpush1.bf16.msra.mxu0 %v3070
    %3550 = vmatprep.subr.bf16.mxu0 %v3075
    %3551 = vmatpush1.bf16.msra.mxu0 %v3074
    %3552 = vmatprep.subr.bf16.mxu0 %v3079
    %3553 = vmatpush1.bf16.msra.mxu0 %v3078
    %3554 = vmatprep.subr.bf16.mxu0 %v3083
    %3555 = vmatpush1.bf16.msra.mxu0 %v3082
    %3556 = vmatprep.subr.bf16.mxu0 %v3087
    %3557 = vmatpush1.bf16.msra.mxu0 %v3086
    %3558 = vmatprep.subr.bf16.mxu0 %v3091
    %3559 = vmatpush1.bf16.msra.mxu0 %v3090
    %3560 = vmatprep.subr.bf16.mxu0 %v3095
    %3561 = vmatpush1.bf16.msra.mxu0 %v3094
    %3562 = vmatprep.subr.bf16.mxu0 %v3099
    %3563 = vmatpush1.bf16.msra.mxu0 %v3098
    %3564 = vmatprep.subr.bf16.mxu0 %v3103
    %3565 = vmatpush1.bf16.msra.mxu0 %v3102
    %3566 = vmatprep.subr.bf16.mxu0 %v3107
    %3567 = vmatpush1.bf16.msra.mxu0 %v3106
    %3568 = vmatprep.subr.bf16.mxu0 %v3111
    %3569 = vmatpush1.bf16.msra.mxu0 %v3110
    %3570 = vmatprep.subr.bf16.mxu0 %v3115
    %3571 = vmatpush1.bf16.msra.mxu0 %v3114
    %3572 = vmatprep.subr.bf16.mxu0 %v3119
    %3573 = vmatpush1.bf16.msra.mxu0 %v3118
    %3574 = vmatprep.subr.bf16.mxu0 %v3123
    %3575 = vmatpush1.bf16.msra.mxu0 %v3122
    %3576 = vmatprep.mubr.bf16.mxu0 %v2203
    %3577 = vmatmul.mubr.bf16.gmra.mrb[0].mxu0 %v2202
    %v3578 = vpop.f32.mrb[0].mxu0
    %v3579 = vadd.f32 %v3538, %v3578
    %v3580 = vpop.f32.mrb[0].mxu0
    %v3581 = vadd.f32 %v3540, %v3580
    %v3582 = vpop.f32.mrb[0].mxu0
    %v3583 = vpop.f32.mrb[0].mxu0
    %3584 = vdwg.mxu0
    %3585 = vmatprep.subr.bf16.mxu0 %v3127
    %3586 = vmatpush1.bf16.msra.mxu0 %v3126
    %3587 = vmatprep.subr.bf16.mxu0 %v3131
    %3588 = vmatpush1.bf16.msra.mxu0 %v3130
    %3589 = vmatprep.subr.bf16.mxu0 %v3135
    %3590 = vmatpush1.bf16.msra.mxu0 %v3134
    %3591 = vmatprep.subr.bf16.mxu0 %v3139
    %3592 = vmatpush1.bf16.msra.mxu0 %v3138
    %3593 = vmatprep.subr.bf16.mxu0 %v3143
    %3594 = vmatpush1.bf16.msra.mxu0 %v3142
    %3595 = vmatprep.subr.bf16.mxu0 %v3147
    %3596 = vmatpush1.bf16.msra.mxu0 %v3146
    %3597 = vmatprep.subr.bf16.mxu0 %v3151
    %3598 = vmatpush1.bf16.msra.mxu0 %v3150
    %3599 = vmatprep.subr.bf16.mxu0 %v3155
    %3600 = vmatpush1.bf16.msra.mxu0 %v3154
    %3601 = vmatprep.subr.bf16.mxu0 %v3159
    %3602 = vmatpush1.bf16.msra.mxu0 %v3158
    %3603 = vmatprep.subr.bf16.mxu0 %v3163
    %3604 = vmatpush1.bf16.msra.mxu0 %v3162
    %3605 = vmatprep.subr.bf16.mxu0 %v3167
    %3606 = vmatpush1.bf16.msra.mxu0 %v3166
    %3607 = vmatprep.subr.bf16.mxu0 %v3171
    %3608 = vmatpush1.bf16.msra.mxu0 %v3170
    %3609 = vmatprep.subr.bf16.mxu0 %v3175
    %3610 = vmatpush1.bf16.msra.mxu0 %v3174
    %3611 = vmatprep.subr.bf16.mxu0 %v3179
    %3612 = vmatpush1.bf16.msra.mxu0 %v3178
    %3613 = vmatprep.subr.bf16.mxu0 %v3183
    %3614 = vmatpush1.bf16.msra.mxu0 %v3182
    %3615 = vmatprep.subr.bf16.mxu0 %v3187
    %3616 = vmatpush1.bf16.msra.mxu0 %v3186
    %3617 = vmatprep.mubr.bf16.mxu0 %v2205
    %3618 = vmatmul.mubr.bf16.gmra.mrb[0].mxu0 %v2204
    %v3619 = vpop.f32.mrb[0].mxu0
    %v3620 = vadd.f32 %v3579, %v3619
    %v3621 = vpop.f32.mrb[0].mxu0
    %v3622 = vadd.f32 %v3581, %v3621
    %v3623 = vpop.f32.mrb[0].mxu0
    %v3624 = vpop.f32.mrb[0].mxu0
    %3625 = vdwg.mxu0
    %v3626 = vmax.f32 %v3497, 0.0
    %v3627 = vmax.f32 %v3499, 0.0
    %v3628 = vmax.f32 %v3620, 0.0
    %v3629 = vmax.f32 %v3622, 0.0
    %v3630 = vpack.c.bf16 %v3626, %v3626
    %v3631 = vpack.c.bf16 %v3627, %v3627
    %v3632 = vpack.c.bf16 %v3628, %v3628
    %v3633 = vpack.c.bf16 %v3629, %v3629
    %v3634 = vld [vmem:[#allocation2] sm:$0xf]
    %v3635 = vld [vmem:[#allocation2 + $0x4] sm:$0xf]
    %v3636 = vld [vmem:[#allocation2 + $0x8] sm:$0xf]
    %v3637 = vld [vmem:[#allocation2 + $0xc] sm:$0xf]
    %v3638 = vld [vmem:[#allocation2 + $0x10] sm:$0xf]
    %v3639 = vld [vmem:[#allocation2 + $0x14] sm:$0xf]
    %v3640 = vld [vmem:[#allocation2 + $0x18] sm:$0xf]
    %v3641 = vld [vmem:[#allocation2 + $0x1c] sm:$0xf]
    %v3642 = vld [vmem:[#allocation2 + $0x20] sm:$0xf]
    %v3643 = vld [vmem:[#allocation2 + $0x24] sm:$0xf]
    %v3644 = vld [vmem:[#allocation2 + $0x28] sm:$0xf]
    %v3645 = vld [vmem:[#allocation2 + $0x2c] sm:$0xf]
    %v3646 = vld [vmem:[#allocation2 + $0x30] sm:$0xf]
    %v3647 = vld [vmem:[#allocation2 + $0x34] sm:$0xf]
    %v3648 = vld [vmem:[#allocation2 + $0x38] sm:$0xf]
    %v3649 = vld [vmem:[#allocation2 + $0x3c] sm:$0xf]
    %v3650 = vld [vmem:[#allocation2 + $0x40] sm:$0xf]
    %v3651 = vld [vmem:[#allocation2 + $0x44] sm:$0xf]
    %v3652 = vld [vmem:[#allocation2 + $0x48] sm:$0xf]
    %v3653 = vld [vmem:[#allocation2 + $0x4c] sm:$0xf]
    %v3654 = vld [vmem:[#allocation2 + $0x50] sm:$0xf]
    %v3655 = vld [vmem:[#allocation2 + $0x54] sm:$0xf]
    %v3656 = vld [vmem:[#allocation2 + $0x58] sm:$0xf]
    %v3657 = vld [vmem:[#allocation2 + $0x5c] sm:$0xf]
    %v3658 = vld [vmem:[#allocation2 + $0x60] sm:$0xf]
    %v3659 = vld [vmem:[#allocation2 + $0x64] sm:$0xf]
    %v3660 = vld [vmem:[#allocation2 + $0x68] sm:$0xf]
    %v3661 = vld [vmem:[#allocation2 + $0x6c] sm:$0xf]
    %v3662 = vld [vmem:[#allocation2 + $0x70] sm:$0xf]
    %v3663 = vld [vmem:[#allocation2 + $0x74] sm:$0xf]
    %v3664 = vld [vmem:[#allocation2 + $0x78] sm:$0xf]
    %v3665 = vld [vmem:[#allocation2 + $0x7c] sm:$0xf]
    %v3666 = vld [vmem:[#allocation2 + $0x80] sm:$0xf]
    %v3667 = vld [vmem:[#allocation2 + $0x84] sm:$0xf]
    %v3668 = vld [vmem:[#allocation2 + $0x88] sm:$0xf]
    %v3669 = vld [vmem:[#allocation2 + $0x8c] sm:$0xf]
    %v3670 = vld [vmem:[#allocation2 + $0x90] sm:$0xf]
    %v3671 = vld [vmem:[#allocation2 + $0x94] sm:$0xf]
    %v3672 = vld [vmem:[#allocation2 + $0x98] sm:$0xf]
    %v3673 = vld [vmem:[#allocation2 + $0x9c] sm:$0xf]
    %v3674 = vld [vmem:[#allocation2 + $0xa0] sm:$0xf]
    %v3675 = vld [vmem:[#allocation2 + $0xa4] sm:$0xf]
    %v3676 = vld [vmem:[#allocation2 + $0xa8] sm:$0xf]
    %v3677 = vld [vmem:[#allocation2 + $0xac] sm:$0xf]
    %v3678 = vld [vmem:[#allocation2 + $0xb0] sm:$0xf]
    %v3679 = vld [vmem:[#allocation2 + $0xb4] sm:$0xf]
    %v3680 = vld [vmem:[#allocation2 + $0xb8] sm:$0xf]
    %v3681 = vld [vmem:[#allocation2 + $0xbc] sm:$0xf]
    %v3682 = vld [vmem:[#allocation2 + $0xc0] sm:$0xf]
    %v3683 = vld [vmem:[#allocation2 + $0xc4] sm:$0xf]
    %v3684 = vld [vmem:[#allocation2 + $0xc8] sm:$0xf]
    %v3685 = vld [vmem:[#allocation2 + $0xcc] sm:$0xf]
    %v3686 = vld [vmem:[#allocation2 + $0xd0] sm:$0xf]
    %v3687 = vld [vmem:[#allocation2 + $0xd4] sm:$0xf]
    %v3688 = vld [vmem:[#allocation2 + $0xd8] sm:$0xf]
    %v3689 = vld [vmem:[#allocation2 + $0xdc] sm:$0xf]
    %v3690 = vld [vmem:[#allocation2 + $0xe0] sm:$0xf]
    %v3691 = vld [vmem:[#allocation2 + $0xe4] sm:$0xf]
    %v3692 = vld [vmem:[#allocation2 + $0xe8] sm:$0xf]
    %v3693 = vld [vmem:[#allocation2 + $0xec] sm:$0xf]
    %v3694 = vld [vmem:[#allocation2 + $0xf0] sm:$0xf]
    %v3695 = vld [vmem:[#allocation2 + $0xf4] sm:$0xf]
    %v3696 = vld [vmem:[#allocation2 + $0xf8] sm:$0xf]
    %v3697 = vld [vmem:[#allocation2 + $0xfc] sm:$0xf]
    %v3698 = vld [vmem:[%s6] sm:$0x1]
    %v3700 = vlaneseq
    %v3701 = vshrl.u32 %v3700, 7
    %v3702 = vsub.s32 0, %v3701
    %v3703 = vrot.slane %v3698, %v3702
    %v3769 = vunpack.c.l.b16 %v3634
    %v3770 = vunpack.c.l.b16 %v3635
    %v3771 = vunpack.c.l.b16 %v3636
    %v3772 = vunpack.c.l.b16 %v3637
    %v3773 = vunpack.c.l.b16 %v3638
    %v3774 = vunpack.c.l.b16 %v3639
    %v3775 = vunpack.c.l.b16 %v3640
    %v3776 = vunpack.c.l.b16 %v3641
    %v3777 = vunpack.c.l.b16 %v3642
    %v3778 = vunpack.c.l.b16 %v3643
    %v3779 = vunpack.c.l.b16 %v3644
    %v3780 = vunpack.c.l.b16 %v3645
    %v3781 = vunpack.c.l.b16 %v3646
    %v3782 = vunpack.c.l.b16 %v3647
    %v3783 = vunpack.c.l.b16 %v3648
    %v3784 = vunpack.c.l.b16 %v3649
    %v3785 = vunpack.c.l.b16 %v3650
    %v3786 = vunpack.c.l.b16 %v3651
    %v3787 = vunpack.c.l.b16 %v3652
    %v3788 = vunpack.c.l.b16 %v3653
    %v3789 = vunpack.c.l.b16 %v3654
    %v3790 = vunpack.c.l.b16 %v3655
    %v3791 = vunpack.c.l.b16 %v3656
    %v3792 = vunpack.c.l.b16 %v3657
    %v3793 = vunpack.c.l.b16 %v3658
    %v3794 = vunpack.c.l.b16 %v3659
    %v3795 = vunpack.c.l.b16 %v3660
    %v3796 = vunpack.c.l.b16 %v3661
    %v3797 = vunpack.c.l.b16 %v3662
    %v3798 = vunpack.c.l.b16 %v3663
    %v3799 = vunpack.c.l.b16 %v3664
    %v3800 = vunpack.c.l.b16 %v3665
    %v3801 = vunpack.c.l.b16 %v3666
    %v3802 = vunpack.c.l.b16 %v3667
    %v3803 = vunpack.c.l.b16 %v3668
    %v3804 = vunpack.c.l.b16 %v3669
    %v3805 = vunpack.c.l.b16 %v3670
    %v3806 = vunpack.c.l.b16 %v3671
    %v3807 = vunpack.c.l.b16 %v3672
    %v3808 = vunpack.c.l.b16 %v3673
    %v3809 = vunpack.c.l.b16 %v3674
    %v3810 = vunpack.c.l.b16 %v3675
    %v3811 = vunpack.c.l.b16 %v3676
    %v3812 = vunpack.c.l.b16 %v3677
    %v3813 = vunpack.c.l.b16 %v3678
    %v3814 = vunpack.c.l.b16 %v3679
    %v3815 = vunpack.c.l.b16 %v3680
    %v3816 = vunpack.c.l.b16 %v3681
    %v3817 = vunpack.c.l.b16 %v3682
    %v3818 = vunpack.c.l.b16 %v3683
    %v3819 = vunpack.c.l.b16 %v3684
    %v3820 = vunpack.c.l.b16 %v3685
    %v3821 = vunpack.c.l.b16 %v3686
    %v3822 = vunpack.c.l.b16 %v3687
    %v3823 = vunpack.c.l.b16 %v3688
    %v3824 = vunpack.c.l.b16 %v3689
    %v3825 = vunpack.c.l.b16 %v3690
    %v3826 = vunpack.c.l.b16 %v3691
    %v3827 = vunpack.c.l.b16 %v3692
    %v3828 = vunpack.c.l.b16 %v3693
    %v3829 = vunpack.c.l.b16 %v3694
    %v3830 = vunpack.c.l.b16 %v3695
    %v3831 = vunpack.c.l.b16 %v3696
    %v3832 = vunpack.c.l.b16 %v3697
    %v3833 = vpack.c.b16 %v3770, %v3769
    %v3834 = vpack.c.b16 %v3772, %v3771
    %v3835 = vpack.c.b16 %v3774, %v3773
    %v3836 = vpack.c.b16 %v3776, %v3775
    %v3837 = vpack.c.b16 %v3778, %v3777
    %v3838 = vpack.c.b16 %v3780, %v3779
    %v3839 = vpack.c.b16 %v3782, %v3781
    %v3840 = vpack.c.b16 %v3784, %v3783
    %v3841 = vpack.c.b16 %v3786, %v3785
    %v3842 = vpack.c.b16 %v3788, %v3787
    %v3843 = vpack.c.b16 %v3790, %v3789
    %v3844 = vpack.c.b16 %v3792, %v3791
    %v3845 = vpack.c.b16 %v3794, %v3793
    %v3846 = vpack.c.b16 %v3796, %v3795
    %v3847 = vpack.c.b16 %v3798, %v3797
    %v3848 = vpack.c.b16 %v3800, %v3799
    %v3849 = vpack.c.b16 %v3802, %v3801
    %v3850 = vpack.c.b16 %v3804, %v3803
    %v3851 = vpack.c.b16 %v3806, %v3805
    %v3852 = vpack.c.b16 %v3808, %v3807
    %v3853 = vpack.c.b16 %v3810, %v3809
    %v3854 = vpack.c.b16 %v3812, %v3811
    %v3855 = vpack.c.b16 %v3814, %v3813
    %v3856 = vpack.c.b16 %v3816, %v3815
    %v3857 = vpack.c.b16 %v3818, %v3817
    %v3858 = vpack.c.b16 %v3820, %v3819
    %v3859 = vpack.c.b16 %v3822, %v3821
    %v3860 = vpack.c.b16 %v3824, %v3823
    %v3861 = vpack.c.b16 %v3826, %v3825
    %v3862 = vpack.c.b16 %v3828, %v3827
    %v3863 = vpack.c.b16 %v3830, %v3829
    %v3864 = vpack.c.b16 %v3832, %v3831
    %3897 = vmatprep.subr.bf16.mxu0 0
    %3898 = vmatpush1.bf16.msra.mxu0 %v3833
    %3899 = vmatprep.subr.bf16.mxu0 0
    %3900 = vmatpush1.bf16.msra.mxu0 %v3834
    %3901 = vmatprep.subr.bf16.mxu0 0
    %3902 = vmatpush1.bf16.msra.mxu0 %v3835
    %3903 = vmatprep.subr.bf16.mxu0 0
    %3904 = vmatpush1.bf16.msra.mxu0 %v3836
    %3905 = vmatprep.subr.bf16.mxu0 0
    %3906 = vmatpush1.bf16.msra.mxu0 %v3837
    %3907 = vmatprep.subr.bf16.mxu0 0
    %3908 = vmatpush1.bf16.msra.mxu0 %v3838
    %3909 = vmatprep.subr.bf16.mxu0 0
    %3910 = vmatpush1.bf16.msra.mxu0 %v3839
    %3911 = vmatprep.subr.bf16.mxu0 0
    %3912 = vmatpush1.bf16.msra.mxu0 %v3840
    %3913 = vmatprep.subr.bf16.mxu0 0
    %3914 = vmatpush1.bf16.msra.mxu0 %v3841
    %3915 = vmatprep.subr.bf16.mxu0 0
    %3916 = vmatpush1.bf16.msra.mxu0 %v3842
    %3917 = vmatprep.subr.bf16.mxu0 0
    %3918 = vmatpush1.bf16.msra.mxu0 %v3843
    %3919 = vmatprep.subr.bf16.mxu0 0
    %3920 = vmatpush1.bf16.msra.mxu0 %v3844
    %3921 = vmatprep.subr.bf16.mxu0 0
    %3922 = vmatpush1.bf16.msra.mxu0 %v3845
    %3923 = vmatprep.subr.bf16.mxu0 0
    %3924 = vmatpush1.bf16.msra.mxu0 %v3846
    %3925 = vmatprep.subr.bf16.mxu0 0
    %3926 = vmatpush1.bf16.msra.mxu0 %v3847
    %3927 = vmatprep.subr.bf16.mxu0 0
    %3928 = vmatpush1.bf16.msra.mxu0 %v3848
    %3929 = vmatprep.mubr.bf16.mxu0 %v3631
    %3930 = vmatmul.mubr.bf16.gmra.mrb[0].mxu0 %v3630
    %v3931 = vpop.f32.mrb[0].mxu0
    %v3932 = vadd.f32 %v3703, %v3931
    %v3933 = vpop.f32.mrb[0].mxu0
    %v3934 = vpop.f32.mrb[0].mxu0
    %v3935 = vpop.f32.mrb[0].mxu0
    %3936 = vdwg.mxu0
    %3937 = vmatprep.subr.bf16.mxu0 0
    %3938 = vmatpush1.bf16.msra.mxu0 %v3849
    %3939 = vmatprep.subr.bf16.mxu0 0
    %3940 = vmatpush1.bf16.msra.mxu0 %v3850
    %3941 = vmatprep.subr.bf16.mxu0 0
    %3942 = vmatpush1.bf16.msra.mxu0 %v3851
    %3943 = vmatprep.subr.bf16.mxu0 0
    %3944 = vmatpush1.bf16.msra.mxu0 %v3852
    %3945 = vmatprep.subr.bf16.mxu0 0
    %3946 = vmatpush1.bf16.msra.mxu0 %v3853
    %3947 = vmatprep.subr.bf16.mxu0 0
    %3948 = vmatpush1.bf16.msra.mxu0 %v3854
    %3949 = vmatprep.subr.bf16.mxu0 0
    %3950 = vmatpush1.bf16.msra.mxu0 %v3855
    %3951 = vmatprep.subr.bf16.mxu0 0
    %3952 = vmatpush1.bf16.msra.mxu0 %v3856
    %3953 = vmatprep.subr.bf16.mxu0 0
    %3954 = vmatpush1.bf16.msra.mxu0 %v3857
    %3955 = vmatprep.subr.bf16.mxu0 0
    %3956 = vmatpush1.bf16.msra.mxu0 %v3858
    %3957 = vmatprep.subr.bf16.mxu0 0
    %3958 = vmatpush1.bf16.msra.mxu0 %v3859
    %3959 = vmatprep.subr.bf16.mxu0 0
    %3960 = vmatpush1.bf16.msra.mxu0 %v3860
    %3961 = vmatprep.subr.bf16.mxu0 0
    %3962 = vmatpush1.bf16.msra.mxu0 %v3861
    %3963 = vmatprep.subr.bf16.mxu0 0
    %3964 = vmatpush1.bf16.msra.mxu0 %v3862
    %3965 = vmatprep.subr.bf16.mxu0 0
    %3966 = vmatpush1.bf16.msra.mxu0 %v3863
    %3967 = vmatprep.subr.bf16.mxu0 0
    %3968 = vmatpush1.bf16.msra.mxu0 %v3864
    %3969 = vmatprep.mubr.bf16.mxu0 %v3633
    %3970 = vmatmul.mubr.bf16.gmra.mrb[0].mxu0 %v3632
    %v3971 = vpop.f32.mrb[0].mxu0
    %v3972 = vadd.f32 %v3932, %v3971
    %v3973 = vpop.f32.mrb[0].mxu0
    %v3974 = vpop.f32.mrb[0].mxu0
    %v3975 = vpop.f32.mrb[0].mxu0
    %3976 = vdwg.mxu0
    %v3977 = vlaneseq
    %v3978 = vand.u32 %v3977, 127
    %vm3979 = vcmp.lt.s32.totalorder %v3978, 2
    %v3980 = vsel %vm3979, %v3972, -1e+30
    %3981 = vmax.xlane.f32.xlu0 %v3980
    %v3982 = vpop.xlane.xlu0 %3981
    %v3983 = vsub.f32 %v3980, %v3982
    %v3984 = vmul.f32 %v3983, 1.442695
    %v3985 = vpow.pop %v3984
    %v3986 = vsel %vm3979, %v3985, 0.0
    %3987 = vadd.xlane.f32.xlu0 %v3986
    %v3988 = vpop.xlane.xlu0 %3987
    %v3989 = vlog2.pop %v3988
    %v3990 = vmul.f32 %v3989, 0.6931472
    %v3991 = vsub.f32 %v3983, %v3990
    %3992 = vst [vmem:[%s7] sm:$0xff] %v3991
    // Predicated region
    $region34: #{bert_arch_forward.1} parent=1 // pred_check
      _
    $region35: #{bert_arch_forward.1} parent=1 // pred_check_branch
      %3994 = sbr.rel (0) target = $region37
    $region36: #{bert_arch_forward.1} parent=1 // pred_region
      _
    $region37: #{bert_arch_forward.1} parent=1 // pred_fallthru
      _
    // Predicated region
    $region38: #{bert_arch_forward.1} parent=1 // pred_check
      _
    $region39: #{bert_arch_forward.1} parent=1 // pred_check_branch
      %3996 = sbr.rel (0) target = $region41
    $region40: #{bert_arch_forward.1} parent=1 // pred_region
      _
    $region41: #{bert_arch_forward.1} parent=1 // pred_fallthru
      _
    %3997 = vsyncpa [#allocation3], 1

</llo_original>
